<compile_context>
chip_gen: v5e
topology: v5e:2x2
jax: 0.10.0
libtpu: 0.0.40
codegen_flags: <defaults>
</compile_context>

<pallas_src>
import functools
import math

import jax
import jax.numpy as jnp
from jax.experimental import pallas as pl
from jax.experimental.pallas import tpu as pltpu


def _round_up(x, m):
    return (x + m - 1) // m * m


# ----------------------------- Pallas kernel ---------------------------------
def kan_linear_kernel(x_ref, grid_ref, invd_ref, c_ref, w_ref, o_ref, feats_ref):
    """One batch tile, batch on the lane axis.

    x_ref     : [in, TB]            f32, batch on lanes (full 128-lane VPU use)
    grid_ref  : [in, M]             f32, knots per input feature
    invd_ref  : [K, in, M]          f32, 1/(g[j+k]-g[j])    (0 outside valid j)
    c_ref     : [K, in, M]          f32, g[j]/(g[j+k]-g[j]) (grid folded in)
    w_ref     : [out_p, (C+1)*in]   fused [base | spline] weight (matmul dtype)
    o_ref     : [TB, out_p]         output tile (lane-dense, out_p % 128 == 0)
    feats_ref : [(C+1)*in, TB]      VMEM scratch, fused feature matrix
    """
    x = x_ref[...]                                    # [in, TB] f32
    in_features = x_ref.shape[0]
    M = grid_ref.shape[1]                             # n_knots = G + 2K + 1
    spline_order = invd_ref.shape[0]
    fdt = feats_ref.dtype

    # --- base path: silu(x) -> feature block 0 (aligned sublane store) -------
    feats_ref[pl.ds(0, in_features), :] = (x * jax.nn.sigmoid(x)).astype(fdt)

    # --- degree-0 bases: indicator(g[j] <= x < g[j+1]) = geq[j] - geq[j+1] ----
    # built incrementally so only two [in, TB] compare results are live.
    bases = []
    geq_prev = (x >= grid_ref[:, 0:1]).astype(jnp.float32)
    for j in range(1, M):
        geq_cur = (x >= grid_ref[:, j:j + 1]).astype(jnp.float32)
        bases.append(geq_prev - geq_cur)
        geq_prev = geq_cur                            # len(bases) == M - 1

    # --- Cox-de Boor recursion: no divides, no (x - g[j]) temporaries --------
    #   left_k[j] = (x - g[j]) / (g[j+k] - g[j]) = x * invd[k-1,j] - c[k-1,j]
    #   B_k[j]    = left_k[j] * B_{k-1}[j] + (1 - left_k[j+1]) * B_{k-1}[j+1]
    for k in range(1, spline_order + 1):
        new_bases = []
        left_j = x * invd_ref[k - 1, :, 0:1] - c_ref[k - 1, :, 0:1]
        for j in range(len(bases) - 1):
            left_j1 = (x * invd_ref[k - 1, :, j + 1:j + 2]
                       - c_ref[k - 1, :, j + 1:j + 2])
            new_bases.append(left_j * bases[j] + (1.0 - left_j1) * bases[j + 1])
            left_j = left_j1
        bases = new_bases
    # len(bases) == grid_size + spline_order == C

    # --- fused feature assembly: aligned sublane-block stores ----------------
    for ci, b in enumerate(bases):
        feats_ref[pl.ds((ci + 1) * in_features, in_features), :] = b.astype(fdt)

    # --- single MXU contraction over the fused K = (C+1)*in axis -------------
    # [out_p, K] @ [K, TB] -> [out_p, TB]; one XLU transpose to the lane-dense
    # [TB, out_p] output tile (out_p, TB both multiples of 128).
    ot = jnp.dot(w_ref[...], feats_ref[...], preferred_element_type=jnp.float32)
    o_ref[...] = ot.T.astype(o_ref.dtype)


# ------------------------ parameter preparation (once) ------------------------
def prepare_kan_linear_params(grid, base_weight, spline_weight, spline_scaler,
                              *, spline_order, matmul_dtype=jnp.float32):
    """Pure function of the parameters: call once per parameter update, NOT per
    forward call (hoists the transpose/reshape/pad glue off the hot path).

    grid          : [in, G + 2K + 1]
    base_weight   : [out, in]
    spline_weight : [out, in, C]      (C = grid_size + spline_order)
    spline_scaler : [out, in] or None
    """
    f32 = jnp.float32
    out_features, in_features, _ = spline_weight.shape
    M = grid.shape[1]

    # fused LHS weight [out, (C+1)*in], coefficient-major spline blocks so the
    # column order matches the kernel's feature-block order.
    scaled = (spline_weight * spline_scaler[:, :, None]
              if spline_scaler is not None else spline_weight)
    spline_flat = jnp.transpose(scaled, (0, 2, 1)).reshape(out_features, -1)
    w_fused = jnp.concatenate([base_weight, spline_flat], axis=1)

    # pad out_features to a multiple of 128 -> lane-dense output stores.
    out_p = _round_up(out_features, 128)
    if out_p != out_features:
        w_fused = jnp.pad(w_fused, ((0, out_p - out_features), (0, 0)))
    w_fused = w_fused.astype(matmul_dtype)

    # reciprocal Cox-de Boor denominators + grid-folded offsets:
    #   invd[k-1,:,j] = 1/(g[j+k]-g[j]),   c[k-1,:,j] = g[j] * invd[k-1,:,j]
    grid = grid.astype(f32)
    invd = jnp.zeros((spline_order, in_features, M), f32)
    for k in range(1, spline_order + 1):
        invd = invd.at[k - 1, :, :M - k].set(1.0 / (grid[:, k:] - grid[:, :-k]))
    c = invd * grid[None, :, :]

    return grid, invd, c, w_fused, out_features


# ------------------------------ forward wrapper --------------------------------
def kan_linear_forward(x, params, *, tile_batch=128):
    """x: [B, in_features]; params from prepare_kan_linear_params."""
    grid_lane, invd, c, w_fused, out_features = params
    B, in_features = x.shape
    spline_order, _, M = invd.shape
    out_p, K_fused = w_fused.shape
    f32 = jnp.float32

    # batch tile lives on the LANE axis -> must be a multiple of 128.  TB = 128
    # keeps vreg pressure bounded; any B >= 256 then gives >= 2 "parallel" grid
    # steps (both v7x TensorCores busy).
    TB = max(128, _round_up(tile_batch, 128))
    B_p = _round_up(B, TB)
    x_t = jnp.pad(x.astype(f32), ((0, B_p - B), (0, 0))).T        # [in, B_p]

    # explicit VMEM budget (double-buffered tiles + invariant tables + scratch).
    def _pad_bytes(rows, cols, itemsize):
        return _round_up(rows, 8) * _round_up(cols, 128) * itemsize
    wi = w_fused.dtype.itemsize
    vmem_bytes = (
        2 * _pad_bytes(in_features, TB, 4)                    # x tile
        + 2 * _pad_bytes(in_features, M, 4)                   # grid
        + 4 * spline_order * _pad_bytes(in_features, M, 4)    # invd + c
        + 2 * _pad_bytes(out_p, K_fused, wi)                  # fused weight
        + _pad_bytes(K_fused, TB, wi)                         # feats scratch
        + 2 * _pad_bytes(TB, out_p, 4)                        # output tile
    )
    vmem_limit = min(int(vmem_bytes * 1.5) + (4 << 20), 128 << 20)

    out = pl.pallas_call(
        kan_linear_kernel,
        out_shape=jax.ShapeDtypeStruct((B_p, out_p), x.dtype),
        grid_spec=pltpu.PrefetchScalarGridSpec(
            num_scalar_prefetch=0,
            grid=(B_p // TB,),
            in_specs=[
                pl.BlockSpec((in_features, TB), lambda i: (0, i)),            # x_t
                pl.BlockSpec((in_features, M), lambda i: (0, 0)),             # grid
                pl.BlockSpec((spline_order, in_features, M),
                             lambda i: (0, 0, 0)),                            # invd
                pl.BlockSpec((spline_order, in_features, M),
                             lambda i: (0, 0, 0)),                            # c
                pl.BlockSpec((out_p, K_fused), lambda i: (0, 0)),             # w_fused
            ],
            out_specs=pl.BlockSpec((TB, out_p), lambda i: (i, 0)),
            scratch_shapes=[pltpu.VMEM((K_fused, TB), w_fused.dtype)],
        ),
        compiler_params=pltpu.CompilerParams(
            dimension_semantics=("parallel",),
            vmem_limit_bytes=vmem_limit),
    )(x_t, grid_lane, invd, c, w_fused)

    return out[:B, :out_features]


# ------------------------- pure-JAX reference ---------------------------------
def kan_linear_ref(x, grid, base_weight, spline_weight, spline_scaler,
                   *, spline_order):
    base_out = jax.nn.silu(x) @ base_weight.T
    xg = x[:, :, None]
    bases = ((xg >= grid[:, :-1]) & (xg < grid[:, 1:])).astype(x.dtype)
    for k in range(1, spline_order + 1):
        bases = ((xg - grid[:, :-(k + 1)])
                 / (grid[:, k:-1] - grid[:, :-(k + 1)]) * bases[:, :, :-1]
                 + (grid[:, k + 1:] - xg)
                 / (grid[:, k + 1:] - grid[:, 1:-k]) * bases[:, :, 1:])
    scaled = spline_weight * spline_scaler[:, :, None]
    spline_out = bases.reshape(x.shape[0], -1) @ scaled.reshape(base_weight.shape[0], -1).T
    return base_out + spline_out


# --------------------------------- main ----------------------------------------
if __name__ == "__main__":
    # module hyperparameters (defaults of KANLinear)
    in_features, out_features = 32, 16
    grid_size, spline_order = 5, 3
    scale_noise, scale_base, scale_spline = 0.1, 1.0, 1.0
    grid_range = (-1.0, 1.0)
    B = 8

    key = jax.random.PRNGKey(0)
    kx, kb, ks = jax.random.split(key, 3)

    # grid buffer: arange(-K, G+K+1)*h + lo, expanded to [in, G+2K+1]
    h = (grid_range[1] - grid_range[0]) / grid_size
    knots = jnp.arange(-spline_order, grid_size + spline_order + 1,
                       dtype=jnp.float32) * h + grid_range[0]
    grid = jnp.broadcast_to(knots, (in_features, knots.shape[0]))

    # deterministic parameter init (mirrors reset_parameters semantics)
    a = math.sqrt(5) * scale_base
    gain = math.sqrt(2.0 / (1.0 + a * a))
    bound = gain * math.sqrt(3.0 / in_features)           # kaiming_uniform_ bound
    base_weight = jax.random.uniform(kb, (out_features, in_features),
                                     jnp.float32, -bound, bound)
    sbound = scale_noise / grid_size
    spline_weight = jax.random.uniform(
        ks, (out_features, in_features, grid_size + spline_order),
        jnp.float32, -sbound, sbound)
    spline_scaler = jnp.full((out_features, in_features), scale_spline, jnp.float32)

    # input
    x = jax.random.uniform(kx, (B, in_features), jnp.float32, -1.0, 1.0)

    # parameter glue computed ONCE (per parameter update), not per forward.
    # (use matmul_dtype=jnp.bfloat16 on v6e/v7x for ~4x MXU throughput at
    #  relaxed tolerance; kept f32 here for the strict 1e-4 check.)
    params = prepare_kan_linear_params(grid, base_weight, spline_weight,
                                       spline_scaler, spline_order=spline_order,
                                       matmul_dtype=jnp.float32)

    out = kan_linear_forward(x, params)
    out = jax.block_until_ready(out)

    ref = kan_linear_ref(x, grid, base_weight, spline_weight, spline_scaler,
                         spline_order=spline_order)
    assert out.shape == (B, out_features)
    assert jnp.allclose(out, ref, atol=1e-4, rtol=1e-4), "mismatch vs reference"

    print("KERNEL_OK")
</pallas_src>

<mosaic_0001>
module attributes {stable_mosaic.version = 11 : i64} {
  func.func @kan_linear_kernel(%arg0: i32, %arg1: memref<32x128xf32, #tpu.memory_space<vmem>>, %arg2: memref<32x12xf32, #tpu.memory_space<vmem>>, %arg3: memref<3x32x12xf32, #tpu.memory_space<vmem>>, %arg4: memref<3x32x12xf32, #tpu.memory_space<vmem>>, %arg5: memref<128x288xf32, #tpu.memory_space<vmem>>, %arg6: memref<128x128xf32, #tpu.memory_space<vmem>>, %arg7: memref<288x128xf32, #tpu.memory_space<vmem>>) attributes {dimension_semantics = [#tpu.dimension_semantics<parallel>], iteration_bounds = array<i64: 1>, scalar_prefetch = 0 : i64, scratch_operands = 1 : i64, tpu.core_type = #tpu.core_type<tc>, window_params = [{transform_indices = @transform_0, window_bounds = array<i64: 32, 128>}, {pipeline_mode = #tpu.pipeline_mode<synchronous>, transform_indices = @transform_1, window_bounds = array<i64: 32, 12>}, {pipeline_mode = #tpu.pipeline_mode<synchronous>, transform_indices = @transform_2, window_bounds = array<i64: 3, 32, 12>}, {pipeline_mode = #tpu.pipeline_mode<synchronous>, transform_indices = @transform_3, window_bounds = array<i64: 3, 32, 12>}, {pipeline_mode = #tpu.pipeline_mode<synchronous>, transform_indices = @transform_4, window_bounds = array<i64: 128, 288>}, {transform_indices = @transform_5, window_bounds = array<i64: 128, 128>}]} {
    %c0 = arith.constant 0 : index
    %c0_0 = arith.constant 0 : index
    %0 = vector.load %arg1[%c0, %c0_0] : memref<32x128xf32, #tpu.memory_space<vmem>>, vector<32x128xf32>
    %1 = arith.negf %0 : vector<32x128xf32>
    %2 = math.exp %1 : vector<32x128xf32>
    %cst = arith.constant 1.000000e+00 : f32
    %3 = vector.broadcast %cst : f32 to vector<32x128xf32>
    %4 = arith.addf %3, %2 : vector<32x128xf32>
    %5 = arith.divf %3, %4 : vector<32x128xf32>
    %6 = arith.mulf %0, %5 : vector<32x128xf32>
    %c0_1 = arith.constant 0 : index
    %c0_2 = arith.constant 0 : index
    %7 = vector.load %arg7[%c0_1, %c0_2] : memref<288x128xf32, #tpu.memory_space<vmem>>, vector<32x128xf32>
    tpu.vector_store %arg7[%c0_1, %c0_2], %6 {strides = array<i32>} : memref<288x128xf32, #tpu.memory_space<vmem>>, vector<32x128xf32>,
    %c0_3 = arith.constant 0 : index
    %c0_4 = arith.constant 0 : index
    %8 = vector.load %arg2[%c0_3, %c0_4] : memref<32x12xf32, #tpu.memory_space<vmem>>, vector<32x1xf32>
    %9 = vector.broadcast %8 : vector<32x1xf32> to vector<32x128xf32>
    %10 = arith.cmpf oge, %0, %9 : vector<32x128xf32>
    %11 = arith.extui %10 : vector<32x128xi1> to vector<32x128xi32>
    %12 = arith.sitofp %11 : vector<32x128xi32> to vector<32x128xf32>
    %c0_5 = arith.constant 0 : index
    %c1 = arith.constant 1 : index
    %13 = vector.load %arg2[%c0_5, %c1] : memref<32x12xf32, #tpu.memory_space<vmem>>, vector<32x1xf32>
    %14 = vector.broadcast %13 : vector<32x1xf32> to vector<32x128xf32>
    %15 = arith.cmpf oge, %0, %14 : vector<32x128xf32>
    %16 = arith.extui %15 : vector<32x128xi1> to vector<32x128xi32>
    %17 = arith.sitofp %16 : vector<32x128xi32> to vector<32x128xf32>
    %18 = arith.subf %12, %17 : vector<32x128xf32>
    %c0_6 = arith.constant 0 : index
    %c2 = arith.constant 2 : index
    %19 = vector.load %arg2[%c0_6, %c2] : memref<32x12xf32, #tpu.memory_space<vmem>>, vector<32x1xf32>
    %20 = vector.broadcast %19 : vector<32x1xf32> to vector<32x128xf32>
    %21 = arith.cmpf oge, %0, %20 : vector<32x128xf32>
    %22 = arith.extui %21 : vector<32x128xi1> to vector<32x128xi32>
    %23 = arith.sitofp %22 : vector<32x128xi32> to vector<32x128xf32>
    %24 = arith.subf %17, %23 : vector<32x128xf32>
    %c0_7 = arith.constant 0 : index
    %c3 = arith.constant 3 : index
    %25 = vector.load %arg2[%c0_7, %c3] : memref<32x12xf32, #tpu.memory_space<vmem>>, vector<32x1xf32>
    %26 = vector.broadcast %25 : vector<32x1xf32> to vector<32x128xf32>
    %27 = arith.cmpf oge, %0, %26 : vector<32x128xf32>
    %28 = arith.extui %27 : vector<32x128xi1> to vector<32x128xi32>
    %29 = arith.sitofp %28 : vector<32x128xi32> to vector<32x128xf32>
    %30 = arith.subf %23, %29 : vector<32x128xf32>
    %c0_8 = arith.constant 0 : index
    %c4 = arith.constant 4 : index
    %31 = vector.load %arg2[%c0_8, %c4] : memref<32x12xf32, #tpu.memory_space<vmem>>, vector<32x1xf32>
    %32 = vector.broadcast %31 : vector<32x1xf32> to vector<32x128xf32>
    %33 = arith.cmpf oge, %0, %32 : vector<32x128xf32>
    %34 = arith.extui %33 : vector<32x128xi1> to vector<32x128xi32>
    %35 = arith.sitofp %34 : vector<32x128xi32> to vector<32x128xf32>
    %36 = arith.subf %29, %35 : vector<32x128xf32>
    %c0_9 = arith.constant 0 : index
    %c5 = arith.constant 5 : index
    %37 = vector.load %arg2[%c0_9, %c5] : memref<32x12xf32, #tpu.memory_space<vmem>>, vector<32x1xf32>
    %38 = vector.broadcast %37 : vector<32x1xf32> to vector<32x128xf32>
    %39 = arith.cmpf oge, %0, %38 : vector<32x128xf32>
    %40 = arith.extui %39 : vector<32x128xi1> to vector<32x128xi32>
    %41 = arith.sitofp %40 : vector<32x128xi32> to vector<32x128xf32>
    %42 = arith.subf %35, %41 : vector<32x128xf32>
    %c0_10 = arith.constant 0 : index
    %c6 = arith.constant 6 : index
    %43 = vector.load %arg2[%c0_10, %c6] : memref<32x12xf32, #tpu.memory_space<vmem>>, vector<32x1xf32>
    %44 = vector.broadcast %43 : vector<32x1xf32> to vector<32x128xf32>
    %45 = arith.cmpf oge, %0, %44 : vector<32x128xf32>
    %46 = arith.extui %45 : vector<32x128xi1> to vector<32x128xi32>
    %47 = arith.sitofp %46 : vector<32x128xi32> to vector<32x128xf32>
    %48 = arith.subf %41, %47 : vector<32x128xf32>
    %c0_11 = arith.constant 0 : index
    %c7 = arith.constant 7 : index
    %49 = vector.load %arg2[%c0_11, %c7] : memref<32x12xf32, #tpu.memory_space<vmem>>, vector<32x1xf32>
    %50 = vector.broadcast %49 : vector<32x1xf32> to vector<32x128xf32>
    %51 = arith.cmpf oge, %0, %50 : vector<32x128xf32>
    %52 = arith.extui %51 : vector<32x128xi1> to vector<32x128xi32>
    %53 = arith.sitofp %52 : vector<32x128xi32> to vector<32x128xf32>
    %54 = arith.subf %47, %53 : vector<32x128xf32>
    %c0_12 = arith.constant 0 : index
    %c8 = arith.constant 8 : index
    %55 = vector.load %arg2[%c0_12, %c8] : memref<32x12xf32, #tpu.memory_space<vmem>>, vector<32x1xf32>
    %56 = vector.broadcast %55 : vector<32x1xf32> to vector<32x128xf32>
    %57 = arith.cmpf oge, %0, %56 : vector<32x128xf32>
    %58 = arith.extui %57 : vector<32x128xi1> to vector<32x128xi32>
    %59 = arith.sitofp %58 : vector<32x128xi32> to vector<32x128xf32>
    %60 = arith.subf %53, %59 : vector<32x128xf32>
    %c0_13 = arith.constant 0 : index
    %c9 = arith.constant 9 : index
    %61 = vector.load %arg2[%c0_13, %c9] : memref<32x12xf32, #tpu.memory_space<vmem>>, vector<32x1xf32>
    %62 = vector.broadcast %61 : vector<32x1xf32> to vector<32x128xf32>
    %63 = arith.cmpf oge, %0, %62 : vector<32x128xf32>
    %64 = arith.extui %63 : vector<32x128xi1> to vector<32x128xi32>
    %65 = arith.sitofp %64 : vector<32x128xi32> to vector<32x128xf32>
    %66 = arith.subf %59, %65 : vector<32x128xf32>
    %c0_14 = arith.constant 0 : index
    %c10 = arith.constant 10 : index
    %67 = vector.load %arg2[%c0_14, %c10] : memref<32x12xf32, #tpu.memory_space<vmem>>, vector<32x1xf32>
    %68 = vector.broadcast %67 : vector<32x1xf32> to vector<32x128xf32>
    %69 = arith.cmpf oge, %0, %68 : vector<32x128xf32>
    %70 = arith.extui %69 : vector<32x128xi1> to vector<32x128xi32>
    %71 = arith.sitofp %70 : vector<32x128xi32> to vector<32x128xf32>
    %72 = arith.subf %65, %71 : vector<32x128xf32>
    %c0_15 = arith.constant 0 : index
    %c11 = arith.constant 11 : index
    %73 = vector.load %arg2[%c0_15, %c11] : memref<32x12xf32, #tpu.memory_space<vmem>>, vector<32x1xf32>
    %74 = vector.broadcast %73 : vector<32x1xf32> to vector<32x128xf32>
    %75 = arith.cmpf oge, %0, %74 : vector<32x128xf32>
    %76 = arith.extui %75 : vector<32x128xi1> to vector<32x128xi32>
    %77 = arith.sitofp %76 : vector<32x128xi32> to vector<32x128xf32>
    %78 = arith.subf %71, %77 : vector<32x128xf32>
    %c0_16 = arith.constant 0 : index
    %c0_17 = arith.constant 0 : index
    %c0_18 = arith.constant 0 : index
    %79 = vector.load %arg3[%c0_16, %c0_17, %c0_18] : memref<3x32x12xf32, #tpu.memory_space<vmem>>, vector<1x32x1xf32>
    %80 = vector.shape_cast %79 : vector<1x32x1xf32> to vector<32x1xf32>
    %81 = vector.broadcast %80 : vector<32x1xf32> to vector<32x128xf32>
    %82 = arith.mulf %0, %81 : vector<32x128xf32>
    %c0_19 = arith.constant 0 : index
    %c0_20 = arith.constant 0 : index
    %c0_21 = arith.constant 0 : index
    %83 = vector.load %arg4[%c0_19, %c0_20, %c0_21] : memref<3x32x12xf32, #tpu.memory_space<vmem>>, vector<1x32x1xf32>
    %84 = vector.shape_cast %83 : vector<1x32x1xf32> to vector<32x1xf32>
    %85 = vector.broadcast %84 : vector<32x1xf32> to vector<32x128xf32>
    %86 = arith.subf %82, %85 : vector<32x128xf32>
    %c0_22 = arith.constant 0 : index
    %c0_23 = arith.constant 0 : index
    %c1_24 = arith.constant 1 : index
    %87 = vector.load %arg3[%c0_22, %c0_23, %c1_24] : memref<3x32x12xf32, #tpu.memory_space<vmem>>, vector<1x32x1xf32>
    %88 = vector.shape_cast %87 : vector<1x32x1xf32> to vector<32x1xf32>
    %89 = vector.broadcast %88 : vector<32x1xf32> to vector<32x128xf32>
    %90 = arith.mulf %0, %89 : vector<32x128xf32>
    %c0_25 = arith.constant 0 : index
    %c0_26 = arith.constant 0 : index
    %c1_27 = arith.constant 1 : index
    %91 = vector.load %arg4[%c0_25, %c0_26, %c1_27] : memref<3x32x12xf32, #tpu.memory_space<vmem>>, vector<1x32x1xf32>
    %92 = vector.shape_cast %91 : vector<1x32x1xf32> to vector<32x1xf32>
    %93 = vector.broadcast %92 : vector<32x1xf32> to vector<32x128xf32>
    %94 = arith.subf %90, %93 : vector<32x128xf32>
    %95 = arith.mulf %86, %18 : vector<32x128xf32>
    %cst_28 = arith.constant 1.000000e+00 : f32
    %96 = vector.broadcast %cst_28 : f32 to vector<32x128xf32>
    %97 = arith.subf %96, %94 : vector<32x128xf32>
    %98 = arith.mulf %97, %24 : vector<32x128xf32>
    %99 = arith.addf %95, %98 : vector<32x128xf32>
    %c0_29 = arith.constant 0 : index
    %c0_30 = arith.constant 0 : index
    %c2_31 = arith.constant 2 : index
    %100 = vector.load %arg3[%c0_29, %c0_30, %c2_31] : memref<3x32x12xf32, #tpu.memory_space<vmem>>, vector<1x32x1xf32>
    %101 = vector.shape_cast %100 : vector<1x32x1xf32> to vector<32x1xf32>
    %102 = vector.broadcast %101 : vector<32x1xf32> to vector<32x128xf32>
    %103 = arith.mulf %0, %102 : vector<32x128xf32>
    %c0_32 = arith.constant 0 : index
    %c0_33 = arith.constant 0 : index
    %c2_34 = arith.constant 2 : index
    %104 = vector.load %arg4[%c0_32, %c0_33, %c2_34] : memref<3x32x12xf32, #tpu.memory_space<vmem>>, vector<1x32x1xf32>
    %105 = vector.shape_cast %104 : vector<1x32x1xf32> to vector<32x1xf32>
    %106 = vector.broadcast %105 : vector<32x1xf32> to vector<32x128xf32>
    %107 = arith.subf %103, %106 : vector<32x128xf32>
    %108 = arith.mulf %94, %24 : vector<32x128xf32>
    %cst_35 = arith.constant 1.000000e+00 : f32
    %109 = vector.broadcast %cst_35 : f32 to vector<32x128xf32>
    %110 = arith.subf %109, %107 : vector<32x128xf32>
    %111 = arith.mulf %110, %30 : vector<32x128xf32>
    %112 = arith.addf %108, %111 : vector<32x128xf32>
    %c0_36 = arith.constant 0 : index
    %c0_37 = arith.constant 0 : index
    %c3_38 = arith.constant 3 : index
    %113 = vector.load %arg3[%c0_36, %c0_37, %c3_38] : memref<3x32x12xf32, #tpu.memory_space<vmem>>, vector<1x32x1xf32>
    %114 = vector.shape_cast %113 : vector<1x32x1xf32> to vector<32x1xf32>
    %115 = vector.broadcast %114 : vector<32x1xf32> to vector<32x128xf32>
    %116 = arith.mulf %0, %115 : vector<32x128xf32>
    %c0_39 = arith.constant 0 : index
    %c0_40 = arith.constant 0 : index
    %c3_41 = arith.constant 3 : index
    %117 = vector.load %arg4[%c0_39, %c0_40, %c3_41] : memref<3x32x12xf32, #tpu.memory_space<vmem>>, vector<1x32x1xf32>
    %118 = vector.shape_cast %117 : vector<1x32x1xf32> to vector<32x1xf32>
    %119 = vector.broadcast %118 : vector<32x1xf32> to vector<32x128xf32>
    %120 = arith.subf %116, %119 : vector<32x128xf32>
    %121 = arith.mulf %107, %30 : vector<32x128xf32>
    %cst_42 = arith.constant 1.000000e+00 : f32
    %122 = vector.broadcast %cst_42 : f32 to vector<32x128xf32>
    %123 = arith.subf %122, %120 : vector<32x128xf32>
    %124 = arith.mulf %123, %36 : vector<32x128xf32>
    %125 = arith.addf %121, %124 : vector<32x128xf32>
    %c0_43 = arith.constant 0 : index
    %c0_44 = arith.constant 0 : index
    %c4_45 = arith.constant 4 : index
    %126 = vector.load %arg3[%c0_43, %c0_44, %c4_45] : memref<3x32x12xf32, #tpu.memory_space<vmem>>, vector<1x32x1xf32>
    %127 = vector.shape_cast %126 : vector<1x32x1xf32> to vector<32x1xf32>
    %128 = vector.broadcast %127 : vector<32x1xf32> to vector<32x128xf32>
    %129 = arith.mulf %0, %128 : vector<32x128xf32>
    %c0_46 = arith.constant 0 : index
    %c0_47 = arith.constant 0 : index
    %c4_48 = arith.constant 4 : index
    %130 = vector.load %arg4[%c0_46, %c0_47, %c4_48] : memref<3x32x12xf32, #tpu.memory_space<vmem>>, vector<1x32x1xf32>
    %131 = vector.shape_cast %130 : vector<1x32x1xf32> to vector<32x1xf32>
    %132 = vector.broadcast %131 : vector<32x1xf32> to vector<32x128xf32>
    %133 = arith.subf %129, %132 : vector<32x128xf32>
    %134 = arith.mulf %120, %36 : vector<32x128xf32>
    %cst_49 = arith.constant 1.000000e+00 : f32
    %135 = vector.broadcast %cst_49 : f32 to vector<32x128xf32>
    %136 = arith.subf %135, %133 : vector<32x128xf32>
    %137 = arith.mulf %136, %42 : vector<32x128xf32>
    %138 = arith.addf %134, %137 : vector<32x128xf32>
    %c0_50 = arith.constant 0 : index
    %c0_51 = arith.constant 0 : index
    %c5_52 = arith.constant 5 : index
    %139 = vector.load %arg3[%c0_50, %c0_51, %c5_52] : memref<3x32x12xf32, #tpu.memory_space<vmem>>, vector<1x32x1xf32>
    %140 = vector.shape_cast %139 : vector<1x32x1xf32> to vector<32x1xf32>
    %141 = vector.broadcast %140 : vector<32x1xf32> to vector<32x128xf32>
    %142 = arith.mulf %0, %141 : vector<32x128xf32>
    %c0_53 = arith.constant 0 : index
    %c0_54 = arith.constant 0 : index
    %c5_55 = arith.constant 5 : index
    %143 = vector.load %arg4[%c0_53, %c0_54, %c5_55] : memref<3x32x12xf32, #tpu.memory_space<vmem>>, vector<1x32x1xf32>
    %144 = vector.shape_cast %143 : vector<1x32x1xf32> to vector<32x1xf32>
    %145 = vector.broadcast %144 : vector<32x1xf32> to vector<32x128xf32>
    %146 = arith.subf %142, %145 : vector<32x128xf32>
    %147 = arith.mulf %133, %42 : vector<32x128xf32>
    %cst_56 = arith.constant 1.000000e+00 : f32
    %148 = vector.broadcast %cst_56 : f32 to vector<32x128xf32>
    %149 = arith.subf %148, %146 : vector<32x128xf32>
    %150 = arith.mulf %149, %48 : vector<32x128xf32>
    %151 = arith.addf %147, %150 : vector<32x128xf32>
    %c0_57 = arith.constant 0 : index
    %c0_58 = arith.constant 0 : index
    %c6_59 = arith.constant 6 : index
    %152 = vector.load %arg3[%c0_57, %c0_58, %c6_59] : memref<3x32x12xf32, #tpu.memory_space<vmem>>, vector<1x32x1xf32>
    %153 = vector.shape_cast %152 : vector<1x32x1xf32> to vector<32x1xf32>
    %154 = vector.broadcast %153 : vector<32x1xf32> to vector<32x128xf32>
    %155 = arith.mulf %0, %154 : vector<32x128xf32>
    %c0_60 = arith.constant 0 : index
    %c0_61 = arith.constant 0 : index
    %c6_62 = arith.constant 6 : index
    %156 = vector.load %arg4[%c0_60, %c0_61, %c6_62] : memref<3x32x12xf32, #tpu.memory_space<vmem>>, vector<1x32x1xf32>
    %157 = vector.shape_cast %156 : vector<1x32x1xf32> to vector<32x1xf32>
    %158 = vector.broadcast %157 : vector<32x1xf32> to vector<32x128xf32>
    %159 = arith.subf %155, %158 : vector<32x128xf32>
    %160 = arith.mulf %146, %48 : vector<32x128xf32>
    %cst_63 = arith.constant 1.000000e+00 : f32
    %161 = vector.broadcast %cst_63 : f32 to vector<32x128xf32>
    %162 = arith.subf %161, %159 : vector<32x128xf32>
    %163 = arith.mulf %162, %54 : vector<32x128xf32>
    %164 = arith.addf %160, %163 : vector<32x128xf32>
    %c0_64 = arith.constant 0 : index
    %c0_65 = arith.constant 0 : index
    %c7_66 = arith.constant 7 : index
    %165 = vector.load %arg3[%c0_64, %c0_65, %c7_66] : memref<3x32x12xf32, #tpu.memory_space<vmem>>, vector<1x32x1xf32>
    %166 = vector.shape_cast %165 : vector<1x32x1xf32> to vector<32x1xf32>
    %167 = vector.broadcast %166 : vector<32x1xf32> to vector<32x128xf32>
    %168 = arith.mulf %0, %167 : vector<32x128xf32>
    %c0_67 = arith.constant 0 : index
    %c0_68 = arith.constant 0 : index
    %c7_69 = arith.constant 7 : index
    %169 = vector.load %arg4[%c0_67, %c0_68, %c7_69] : memref<3x32x12xf32, #tpu.memory_space<vmem>>, vector<1x32x1xf32>
    %170 = vector.shape_cast %169 : vector<1x32x1xf32> to vector<32x1xf32>
    %171 = vector.broadcast %170 : vector<32x1xf32> to vector<32x128xf32>
    %172 = arith.subf %168, %171 : vector<32x128xf32>
    %173 = arith.mulf %159, %54 : vector<32x128xf32>
    %cst_70 = arith.constant 1.000000e+00 : f32
    %174 = vector.broadcast %cst_70 : f32 to vector<32x128xf32>
    %175 = arith.subf %174, %172 : vector<32x128xf32>
    %176 = arith.mulf %175, %60 : vector<32x128xf32>
    %177 = arith.addf %173, %176 : vector<32x128xf32>
    %c0_71 = arith.constant 0 : index
    %c0_72 = arith.constant 0 : index
    %c8_73 = arith.constant 8 : index
    %178 = vector.load %arg3[%c0_71, %c0_72, %c8_73] : memref<3x32x12xf32, #tpu.memory_space<vmem>>, vector<1x32x1xf32>
    %179 = vector.shape_cast %178 : vector<1x32x1xf32> to vector<32x1xf32>
    %180 = vector.broadcast %179 : vector<32x1xf32> to vector<32x128xf32>
    %181 = arith.mulf %0, %180 : vector<32x128xf32>
    %c0_74 = arith.constant 0 : index
    %c0_75 = arith.constant 0 : index
    %c8_76 = arith.constant 8 : index
    %182 = vector.load %arg4[%c0_74, %c0_75, %c8_76] : memref<3x32x12xf32, #tpu.memory_space<vmem>>, vector<1x32x1xf32>
    %183 = vector.shape_cast %182 : vector<1x32x1xf32> to vector<32x1xf32>
    %184 = vector.broadcast %183 : vector<32x1xf32> to vector<32x128xf32>
    %185 = arith.subf %181, %184 : vector<32x128xf32>
    %186 = arith.mulf %172, %60 : vector<32x128xf32>
    %cst_77 = arith.constant 1.000000e+00 : f32
    %187 = vector.broadcast %cst_77 : f32 to vector<32x128xf32>
    %188 = arith.subf %187, %185 : vector<32x128xf32>
    %189 = arith.mulf %188, %66 : vector<32x128xf32>
    %190 = arith.addf %186, %189 : vector<32x128xf32>
    %c0_78 = arith.constant 0 : index
    %c0_79 = arith.constant 0 : index
    %c9_80 = arith.constant 9 : index
    %191 = vector.load %arg3[%c0_78, %c0_79, %c9_80] : memref<3x32x12xf32, #tpu.memory_space<vmem>>, vector<1x32x1xf32>
    %192 = vector.shape_cast %191 : vector<1x32x1xf32> to vector<32x1xf32>
    %193 = vector.broadcast %192 : vector<32x1xf32> to vector<32x128xf32>
    %194 = arith.mulf %0, %193 : vector<32x128xf32>
    %c0_81 = arith.constant 0 : index
    %c0_82 = arith.constant 0 : index
    %c9_83 = arith.constant 9 : index
    %195 = vector.load %arg4[%c0_81, %c0_82, %c9_83] : memref<3x32x12xf32, #tpu.memory_space<vmem>>, vector<1x32x1xf32>
    %196 = vector.shape_cast %195 : vector<1x32x1xf32> to vector<32x1xf32>
    %197 = vector.broadcast %196 : vector<32x1xf32> to vector<32x128xf32>
    %198 = arith.subf %194, %197 : vector<32x128xf32>
    %199 = arith.mulf %185, %66 : vector<32x128xf32>
    %cst_84 = arith.constant 1.000000e+00 : f32
    %200 = vector.broadcast %cst_84 : f32 to vector<32x128xf32>
    %201 = arith.subf %200, %198 : vector<32x128xf32>
    %202 = arith.mulf %201, %72 : vector<32x128xf32>
    %203 = arith.addf %199, %202 : vector<32x128xf32>
    %c0_85 = arith.constant 0 : index
    %c0_86 = arith.constant 0 : index
    %c10_87 = arith.constant 10 : index
    %204 = vector.load %arg3[%c0_85, %c0_86, %c10_87] : memref<3x32x12xf32, #tpu.memory_space<vmem>>, vector<1x32x1xf32>
    %205 = vector.shape_cast %204 : vector<1x32x1xf32> to vector<32x1xf32>
    %206 = vector.broadcast %205 : vector<32x1xf32> to vector<32x128xf32>
    %207 = arith.mulf %0, %206 : vector<32x128xf32>
    %c0_88 = arith.constant 0 : index
    %c0_89 = arith.constant 0 : index
    %c10_90 = arith.constant 10 : index
    %208 = vector.load %arg4[%c0_88, %c0_89, %c10_90] : memref<3x32x12xf32, #tpu.memory_space<vmem>>, vector<1x32x1xf32>
    %209 = vector.shape_cast %208 : vector<1x32x1xf32> to vector<32x1xf32>
    %210 = vector.broadcast %209 : vector<32x1xf32> to vector<32x128xf32>
    %211 = arith.subf %207, %210 : vector<32x128xf32>
    %212 = arith.mulf %198, %72 : vector<32x128xf32>
    %cst_91 = arith.constant 1.000000e+00 : f32
    %213 = vector.broadcast %cst_91 : f32 to vector<32x128xf32>
    %214 = arith.subf %213, %211 : vector<32x128xf32>
    %215 = arith.mulf %214, %78 : vector<32x128xf32>
    %216 = arith.addf %212, %215 : vector<32x128xf32>
    %c1_92 = arith.constant 1 : index
    %c0_93 = arith.constant 0 : index
    %c0_94 = arith.constant 0 : index
    %217 = vector.load %arg3[%c1_92, %c0_93, %c0_94] : memref<3x32x12xf32, #tpu.memory_space<vmem>>, vector<1x32x1xf32>
    %218 = vector.shape_cast %217 : vector<1x32x1xf32> to vector<32x1xf32>
    %219 = vector.broadcast %218 : vector<32x1xf32> to vector<32x128xf32>
    %220 = arith.mulf %0, %219 : vector<32x128xf32>
    %c1_95 = arith.constant 1 : index
    %c0_96 = arith.constant 0 : index
    %c0_97 = arith.constant 0 : index
    %221 = vector.load %arg4[%c1_95, %c0_96, %c0_97] : memref<3x32x12xf32, #tpu.memory_space<vmem>>, vector<1x32x1xf32>
    %222 = vector.shape_cast %221 : vector<1x32x1xf32> to vector<32x1xf32>
    %223 = vector.broadcast %222 : vector<32x1xf32> to vector<32x128xf32>
    %224 = arith.subf %220, %223 : vector<32x128xf32>
    %c1_98 = arith.constant 1 : index
    %c0_99 = arith.constant 0 : index
    %c1_100 = arith.constant 1 : index
    %225 = vector.load %arg3[%c1_98, %c0_99, %c1_100] : memref<3x32x12xf32, #tpu.memory_space<vmem>>, vector<1x32x1xf32>
    %226 = vector.shape_cast %225 : vector<1x32x1xf32> to vector<32x1xf32>
    %227 = vector.broadcast %226 : vector<32x1xf32> to vector<32x128xf32>
    %228 = arith.mulf %0, %227 : vector<32x128xf32>
    %c1_101 = arith.constant 1 : index
    %c0_102 = arith.constant 0 : index
    %c1_103 = arith.constant 1 : index
    %229 = vector.load %arg4[%c1_101, %c0_102, %c1_103] : memref<3x32x12xf32, #tpu.memory_space<vmem>>, vector<1x32x1xf32>
    %230 = vector.shape_cast %229 : vector<1x32x1xf32> to vector<32x1xf32>
    %231 = vector.broadcast %230 : vector<32x1xf32> to vector<32x128xf32>
    %232 = arith.subf %228, %231 : vector<32x128xf32>
    %233 = arith.mulf %224, %99 : vector<32x128xf32>
    %cst_104 = arith.constant 1.000000e+00 : f32
    %234 = vector.broadcast %cst_104 : f32 to vector<32x128xf32>
    %235 = arith.subf %234, %232 : vector<32x128xf32>
    %236 = arith.mulf %235, %112 : vector<32x128xf32>
    %237 = arith.addf %233, %236 : vector<32x128xf32>
    %c1_105 = arith.constant 1 : index
    %c0_106 = arith.constant 0 : index
    %c2_107 = arith.constant 2 : index
    %238 = vector.load %arg3[%c1_105, %c0_106, %c2_107] : memref<3x32x12xf32, #tpu.memory_space<vmem>>, vector<1x32x1xf32>
    %239 = vector.shape_cast %238 : vector<1x32x1xf32> to vector<32x1xf32>
    %240 = vector.broadcast %239 : vector<32x1xf32> to vector<32x128xf32>
    %241 = arith.mulf %0, %240 : vector<32x128xf32>
    %c1_108 = arith.constant 1 : index
    %c0_109 = arith.constant 0 : index
    %c2_110 = arith.constant 2 : index
    %242 = vector.load %arg4[%c1_108, %c0_109, %c2_110] : memref<3x32x12xf32, #tpu.memory_space<vmem>>, vector<1x32x1xf32>
    %243 = vector.shape_cast %242 : vector<1x32x1xf32> to vector<32x1xf32>
    %244 = vector.broadcast %243 : vector<32x1xf32> to vector<32x128xf32>
    %245 = arith.subf %241, %244 : vector<32x128xf32>
    %246 = arith.mulf %232, %112 : vector<32x128xf32>
    %cst_111 = arith.constant 1.000000e+00 : f32
    %247 = vector.broadcast %cst_111 : f32 to vector<32x128xf32>
    %248 = arith.subf %247, %245 : vector<32x128xf32>
    %249 = arith.mulf %248, %125 : vector<32x128xf32>
    %250 = arith.addf %246, %249 : vector<32x128xf32>
    %c1_112 = arith.constant 1 : index
    %c0_113 = arith.constant 0 : index
    %c3_114 = arith.constant 3 : index
    %251 = vector.load %arg3[%c1_112, %c0_113, %c3_114] : memref<3x32x12xf32, #tpu.memory_space<vmem>>, vector<1x32x1xf32>
    %252 = vector.shape_cast %251 : vector<1x32x1xf32> to vector<32x1xf32>
    %253 = vector.broadcast %252 : vector<32x1xf32> to vector<32x128xf32>
    %254 = arith.mulf %0, %253 : vector<32x128xf32>
    %c1_115 = arith.constant 1 : index
    %c0_116 = arith.constant 0 : index
    %c3_117 = arith.constant 3 : index
    %255 = vector.load %arg4[%c1_115, %c0_116, %c3_117] : memref<3x32x12xf32, #tpu.memory_space<vmem>>, vector<1x32x1xf32>
    %256 = vector.shape_cast %255 : vector<1x32x1xf32> to vector<32x1xf32>
    %257 = vector.broadcast %256 : vector<32x1xf32> to vector<32x128xf32>
    %258 = arith.subf %254, %257 : vector<32x128xf32>
    %259 = arith.mulf %245, %125 : vector<32x128xf32>
    %cst_118 = arith.constant 1.000000e+00 : f32
    %260 = vector.broadcast %cst_118 : f32 to vector<32x128xf32>
    %261 = arith.subf %260, %258 : vector<32x128xf32>
    %262 = arith.mulf %261, %138 : vector<32x128xf32>
    %263 = arith.addf %259, %262 : vector<32x128xf32>
    %c1_119 = arith.constant 1 : index
    %c0_120 = arith.constant 0 : index
    %c4_121 = arith.constant 4 : index
    %264 = vector.load %arg3[%c1_119, %c0_120, %c4_121] : memref<3x32x12xf32, #tpu.memory_space<vmem>>, vector<1x32x1xf32>
    %265 = vector.shape_cast %264 : vector<1x32x1xf32> to vector<32x1xf32>
    %266 = vector.broadcast %265 : vector<32x1xf32> to vector<32x128xf32>
    %267 = arith.mulf %0, %266 : vector<32x128xf32>
    %c1_122 = arith.constant 1 : index
    %c0_123 = arith.constant 0 : index
    %c4_124 = arith.constant 4 : index
    %268 = vector.load %arg4[%c1_122, %c0_123, %c4_124] : memref<3x32x12xf32, #tpu.memory_space<vmem>>, vector<1x32x1xf32>
    %269 = vector.shape_cast %268 : vector<1x32x1xf32> to vector<32x1xf32>
    %270 = vector.broadcast %269 : vector<32x1xf32> to vector<32x128xf32>
    %271 = arith.subf %267, %270 : vector<32x128xf32>
    %272 = arith.mulf %258, %138 : vector<32x128xf32>
    %cst_125 = arith.constant 1.000000e+00 : f32
    %273 = vector.broadcast %cst_125 : f32 to vector<32x128xf32>
    %274 = arith.subf %273, %271 : vector<32x128xf32>
    %275 = arith.mulf %274, %151 : vector<32x128xf32>
    %276 = arith.addf %272, %275 : vector<32x128xf32>
    %c1_126 = arith.constant 1 : index
    %c0_127 = arith.constant 0 : index
    %c5_128 = arith.constant 5 : index
    %277 = vector.load %arg3[%c1_126, %c0_127, %c5_128] : memref<3x32x12xf32, #tpu.memory_space<vmem>>, vector<1x32x1xf32>
    %278 = vector.shape_cast %277 : vector<1x32x1xf32> to vector<32x1xf32>
    %279 = vector.broadcast %278 : vector<32x1xf32> to vector<32x128xf32>
    %280 = arith.mulf %0, %279 : vector<32x128xf32>
    %c1_129 = arith.constant 1 : index
    %c0_130 = arith.constant 0 : index
    %c5_131 = arith.constant 5 : index
    %281 = vector.load %arg4[%c1_129, %c0_130, %c5_131] : memref<3x32x12xf32, #tpu.memory_space<vmem>>, vector<1x32x1xf32>
    %282 = vector.shape_cast %281 : vector<1x32x1xf32> to vector<32x1xf32>
    %283 = vector.broadcast %282 : vector<32x1xf32> to vector<32x128xf32>
    %284 = arith.subf %280, %283 : vector<32x128xf32>
    %285 = arith.mulf %271, %151 : vector<32x128xf32>
    %cst_132 = arith.constant 1.000000e+00 : f32
    %286 = vector.broadcast %cst_132 : f32 to vector<32x128xf32>
    %287 = arith.subf %286, %284 : vector<32x128xf32>
    %288 = arith.mulf %287, %164 : vector<32x128xf32>
    %289 = arith.addf %285, %288 : vector<32x128xf32>
    %c1_133 = arith.constant 1 : index
    %c0_134 = arith.constant 0 : index
    %c6_135 = arith.constant 6 : index
    %290 = vector.load %arg3[%c1_133, %c0_134, %c6_135] : memref<3x32x12xf32, #tpu.memory_space<vmem>>, vector<1x32x1xf32>
    %291 = vector.shape_cast %290 : vector<1x32x1xf32> to vector<32x1xf32>
    %292 = vector.broadcast %291 : vector<32x1xf32> to vector<32x128xf32>
    %293 = arith.mulf %0, %292 : vector<32x128xf32>
    %c1_136 = arith.constant 1 : index
    %c0_137 = arith.constant 0 : index
    %c6_138 = arith.constant 6 : index
    %294 = vector.load %arg4[%c1_136, %c0_137, %c6_138] : memref<3x32x12xf32, #tpu.memory_space<vmem>>, vector<1x32x1xf32>
    %295 = vector.shape_cast %294 : vector<1x32x1xf32> to vector<32x1xf32>
    %296 = vector.broadcast %295 : vector<32x1xf32> to vector<32x128xf32>
    %297 = arith.subf %293, %296 : vector<32x128xf32>
    %298 = arith.mulf %284, %164 : vector<32x128xf32>
    %cst_139 = arith.constant 1.000000e+00 : f32
    %299 = vector.broadcast %cst_139 : f32 to vector<32x128xf32>
    %300 = arith.subf %299, %297 : vector<32x128xf32>
    %301 = arith.mulf %300, %177 : vector<32x128xf32>
    %302 = arith.addf %298, %301 : vector<32x128xf32>
    %c1_140 = arith.constant 1 : index
    %c0_141 = arith.constant 0 : index
    %c7_142 = arith.constant 7 : index
    %303 = vector.load %arg3[%c1_140, %c0_141, %c7_142] : memref<3x32x12xf32, #tpu.memory_space<vmem>>, vector<1x32x1xf32>
    %304 = vector.shape_cast %303 : vector<1x32x1xf32> to vector<32x1xf32>
    %305 = vector.broadcast %304 : vector<32x1xf32> to vector<32x128xf32>
    %306 = arith.mulf %0, %305 : vector<32x128xf32>
    %c1_143 = arith.constant 1 : index
    %c0_144 = arith.constant 0 : index
    %c7_145 = arith.constant 7 : index
    %307 = vector.load %arg4[%c1_143, %c0_144, %c7_145] : memref<3x32x12xf32, #tpu.memory_space<vmem>>, vector<1x32x1xf32>
    %308 = vector.shape_cast %307 : vector<1x32x1xf32> to vector<32x1xf32>
    %309 = vector.broadcast %308 : vector<32x1xf32> to vector<32x128xf32>
    %310 = arith.subf %306, %309 : vector<32x128xf32>
    %311 = arith.mulf %297, %177 : vector<32x128xf32>
    %cst_146 = arith.constant 1.000000e+00 : f32
    %312 = vector.broadcast %cst_146 : f32 to vector<32x128xf32>
    %313 = arith.subf %312, %310 : vector<32x128xf32>
    %314 = arith.mulf %313, %190 : vector<32x128xf32>
    %315 = arith.addf %311, %314 : vector<32x128xf32>
    %c1_147 = arith.constant 1 : index
    %c0_148 = arith.constant 0 : index
    %c8_149 = arith.constant 8 : index
    %316 = vector.load %arg3[%c1_147, %c0_148, %c8_149] : memref<3x32x12xf32, #tpu.memory_space<vmem>>, vector<1x32x1xf32>
    %317 = vector.shape_cast %316 : vector<1x32x1xf32> to vector<32x1xf32>
    %318 = vector.broadcast %317 : vector<32x1xf32> to vector<32x128xf32>
    %319 = arith.mulf %0, %318 : vector<32x128xf32>
    %c1_150 = arith.constant 1 : index
    %c0_151 = arith.constant 0 : index
    %c8_152 = arith.constant 8 : index
    %320 = vector.load %arg4[%c1_150, %c0_151, %c8_152] : memref<3x32x12xf32, #tpu.memory_space<vmem>>, vector<1x32x1xf32>
    %321 = vector.shape_cast %320 : vector<1x32x1xf32> to vector<32x1xf32>
    %322 = vector.broadcast %321 : vector<32x1xf32> to vector<32x128xf32>
    %323 = arith.subf %319, %322 : vector<32x128xf32>
    %324 = arith.mulf %310, %190 : vector<32x128xf32>
    %cst_153 = arith.constant 1.000000e+00 : f32
    %325 = vector.broadcast %cst_153 : f32 to vector<32x128xf32>
    %326 = arith.subf %325, %323 : vector<32x128xf32>
    %327 = arith.mulf %326, %203 : vector<32x128xf32>
    %328 = arith.addf %324, %327 : vector<32x128xf32>
    %c1_154 = arith.constant 1 : index
    %c0_155 = arith.constant 0 : index
    %c9_156 = arith.constant 9 : index
    %329 = vector.load %arg3[%c1_154, %c0_155, %c9_156] : memref<3x32x12xf32, #tpu.memory_space<vmem>>, vector<1x32x1xf32>
    %330 = vector.shape_cast %329 : vector<1x32x1xf32> to vector<32x1xf32>
    %331 = vector.broadcast %330 : vector<32x1xf32> to vector<32x128xf32>
    %332 = arith.mulf %0, %331 : vector<32x128xf32>
    %c1_157 = arith.constant 1 : index
    %c0_158 = arith.constant 0 : index
    %c9_159 = arith.constant 9 : index
    %333 = vector.load %arg4[%c1_157, %c0_158, %c9_159] : memref<3x32x12xf32, #tpu.memory_space<vmem>>, vector<1x32x1xf32>
    %334 = vector.shape_cast %333 : vector<1x32x1xf32> to vector<32x1xf32>
    %335 = vector.broadcast %334 : vector<32x1xf32> to vector<32x128xf32>
    %336 = arith.subf %332, %335 : vector<32x128xf32>
    %337 = arith.mulf %323, %203 : vector<32x128xf32>
    %cst_160 = arith.constant 1.000000e+00 : f32
    %338 = vector.broadcast %cst_160 : f32 to vector<32x128xf32>
    %339 = arith.subf %338, %336 : vector<32x128xf32>
    %340 = arith.mulf %339, %216 : vector<32x128xf32>
    %341 = arith.addf %337, %340 : vector<32x128xf32>
    %c2_161 = arith.constant 2 : index
    %c0_162 = arith.constant 0 : index
    %c0_163 = arith.constant 0 : index
    %342 = vector.load %arg3[%c2_161, %c0_162, %c0_163] : memref<3x32x12xf32, #tpu.memory_space<vmem>>, vector<1x32x1xf32>
    %343 = vector.shape_cast %342 : vector<1x32x1xf32> to vector<32x1xf32>
    %344 = vector.broadcast %343 : vector<32x1xf32> to vector<32x128xf32>
    %345 = arith.mulf %0, %344 : vector<32x128xf32>
    %c2_164 = arith.constant 2 : index
    %c0_165 = arith.constant 0 : index
    %c0_166 = arith.constant 0 : index
    %346 = vector.load %arg4[%c2_164, %c0_165, %c0_166] : memref<3x32x12xf32, #tpu.memory_space<vmem>>, vector<1x32x1xf32>
    %347 = vector.shape_cast %346 : vector<1x32x1xf32> to vector<32x1xf32>
    %348 = vector.broadcast %347 : vector<32x1xf32> to vector<32x128xf32>
    %349 = arith.subf %345, %348 : vector<32x128xf32>
    %c2_167 = arith.constant 2 : index
    %c0_168 = arith.constant 0 : index
    %c1_169 = arith.constant 1 : index
    %350 = vector.load %arg3[%c2_167, %c0_168, %c1_169] : memref<3x32x12xf32, #tpu.memory_space<vmem>>, vector<1x32x1xf32>
    %351 = vector.shape_cast %350 : vector<1x32x1xf32> to vector<32x1xf32>
    %352 = vector.broadcast %351 : vector<32x1xf32> to vector<32x128xf32>
    %353 = arith.mulf %0, %352 : vector<32x128xf32>
    %c2_170 = arith.constant 2 : index
    %c0_171 = arith.constant 0 : index
    %c1_172 = arith.constant 1 : index
    %354 = vector.load %arg4[%c2_170, %c0_171, %c1_172] : memref<3x32x12xf32, #tpu.memory_space<vmem>>, vector<1x32x1xf32>
    %355 = vector.shape_cast %354 : vector<1x32x1xf32> to vector<32x1xf32>
    %356 = vector.broadcast %355 : vector<32x1xf32> to vector<32x128xf32>
    %357 = arith.subf %353, %356 : vector<32x128xf32>
    %358 = arith.mulf %349, %237 : vector<32x128xf32>
    %cst_173 = arith.constant 1.000000e+00 : f32
    %359 = vector.broadcast %cst_173 : f32 to vector<32x128xf32>
    %360 = arith.subf %359, %357 : vector<32x128xf32>
    %361 = arith.mulf %360, %250 : vector<32x128xf32>
    %362 = arith.addf %358, %361 : vector<32x128xf32>
    %c2_174 = arith.constant 2 : index
    %c0_175 = arith.constant 0 : index
    %c2_176 = arith.constant 2 : index
    %363 = vector.load %arg3[%c2_174, %c0_175, %c2_176] : memref<3x32x12xf32, #tpu.memory_space<vmem>>, vector<1x32x1xf32>
    %364 = vector.shape_cast %363 : vector<1x32x1xf32> to vector<32x1xf32>
    %365 = vector.broadcast %364 : vector<32x1xf32> to vector<32x128xf32>
    %366 = arith.mulf %0, %365 : vector<32x128xf32>
    %c2_177 = arith.constant 2 : index
    %c0_178 = arith.constant 0 : index
    %c2_179 = arith.constant 2 : index
    %367 = vector.load %arg4[%c2_177, %c0_178, %c2_179] : memref<3x32x12xf32, #tpu.memory_space<vmem>>, vector<1x32x1xf32>
    %368 = vector.shape_cast %367 : vector<1x32x1xf32> to vector<32x1xf32>
    %369 = vector.broadcast %368 : vector<32x1xf32> to vector<32x128xf32>
    %370 = arith.subf %366, %369 : vector<32x128xf32>
    %371 = arith.mulf %357, %250 : vector<32x128xf32>
    %cst_180 = arith.constant 1.000000e+00 : f32
    %372 = vector.broadcast %cst_180 : f32 to vector<32x128xf32>
    %373 = arith.subf %372, %370 : vector<32x128xf32>
    %374 = arith.mulf %373, %263 : vector<32x128xf32>
    %375 = arith.addf %371, %374 : vector<32x128xf32>
    %c2_181 = arith.constant 2 : index
    %c0_182 = arith.constant 0 : index
    %c3_183 = arith.constant 3 : index
    %376 = vector.load %arg3[%c2_181, %c0_182, %c3_183] : memref<3x32x12xf32, #tpu.memory_space<vmem>>, vector<1x32x1xf32>
    %377 = vector.shape_cast %376 : vector<1x32x1xf32> to vector<32x1xf32>
    %378 = vector.broadcast %377 : vector<32x1xf32> to vector<32x128xf32>
    %379 = arith.mulf %0, %378 : vector<32x128xf32>
    %c2_184 = arith.constant 2 : index
    %c0_185 = arith.constant 0 : index
    %c3_186 = arith.constant 3 : index
    %380 = vector.load %arg4[%c2_184, %c0_185, %c3_186] : memref<3x32x12xf32, #tpu.memory_space<vmem>>, vector<1x32x1xf32>
    %381 = vector.shape_cast %380 : vector<1x32x1xf32> to vector<32x1xf32>
    %382 = vector.broadcast %381 : vector<32x1xf32> to vector<32x128xf32>
    %383 = arith.subf %379, %382 : vector<32x128xf32>
    %384 = arith.mulf %370, %263 : vector<32x128xf32>
    %cst_187 = arith.constant 1.000000e+00 : f32
    %385 = vector.broadcast %cst_187 : f32 to vector<32x128xf32>
    %386 = arith.subf %385, %383 : vector<32x128xf32>
    %387 = arith.mulf %386, %276 : vector<32x128xf32>
    %388 = arith.addf %384, %387 : vector<32x128xf32>
    %c2_188 = arith.constant 2 : index
    %c0_189 = arith.constant 0 : index
    %c4_190 = arith.constant 4 : index
    %389 = vector.load %arg3[%c2_188, %c0_189, %c4_190] : memref<3x32x12xf32, #tpu.memory_space<vmem>>, vector<1x32x1xf32>
    %390 = vector.shape_cast %389 : vector<1x32x1xf32> to vector<32x1xf32>
    %391 = vector.broadcast %390 : vector<32x1xf32> to vector<32x128xf32>
    %392 = arith.mulf %0, %391 : vector<32x128xf32>
    %c2_191 = arith.constant 2 : index
    %c0_192 = arith.constant 0 : index
    %c4_193 = arith.constant 4 : index
    %393 = vector.load %arg4[%c2_191, %c0_192, %c4_193] : memref<3x32x12xf32, #tpu.memory_space<vmem>>, vector<1x32x1xf32>
    %394 = vector.shape_cast %393 : vector<1x32x1xf32> to vector<32x1xf32>
    %395 = vector.broadcast %394 : vector<32x1xf32> to vector<32x128xf32>
    %396 = arith.subf %392, %395 : vector<32x128xf32>
    %397 = arith.mulf %383, %276 : vector<32x128xf32>
    %cst_194 = arith.constant 1.000000e+00 : f32
    %398 = vector.broadcast %cst_194 : f32 to vector<32x128xf32>
    %399 = arith.subf %398, %396 : vector<32x128xf32>
    %400 = arith.mulf %399, %289 : vector<32x128xf32>
    %401 = arith.addf %397, %400 : vector<32x128xf32>
    %c2_195 = arith.constant 2 : index
    %c0_196 = arith.constant 0 : index
    %c5_197 = arith.constant 5 : index
    %402 = vector.load %arg3[%c2_195, %c0_196, %c5_197] : memref<3x32x12xf32, #tpu.memory_space<vmem>>, vector<1x32x1xf32>
    %403 = vector.shape_cast %402 : vector<1x32x1xf32> to vector<32x1xf32>
    %404 = vector.broadcast %403 : vector<32x1xf32> to vector<32x128xf32>
    %405 = arith.mulf %0, %404 : vector<32x128xf32>
    %c2_198 = arith.constant 2 : index
    %c0_199 = arith.constant 0 : index
    %c5_200 = arith.constant 5 : index
    %406 = vector.load %arg4[%c2_198, %c0_199, %c5_200] : memref<3x32x12xf32, #tpu.memory_space<vmem>>, vector<1x32x1xf32>
    %407 = vector.shape_cast %406 : vector<1x32x1xf32> to vector<32x1xf32>
    %408 = vector.broadcast %407 : vector<32x1xf32> to vector<32x128xf32>
    %409 = arith.subf %405, %408 : vector<32x128xf32>
    %410 = arith.mulf %396, %289 : vector<32x128xf32>
    %cst_201 = arith.constant 1.000000e+00 : f32
    %411 = vector.broadcast %cst_201 : f32 to vector<32x128xf32>
    %412 = arith.subf %411, %409 : vector<32x128xf32>
    %413 = arith.mulf %412, %302 : vector<32x128xf32>
    %414 = arith.addf %410, %413 : vector<32x128xf32>
    %c2_202 = arith.constant 2 : index
    %c0_203 = arith.constant 0 : index
    %c6_204 = arith.constant 6 : index
    %415 = vector.load %arg3[%c2_202, %c0_203, %c6_204] : memref<3x32x12xf32, #tpu.memory_space<vmem>>, vector<1x32x1xf32>
    %416 = vector.shape_cast %415 : vector<1x32x1xf32> to vector<32x1xf32>
    %417 = vector.broadcast %416 : vector<32x1xf32> to vector<32x128xf32>
    %418 = arith.mulf %0, %417 : vector<32x128xf32>
    %c2_205 = arith.constant 2 : index
    %c0_206 = arith.constant 0 : index
    %c6_207 = arith.constant 6 : index
    %419 = vector.load %arg4[%c2_205, %c0_206, %c6_207] : memref<3x32x12xf32, #tpu.memory_space<vmem>>, vector<1x32x1xf32>
    %420 = vector.shape_cast %419 : vector<1x32x1xf32> to vector<32x1xf32>
    %421 = vector.broadcast %420 : vector<32x1xf32> to vector<32x128xf32>
    %422 = arith.subf %418, %421 : vector<32x128xf32>
    %423 = arith.mulf %409, %302 : vector<32x128xf32>
    %cst_208 = arith.constant 1.000000e+00 : f32
    %424 = vector.broadcast %cst_208 : f32 to vector<32x128xf32>
    %425 = arith.subf %424, %422 : vector<32x128xf32>
    %426 = arith.mulf %425, %315 : vector<32x128xf32>
    %427 = arith.addf %423, %426 : vector<32x128xf32>
    %c2_209 = arith.constant 2 : index
    %c0_210 = arith.constant 0 : index
    %c7_211 = arith.constant 7 : index
    %428 = vector.load %arg3[%c2_209, %c0_210, %c7_211] : memref<3x32x12xf32, #tpu.memory_space<vmem>>, vector<1x32x1xf32>
    %429 = vector.shape_cast %428 : vector<1x32x1xf32> to vector<32x1xf32>
    %430 = vector.broadcast %429 : vector<32x1xf32> to vector<32x128xf32>
    %431 = arith.mulf %0, %430 : vector<32x128xf32>
    %c2_212 = arith.constant 2 : index
    %c0_213 = arith.constant 0 : index
    %c7_214 = arith.constant 7 : index
    %432 = vector.load %arg4[%c2_212, %c0_213, %c7_214] : memref<3x32x12xf32, #tpu.memory_space<vmem>>, vector<1x32x1xf32>
    %433 = vector.shape_cast %432 : vector<1x32x1xf32> to vector<32x1xf32>
    %434 = vector.broadcast %433 : vector<32x1xf32> to vector<32x128xf32>
    %435 = arith.subf %431, %434 : vector<32x128xf32>
    %436 = arith.mulf %422, %315 : vector<32x128xf32>
    %cst_215 = arith.constant 1.000000e+00 : f32
    %437 = vector.broadcast %cst_215 : f32 to vector<32x128xf32>
    %438 = arith.subf %437, %435 : vector<32x128xf32>
    %439 = arith.mulf %438, %328 : vector<32x128xf32>
    %440 = arith.addf %436, %439 : vector<32x128xf32>
    %c2_216 = arith.constant 2 : index
    %c0_217 = arith.constant 0 : index
    %c8_218 = arith.constant 8 : index
    %441 = vector.load %arg3[%c2_216, %c0_217, %c8_218] : memref<3x32x12xf32, #tpu.memory_space<vmem>>, vector<1x32x1xf32>
    %442 = vector.shape_cast %441 : vector<1x32x1xf32> to vector<32x1xf32>
    %443 = vector.broadcast %442 : vector<32x1xf32> to vector<32x128xf32>
    %444 = arith.mulf %0, %443 : vector<32x128xf32>
    %c2_219 = arith.constant 2 : index
    %c0_220 = arith.constant 0 : index
    %c8_221 = arith.constant 8 : index
    %445 = vector.load %arg4[%c2_219, %c0_220, %c8_221] : memref<3x32x12xf32, #tpu.memory_space<vmem>>, vector<1x32x1xf32>
    %446 = vector.shape_cast %445 : vector<1x32x1xf32> to vector<32x1xf32>
    %447 = vector.broadcast %446 : vector<32x1xf32> to vector<32x128xf32>
    %448 = arith.subf %444, %447 : vector<32x128xf32>
    %449 = arith.mulf %435, %328 : vector<32x128xf32>
    %cst_222 = arith.constant 1.000000e+00 : f32
    %450 = vector.broadcast %cst_222 : f32 to vector<32x128xf32>
    %451 = arith.subf %450, %448 : vector<32x128xf32>
    %452 = arith.mulf %451, %341 : vector<32x128xf32>
    %453 = arith.addf %449, %452 : vector<32x128xf32>
    %c32 = arith.constant 32 : index
    %c0_223 = arith.constant 0 : index
    %454 = vector.load %arg7[%c32, %c0_223] : memref<288x128xf32, #tpu.memory_space<vmem>>, vector<32x128xf32>
    tpu.vector_store %arg7[%c32, %c0_223], %362 {strides = array<i32>} : memref<288x128xf32, #tpu.memory_space<vmem>>, vector<32x128xf32>,
    %c64 = arith.constant 64 : index
    %c0_224 = arith.constant 0 : index
    %455 = vector.load %arg7[%c64, %c0_224] : memref<288x128xf32, #tpu.memory_space<vmem>>, vector<32x128xf32>
    tpu.vector_store %arg7[%c64, %c0_224], %375 {strides = array<i32>} : memref<288x128xf32, #tpu.memory_space<vmem>>, vector<32x128xf32>,
    %c96 = arith.constant 96 : index
    %c0_225 = arith.constant 0 : index
    %456 = vector.load %arg7[%c96, %c0_225] : memref<288x128xf32, #tpu.memory_space<vmem>>, vector<32x128xf32>
    tpu.vector_store %arg7[%c96, %c0_225], %388 {strides = array<i32>} : memref<288x128xf32, #tpu.memory_space<vmem>>, vector<32x128xf32>,
    %c128 = arith.constant 128 : index
    %c0_226 = arith.constant 0 : index
    %457 = vector.load %arg7[%c128, %c0_226] : memref<288x128xf32, #tpu.memory_space<vmem>>, vector<32x128xf32>
    tpu.vector_store %arg7[%c128, %c0_226], %401 {strides = array<i32>} : memref<288x128xf32, #tpu.memory_space<vmem>>, vector<32x128xf32>,
    %c160 = arith.constant 160 : index
    %c0_227 = arith.constant 0 : index
    %458 = vector.load %arg7[%c160, %c0_227] : memref<288x128xf32, #tpu.memory_space<vmem>>, vector<32x128xf32>
    tpu.vector_store %arg7[%c160, %c0_227], %414 {strides = array<i32>} : memref<288x128xf32, #tpu.memory_space<vmem>>, vector<32x128xf32>,
    %c192 = arith.constant 192 : index
    %c0_228 = arith.constant 0 : index
    %459 = vector.load %arg7[%c192, %c0_228] : memref<288x128xf32, #tpu.memory_space<vmem>>, vector<32x128xf32>
    tpu.vector_store %arg7[%c192, %c0_228], %427 {strides = array<i32>} : memref<288x128xf32, #tpu.memory_space<vmem>>, vector<32x128xf32>,
    %c224 = arith.constant 224 : index
    %c0_229 = arith.constant 0 : index
    %460 = vector.load %arg7[%c224, %c0_229] : memref<288x128xf32, #tpu.memory_space<vmem>>, vector<32x128xf32>
    tpu.vector_store %arg7[%c224, %c0_229], %440 {strides = array<i32>} : memref<288x128xf32, #tpu.memory_space<vmem>>, vector<32x128xf32>,
    %c256 = arith.constant 256 : index
    %c0_230 = arith.constant 0 : index
    %461 = vector.load %arg7[%c256, %c0_230] : memref<288x128xf32, #tpu.memory_space<vmem>>, vector<32x128xf32>
    tpu.vector_store %arg7[%c256, %c0_230], %453 {strides = array<i32>} : memref<288x128xf32, #tpu.memory_space<vmem>>, vector<32x128xf32>,
    %c0_231 = arith.constant 0 : index
    %c0_232 = arith.constant 0 : index
    %462 = vector.load %arg5[%c0_231, %c0_232] : memref<128x288xf32, #tpu.memory_space<vmem>>, vector<128x288xf32>
    %c0_233 = arith.constant 0 : index
    %c0_234 = arith.constant 0 : index
    %463 = vector.load %arg7[%c0_233, %c0_234] : memref<288x128xf32, #tpu.memory_space<vmem>>, vector<288x128xf32>
    %cst_235 = arith.constant dense<0.000000e+00> : vector<128x128xf32>
    %464 = tpu.matmul %462, %463, %cst_235 {dimension_numbers = #tpu.dot_dimension_numbers<[1], [0], [0], [1], [0, 0, 1, 1], [], []>} : vector<128x288xf32>, vector<288x128xf32>, vector<128x128xf32> -> vector<128x128xf32>
    %465 = tpu.transpose %464, [1, 0] : vector<128x128xf32> -> vector<128x128xf32>
    %c0_236 = arith.constant 0 : index
    %c0_237 = arith.constant 0 : index
    %466 = vector.load %arg6[%c0_236, %c0_237] : memref<128x128xf32, #tpu.memory_space<vmem>>, vector<128x128xf32>
    tpu.vector_store %arg6[%c0_236, %c0_237], %465 {strides = array<i32>} : memref<128x128xf32, #tpu.memory_space<vmem>>, vector<128x128xf32>,
    return
  }
  func.func @transform_0(%arg0: i32) -> (i32, i32) {
    %c0_i32 = arith.constant 0 : i32
    %c0_i32_0 = arith.constant 0 : i32
    return %c0_i32, %arg0 : i32, i32
  }
  func.func @transform_1(%arg0: i32) -> (i32, i32) {
    %c0_i32 = arith.constant 0 : i32
    %c0_i32_0 = arith.constant 0 : i32
    %c0_i32_1 = arith.constant 0 : i32
    return %c0_i32, %c0_i32_0 : i32, i32
  }
  func.func @transform_2(%arg0: i32) -> (i32, i32, i32) {
    %c0_i32 = arith.constant 0 : i32
    %c0_i32_0 = arith.constant 0 : i32
    %c0_i32_1 = arith.constant 0 : i32
    %c0_i32_2 = arith.constant 0 : i32
    return %c0_i32, %c0_i32_0, %c0_i32_1 : i32, i32, i32
  }
  func.func @transform_3(%arg0: i32) -> (i32, i32, i32) {
    %c0_i32 = arith.constant 0 : i32
    %c0_i32_0 = arith.constant 0 : i32
    %c0_i32_1 = arith.constant 0 : i32
    %c0_i32_2 = arith.constant 0 : i32
    return %c0_i32, %c0_i32_0, %c0_i32_1 : i32, i32, i32
  }
  func.func @transform_4(%arg0: i32) -> (i32, i32) {
    %c0_i32 = arith.constant 0 : i32
    %c0_i32_0 = arith.constant 0 : i32
    %c0_i32_1 = arith.constant 0 : i32
    return %c0_i32, %c0_i32_0 : i32, i32
  }
  func.func @transform_5(%arg0: i32) -> (i32, i32) {
    %c0_i32 = arith.constant 0 : i32
    %c0_i32_0 = arith.constant 0 : i32
    return %arg0, %c0_i32 : i32, i32
  }
}

</mosaic_0001>

<llo_original>
// kernel: tpu_custom_call.1
$region0: #{tpu_custom_call.1}
  #allocation0 [shape = 'u32[]', space=smem, size = 0x4, offset = 0x4, fixed_abs, tag = 'smem constant byte address 0x4 - core index']
  #allocation1 [shape = 'u32[72,128]{1,0:T(1,128)}', space=vmem, size = 0x9000, scoped, tag = 'internal scratch']
  #allocation2 [shape = 'f32[288,128]{1,0:T(8,128)}', space=vmem, size = 0x24000, scoped, tag = 'scratch operand']
  %s0 = inlined_call_operand.vmem [shape: f32[32,128], index: 0, kind: input, shape index: {}]
  %s1 = inlined_call_operand.vmem [shape: f32[32,12], index: 1, kind: input, shape index: {}]
  %s2 = inlined_call_operand.vmem [shape: f32[3,32,12], index: 2, kind: input, shape index: {}]
  %s3 = inlined_call_operand.vmem [shape: f32[3,32,12], index: 3, kind: input, shape index: {}]
  %s4 = inlined_call_operand.vmem [shape: f32[128,288], index: 4, kind: input, shape index: {}]
  %s5 = inlined_call_operand.hbm [shape: f32[128,128], index: 5, kind: output, shape index: {}]
  %s6 = sld [smem:[#allocation0]]
  $region30: #{tpu_custom_call.1} parent=0
    _
  %s8 = ssub.s32 1, %s6
  %s9 = scalar_select 0, %s8, %s6
  $region1: #{tpu_custom_call.1} parent=0
    #allocation3 [shape = 'u8[65536]{0}', space=vmem, size = 0x10000, scoped, tag = 'output window, operand 0, single buffered']
    #allocation4 [shape = 's32[1]{0}', space=sflag, size = 0x4, scoped, tag = 'scoped memory for tpu_custom_call.1']
    %10 = vsyncpa [#allocation4], 0
    // Predicated region
    $region2: #{tpu_custom_call.1} parent=1 // pred_check
      _
    $region3: #{tpu_custom_call.1} parent=1 // pred_check_branch
      %12 = sbr.rel (0) target = $region5
    $region4: #{tpu_custom_call.1} parent=1 // pred_region
      _
    $region5: #{tpu_custom_call.1} parent=1 // pred_fallthru
      _
    // Predicated region
    $region6: #{tpu_custom_call.1} parent=1 // pred_check
      _
    $region7: #{tpu_custom_call.1} parent=1 // pred_check_branch
      %14 = sbr.rel (0) target = $region9
    $region8: #{tpu_custom_call.1} parent=1 // pred_region
      _
    $region9: #{tpu_custom_call.1} parent=1 // pred_fallthru
      _
    // Predicated region
    $region10: #{tpu_custom_call.1} parent=1 // pred_check
      _
    $region11: #{tpu_custom_call.1} parent=1 // pred_check_branch
      %16 = sbr.rel (0) target = $region13
    $region12: #{tpu_custom_call.1} parent=1 // pred_region
      _
    $region13: #{tpu_custom_call.1} parent=1 // pred_fallthru
      _
    // Predicated region
    $region14: #{tpu_custom_call.1} parent=1 // pred_check
      _
    $region15: #{tpu_custom_call.1} parent=1 // pred_check_branch
      %18 = sbr.rel (0) target = $region17
    $region16: #{tpu_custom_call.1} parent=1 // pred_region
      _
    $region17: #{tpu_custom_call.1} parent=1 // pred_fallthru
      _
    // Predicated region
    $region18: #{tpu_custom_call.1} parent=1 // pred_check
      _
    $region19: #{tpu_custom_call.1} parent=1 // pred_check_branch
      %20 = sbr.rel (0) target = $region21
    $region20: #{tpu_custom_call.1} parent=1 // pred_region
      _
    $region21: #{tpu_custom_call.1} parent=1 // pred_fallthru
      _
    %v21 = vld [vmem:[%s0] sm:$0xff]
    %v22 = vld [vmem:[%s0 + $0x8] sm:$0xff]
    %v23 = vld [vmem:[%s0 + $0x10] sm:$0xff]
    %v24 = vld [vmem:[%s0 + $0x18] sm:$0xff]
    %v25 = vxor.u32 %v21, 2147483648
    %v26 = vxor.u32 %v22, 2147483648
    %v27 = vxor.u32 %v23, 2147483648
    %v28 = vxor.u32 %v24, 2147483648
    %v29 = vmul.f32 %v25, 1.442695
    %v30 = vpow.pop %v29
    %v31 = vmul.f32 %v26, 1.442695
    %v32 = vpow.pop %v31
    %v33 = vmul.f32 %v27, 1.442695
    %v34 = vpow.pop %v33
    %v35 = vmul.f32 %v28, 1.442695
    %v36 = vpow.pop %v35
    %v37 = vadd.f32 %v30, 1.0
    %v38 = vadd.f32 %v32, 1.0
    %v39 = vadd.f32 %v34, 1.0
    %v40 = vadd.f32 %v36, 1.0
    %v41 = vrcp.pop %v37
    %v42 = vmul.f32 %v37, %v41
    %v43 = vsub.f32 1.0, %v42
    %v44 = vmul.f32 %v41, %v43
    %v45 = vadd.f32 %v41, %v44
    %vm46 = vweird.f32 %v37
    %vm47 = vweird.f32 %v41
    %vm48 = vmor %vm46, %vm47
    %v49 = vsel %vm48, %v41, %v45
    %v50 = vand.u32 2147483647, %v37
    %vm51 = vcmp.eq.f32.partialorder %v50, 8.507059e+37
    %v52 = vand.u32 %v37, 2147483648
    %v53 = vor.u32 1.1754944e-38, %v52
    %v54 = vsel %vm51, %v53, %v49
    %v55 = vmul.f32 1.0, %v54
    %v56 = vrcp.pop %v38
    %v57 = vmul.f32 %v38, %v56
    %v58 = vsub.f32 1.0, %v57
    %v59 = vmul.f32 %v56, %v58
    %v60 = vadd.f32 %v56, %v59
    %vm61 = vweird.f32 %v38
    %vm62 = vweird.f32 %v56
    %vm63 = vmor %vm61, %vm62
    %v64 = vsel %vm63, %v56, %v60
    %v65 = vand.u32 2147483647, %v38
    %vm66 = vcmp.eq.f32.partialorder %v65, 8.507059e+37
    %v67 = vand.u32 %v38, 2147483648
    %v68 = vor.u32 1.1754944e-38, %v67
    %v69 = vsel %vm66, %v68, %v64
    %v70 = vmul.f32 1.0, %v69
    %v71 = vrcp.pop %v39
    %v72 = vmul.f32 %v39, %v71
    %v73 = vsub.f32 1.0, %v72
    %v74 = vmul.f32 %v71, %v73
    %v75 = vadd.f32 %v71, %v74
    %vm76 = vweird.f32 %v39
    %vm77 = vweird.f32 %v71
    %vm78 = vmor %vm76, %vm77
    %v79 = vsel %vm78, %v71, %v75
    %v80 = vand.u32 2147483647, %v39
    %vm81 = vcmp.eq.f32.partialorder %v80, 8.507059e+37
    %v82 = vand.u32 %v39, 2147483648
    %v83 = vor.u32 1.1754944e-38, %v82
    %v84 = vsel %vm81, %v83, %v79
    %v85 = vmul.f32 1.0, %v84
    %v86 = vrcp.pop %v40
    %v87 = vmul.f32 %v40, %v86
    %v88 = vsub.f32 1.0, %v87
    %v89 = vmul.f32 %v86, %v88
    %v90 = vadd.f32 %v86, %v89
    %vm91 = vweird.f32 %v40
    %vm92 = vweird.f32 %v86
    %vm93 = vmor %vm91, %vm92
    %v94 = vsel %vm93, %v86, %v90
    %v95 = vand.u32 2147483647, %v40
    %vm96 = vcmp.eq.f32.partialorder %v95, 8.507059e+37
    %v97 = vand.u32 %v40, 2147483648
    %v98 = vor.u32 1.1754944e-38, %v97
    %v99 = vsel %vm96, %v98, %v94
    %v100 = vmul.f32 1.0, %v99
    %v101 = vmul.f32 %v21, %v55
    %v102 = vmul.f32 %v22, %v70
    %v103 = vmul.f32 %v23, %v85
    %v104 = vmul.f32 %v24, %v100
    %105 = vst [vmem:[#allocation2] sm:$0xff] %v101
    %106 = vst [vmem:[#allocation2 + $0x8] sm:$0xff] %v102
    %107 = vst [vmem:[#allocation2 + $0x10] sm:$0xff] %v103
    %108 = vst [vmem:[#allocation2 + $0x18] sm:$0xff] %v104
    %v109 = vld [vmem:[%s1] sm:$0xff]
    %v110 = vld [vmem:[%s1 + $0x8] sm:$0xff]
    %v111 = vld [vmem:[%s1 + $0x10] sm:$0xff]
    %v112 = vld [vmem:[%s1 + $0x18] sm:$0xff]
    %114 = vset.pattern.permute.xlu0 0
    %115 = vperm.xlu0 %114, %v109
    %v116 = vpop.permute.xlu0 %115
    %119 = vset.pattern.permute.xlu0 0
    %120 = vperm.xlu0 %119, %v110
    %v121 = vpop.permute.xlu0 %120
    %124 = vset.pattern.permute.xlu0 0
    %125 = vperm.xlu0 %124, %v111
    %v126 = vpop.permute.xlu0 %125
    %129 = vset.pattern.permute.xlu0 0
    %130 = vperm.xlu0 %129, %v112
    %v131 = vpop.permute.xlu0 %130
    %vm133 = vcmp.ge.f32.partialorder %v21, %v116
    %vm134 = vcmp.ge.f32.partialorder %v22, %v121
    %vm135 = vcmp.ge.f32.partialorder %v23, %v126
    %vm136 = vcmp.ge.f32.partialorder %v24, %v131
    %v137 = vsel %vm133, 1, 0
    %v138 = vsel %vm134, 1, 0
    %v139 = vsel %vm135, 1, 0
    %v140 = vsel %vm136, 1, 0
    %v141 = vcvt.s32.f32 %v137
    %v142 = vcvt.s32.f32 %v138
    %v143 = vcvt.s32.f32 %v139
    %v144 = vcvt.s32.f32 %v140
    %145 = vset.pattern.permute.xlu0 1
    %146 = vperm.xlu0 %145, %v109
    %v147 = vpop.permute.xlu0 %146
    %149 = vset.pattern.permute.xlu0 1
    %150 = vperm.xlu0 %149, %v110
    %v151 = vpop.permute.xlu0 %150
    %153 = vset.pattern.permute.xlu0 1
    %154 = vperm.xlu0 %153, %v111
    %v155 = vpop.permute.xlu0 %154
    %157 = vset.pattern.permute.xlu0 1
    %158 = vperm.xlu0 %157, %v112
    %v159 = vpop.permute.xlu0 %158
    %vm161 = vcmp.ge.f32.partialorder %v21, %v147
    %vm162 = vcmp.ge.f32.partialorder %v22, %v151
    %vm163 = vcmp.ge.f32.partialorder %v23, %v155
    %vm164 = vcmp.ge.f32.partialorder %v24, %v159
    %v165 = vsel %vm161, 1, 0
    %v166 = vsel %vm162, 1, 0
    %v167 = vsel %vm163, 1, 0
    %v168 = vsel %vm164, 1, 0
    %v169 = vcvt.s32.f32 %v165
    %v170 = vcvt.s32.f32 %v166
    %v171 = vcvt.s32.f32 %v167
    %v172 = vcvt.s32.f32 %v168
    %v173 = vsub.f32 %v141, %v169
    %v174 = vsub.f32 %v142, %v170
    %v175 = vsub.f32 %v143, %v171
    %v176 = vsub.f32 %v144, %v172
    %177 = vset.pattern.permute.xlu0 2
    %178 = vperm.xlu0 %177, %v109
    %v179 = vpop.permute.xlu0 %178
    %181 = vset.pattern.permute.xlu0 2
    %182 = vperm.xlu0 %181, %v110
    %v183 = vpop.permute.xlu0 %182
    %185 = vset.pattern.permute.xlu0 2
    %186 = vperm.xlu0 %185, %v111
    %v187 = vpop.permute.xlu0 %186
    %189 = vset.pattern.permute.xlu0 2
    %190 = vperm.xlu0 %189, %v112
    %v191 = vpop.permute.xlu0 %190
    %vm193 = vcmp.ge.f32.partialorder %v21, %v179
    %vm194 = vcmp.ge.f32.partialorder %v22, %v183
    %vm195 = vcmp.ge.f32.partialorder %v23, %v187
    %vm196 = vcmp.ge.f32.partialorder %v24, %v191
    %v197 = vsel %vm193, 1, 0
    %v198 = vsel %vm194, 1, 0
    %v199 = vsel %vm195, 1, 0
    %v200 = vsel %vm196, 1, 0
    %v201 = vcvt.s32.f32 %v197
    %v202 = vcvt.s32.f32 %v198
    %v203 = vcvt.s32.f32 %v199
    %v204 = vcvt.s32.f32 %v200
    %v205 = vsub.f32 %v169, %v201
    %v206 = vsub.f32 %v170, %v202
    %v207 = vsub.f32 %v171, %v203
    %v208 = vsub.f32 %v172, %v204
    %209 = vset.pattern.permute.xlu0 3
    %210 = vperm.xlu0 %209, %v109
    %v211 = vpop.permute.xlu0 %210
    %213 = vset.pattern.permute.xlu0 3
    %214 = vperm.xlu0 %213, %v110
    %v215 = vpop.permute.xlu0 %214
    %217 = vset.pattern.permute.xlu0 3
    %218 = vperm.xlu0 %217, %v111
    %v219 = vpop.permute.xlu0 %218
    %221 = vset.pattern.permute.xlu0 3
    %222 = vperm.xlu0 %221, %v112
    %v223 = vpop.permute.xlu0 %222
    %vm225 = vcmp.ge.f32.partialorder %v21, %v211
    %vm226 = vcmp.ge.f32.partialorder %v22, %v215
    %vm227 = vcmp.ge.f32.partialorder %v23, %v219
    %vm228 = vcmp.ge.f32.partialorder %v24, %v223
    %v229 = vsel %vm225, 1, 0
    %v230 = vsel %vm226, 1, 0
    %v231 = vsel %vm227, 1, 0
    %v232 = vsel %vm228, 1, 0
    %v233 = vcvt.s32.f32 %v229
    %v234 = vcvt.s32.f32 %v230
    %v235 = vcvt.s32.f32 %v231
    %v236 = vcvt.s32.f32 %v232
    %v237 = vsub.f32 %v201, %v233
    %v238 = vsub.f32 %v202, %v234
    %v239 = vsub.f32 %v203, %v235
    %v240 = vsub.f32 %v204, %v236
    %241 = vset.pattern.permute.xlu0 4
    %242 = vperm.xlu0 %241, %v109
    %v243 = vpop.permute.xlu0 %242
    %245 = vset.pattern.permute.xlu0 4
    %246 = vperm.xlu0 %245, %v110
    %v247 = vpop.permute.xlu0 %246
    %249 = vset.pattern.permute.xlu0 4
    %250 = vperm.xlu0 %249, %v111
    %v251 = vpop.permute.xlu0 %250
    %253 = vset.pattern.permute.xlu0 4
    %254 = vperm.xlu0 %253, %v112
    %v255 = vpop.permute.xlu0 %254
    %vm257 = vcmp.ge.f32.partialorder %v21, %v243
    %vm258 = vcmp.ge.f32.partialorder %v22, %v247
    %vm259 = vcmp.ge.f32.partialorder %v23, %v251
    %vm260 = vcmp.ge.f32.partialorder %v24, %v255
    %v261 = vsel %vm257, 1, 0
    %v262 = vsel %vm258, 1, 0
    %v263 = vsel %vm259, 1, 0
    %v264 = vsel %vm260, 1, 0
    %v265 = vcvt.s32.f32 %v261
    %v266 = vcvt.s32.f32 %v262
    %v267 = vcvt.s32.f32 %v263
    %v268 = vcvt.s32.f32 %v264
    %v269 = vsub.f32 %v233, %v265
    %v270 = vsub.f32 %v234, %v266
    %v271 = vsub.f32 %v235, %v267
    %v272 = vsub.f32 %v236, %v268
    %273 = vset.pattern.permute.xlu0 5
    %274 = vperm.xlu0 %273, %v109
    %v275 = vpop.permute.xlu0 %274
    %277 = vset.pattern.permute.xlu0 5
    %278 = vperm.xlu0 %277, %v110
    %v279 = vpop.permute.xlu0 %278
    %281 = vset.pattern.permute.xlu0 5
    %282 = vperm.xlu0 %281, %v111
    %v283 = vpop.permute.xlu0 %282
    %285 = vset.pattern.permute.xlu0 5
    %286 = vperm.xlu0 %285, %v112
    %v287 = vpop.permute.xlu0 %286
    %vm289 = vcmp.ge.f32.partialorder %v21, %v275
    %vm290 = vcmp.ge.f32.partialorder %v22, %v279
    %vm291 = vcmp.ge.f32.partialorder %v23, %v283
    %vm292 = vcmp.ge.f32.partialorder %v24, %v287
    %v293 = vsel %vm289, 1, 0
    %v294 = vsel %vm290, 1, 0
    %v295 = vsel %vm291, 1, 0
    %v296 = vsel %vm292, 1, 0
    %v297 = vcvt.s32.f32 %v293
    %v298 = vcvt.s32.f32 %v294
    %v299 = vcvt.s32.f32 %v295
    %v300 = vcvt.s32.f32 %v296
    %v301 = vsub.f32 %v265, %v297
    %v302 = vsub.f32 %v266, %v298
    %v303 = vsub.f32 %v267, %v299
    %v304 = vsub.f32 %v268, %v300
    %305 = vset.pattern.permute.xlu0 6
    %306 = vperm.xlu0 %305, %v109
    %v307 = vpop.permute.xlu0 %306
    %309 = vset.pattern.permute.xlu0 6
    %310 = vperm.xlu0 %309, %v110
    %v311 = vpop.permute.xlu0 %310
    %313 = vset.pattern.permute.xlu0 6
    %314 = vperm.xlu0 %313, %v111
    %v315 = vpop.permute.xlu0 %314
    %317 = vset.pattern.permute.xlu0 6
    %318 = vperm.xlu0 %317, %v112
    %v319 = vpop.permute.xlu0 %318
    %vm321 = vcmp.ge.f32.partialorder %v21, %v307
    %vm322 = vcmp.ge.f32.partialorder %v22, %v311
    %vm323 = vcmp.ge.f32.partialorder %v23, %v315
    %vm324 = vcmp.ge.f32.partialorder %v24, %v319
    %v325 = vsel %vm321, 1, 0
    %v326 = vsel %vm322, 1, 0
    %v327 = vsel %vm323, 1, 0
    %v328 = vsel %vm324, 1, 0
    %v329 = vcvt.s32.f32 %v325
    %v330 = vcvt.s32.f32 %v326
    %v331 = vcvt.s32.f32 %v327
    %v332 = vcvt.s32.f32 %v328
    %v333 = vsub.f32 %v297, %v329
    %v334 = vsub.f32 %v298, %v330
    %v335 = vsub.f32 %v299, %v331
    %v336 = vsub.f32 %v300, %v332
    %337 = vset.pattern.permute.xlu0 7
    %338 = vperm.xlu0 %337, %v109
    %v339 = vpop.permute.xlu0 %338
    %341 = vset.pattern.permute.xlu0 7
    %342 = vperm.xlu0 %341, %v110
    %v343 = vpop.permute.xlu0 %342
    %345 = vset.pattern.permute.xlu0 7
    %346 = vperm.xlu0 %345, %v111
    %v347 = vpop.permute.xlu0 %346
    %349 = vset.pattern.permute.xlu0 7
    %350 = vperm.xlu0 %349, %v112
    %v351 = vpop.permute.xlu0 %350
    %vm353 = vcmp.ge.f32.partialorder %v21, %v339
    %vm354 = vcmp.ge.f32.partialorder %v22, %v343
    %vm355 = vcmp.ge.f32.partialorder %v23, %v347
    %vm356 = vcmp.ge.f32.partialorder %v24, %v351
    %v357 = vsel %vm353, 1, 0
    %v358 = vsel %vm354, 1, 0
    %v359 = vsel %vm355, 1, 0
    %v360 = vsel %vm356, 1, 0
    %v361 = vcvt.s32.f32 %v357
    %v362 = vcvt.s32.f32 %v358
    %v363 = vcvt.s32.f32 %v359
    %v364 = vcvt.s32.f32 %v360
    %v365 = vsub.f32 %v329, %v361
    %v366 = vsub.f32 %v330, %v362
    %v367 = vsub.f32 %v331, %v363
    %v368 = vsub.f32 %v332, %v364
    %369 = vset.pattern.permute.xlu0 8
    %370 = vperm.xlu0 %369, %v109
    %v371 = vpop.permute.xlu0 %370
    %373 = vset.pattern.permute.xlu0 8
    %374 = vperm.xlu0 %373, %v110
    %v375 = vpop.permute.xlu0 %374
    %377 = vset.pattern.permute.xlu0 8
    %378 = vperm.xlu0 %377, %v111
    %v379 = vpop.permute.xlu0 %378
    %381 = vset.pattern.permute.xlu0 8
    %382 = vperm.xlu0 %381, %v112
    %v383 = vpop.permute.xlu0 %382
    %vm385 = vcmp.ge.f32.partialorder %v21, %v371
    %vm386 = vcmp.ge.f32.partialorder %v22, %v375
    %vm387 = vcmp.ge.f32.partialorder %v23, %v379
    %vm388 = vcmp.ge.f32.partialorder %v24, %v383
    %v389 = vsel %vm385, 1, 0
    %v390 = vsel %vm386, 1, 0
    %v391 = vsel %vm387, 1, 0
    %v392 = vsel %vm388, 1, 0
    %v393 = vcvt.s32.f32 %v389
    %v394 = vcvt.s32.f32 %v390
    %v395 = vcvt.s32.f32 %v391
    %v396 = vcvt.s32.f32 %v392
    %v397 = vsub.f32 %v361, %v393
    %v398 = vsub.f32 %v362, %v394
    %v399 = vsub.f32 %v363, %v395
    %v400 = vsub.f32 %v364, %v396
    %401 = vset.pattern.permute.xlu0 9
    %402 = vperm.xlu0 %401, %v109
    %v403 = vpop.permute.xlu0 %402
    %405 = vset.pattern.permute.xlu0 9
    %406 = vperm.xlu0 %405, %v110
    %v407 = vpop.permute.xlu0 %406
    %409 = vset.pattern.permute.xlu0 9
    %410 = vperm.xlu0 %409, %v111
    %v411 = vpop.permute.xlu0 %410
    %413 = vset.pattern.permute.xlu0 9
    %414 = vperm.xlu0 %413, %v112
    %v415 = vpop.permute.xlu0 %414
    %vm417 = vcmp.ge.f32.partialorder %v21, %v403
    %vm418 = vcmp.ge.f32.partialorder %v22, %v407
    %vm419 = vcmp.ge.f32.partialorder %v23, %v411
    %vm420 = vcmp.ge.f32.partialorder %v24, %v415
    %v421 = vsel %vm417, 1, 0
    %v422 = vsel %vm418, 1, 0
    %v423 = vsel %vm419, 1, 0
    %v424 = vsel %vm420, 1, 0
    %v425 = vcvt.s32.f32 %v421
    %v426 = vcvt.s32.f32 %v422
    %v427 = vcvt.s32.f32 %v423
    %v428 = vcvt.s32.f32 %v424
    %v429 = vsub.f32 %v393, %v425
    %v430 = vsub.f32 %v394, %v426
    %v431 = vsub.f32 %v395, %v427
    %v432 = vsub.f32 %v396, %v428
    %433 = vset.pattern.permute.xlu0 10
    %434 = vperm.xlu0 %433, %v109
    %v435 = vpop.permute.xlu0 %434
    %437 = vset.pattern.permute.xlu0 10
    %438 = vperm.xlu0 %437, %v110
    %v439 = vpop.permute.xlu0 %438
    %441 = vset.pattern.permute.xlu0 10
    %442 = vperm.xlu0 %441, %v111
    %v443 = vpop.permute.xlu0 %442
    %445 = vset.pattern.permute.xlu0 10
    %446 = vperm.xlu0 %445, %v112
    %v447 = vpop.permute.xlu0 %446
    %vm449 = vcmp.ge.f32.partialorder %v21, %v435
    %vm450 = vcmp.ge.f32.partialorder %v22, %v439
    %vm451 = vcmp.ge.f32.partialorder %v23, %v443
    %vm452 = vcmp.ge.f32.partialorder %v24, %v447
    %v453 = vsel %vm449, 1, 0
    %v454 = vsel %vm450, 1, 0
    %v455 = vsel %vm451, 1, 0
    %v456 = vsel %vm452, 1, 0
    %v457 = vcvt.s32.f32 %v453
    %v458 = vcvt.s32.f32 %v454
    %v459 = vcvt.s32.f32 %v455
    %v460 = vcvt.s32.f32 %v456
    %v461 = vsub.f32 %v425, %v457
    %v462 = vsub.f32 %v426, %v458
    %v463 = vsub.f32 %v427, %v459
    %v464 = vsub.f32 %v428, %v460
    %465 = vset.pattern.permute.xlu0 11
    %466 = vperm.xlu0 %465, %v109
    %v467 = vpop.permute.xlu0 %466
    %469 = vset.pattern.permute.xlu0 11
    %470 = vperm.xlu0 %469, %v110
    %v471 = vpop.permute.xlu0 %470
    %473 = vset.pattern.permute.xlu0 11
    %474 = vperm.xlu0 %473, %v111
    %v475 = vpop.permute.xlu0 %474
    %477 = vset.pattern.permute.xlu0 11
    %478 = vperm.xlu0 %477, %v112
    %v479 = vpop.permute.xlu0 %478
    %vm481 = vcmp.ge.f32.partialorder %v21, %v467
    %vm482 = vcmp.ge.f32.partialorder %v22, %v471
    %vm483 = vcmp.ge.f32.partialorder %v23, %v475
    %vm484 = vcmp.ge.f32.partialorder %v24, %v479
    %v485 = vsel %vm481, 1, 0
    %v486 = vsel %vm482, 1, 0
    %v487 = vsel %vm483, 1, 0
    %v488 = vsel %vm484, 1, 0
    %v489 = vcvt.s32.f32 %v485
    %v490 = vcvt.s32.f32 %v486
    %v491 = vcvt.s32.f32 %v487
    %v492 = vcvt.s32.f32 %v488
    %v493 = vsub.f32 %v457, %v489
    %v494 = vsub.f32 %v458, %v490
    %v495 = vsub.f32 %v459, %v491
    %v496 = vsub.f32 %v460, %v492
    %v497 = vld [vmem:[%s2] sm:$0xff]
    %v498 = vld [vmem:[%s2 + $0x8] sm:$0xff]
    %v499 = vld [vmem:[%s2 + $0x10] sm:$0xff]
    %v500 = vld [vmem:[%s2 + $0x18] sm:$0xff]
    %502 = vset.pattern.permute.xlu0 0
    %503 = vperm.xlu0 %502, %v497
    %v504 = vpop.permute.xlu0 %503
    %507 = vset.pattern.permute.xlu0 0
    %508 = vperm.xlu0 %507, %v498
    %v509 = vpop.permute.xlu0 %508
    %512 = vset.pattern.permute.xlu0 0
    %513 = vperm.xlu0 %512, %v499
    %v514 = vpop.permute.xlu0 %513
    %517 = vset.pattern.permute.xlu0 0
    %518 = vperm.xlu0 %517, %v500
    %v519 = vpop.permute.xlu0 %518
    %v521 = vmul.f32 %v21, %v504
    %v522 = vmul.f32 %v22, %v509
    %v523 = vmul.f32 %v23, %v514
    %v524 = vmul.f32 %v24, %v519
    %v525 = vld [vmem:[%s3] sm:$0xff]
    %v526 = vld [vmem:[%s3 + $0x8] sm:$0xff]
    %v527 = vld [vmem:[%s3 + $0x10] sm:$0xff]
    %v528 = vld [vmem:[%s3 + $0x18] sm:$0xff]
    %530 = vset.pattern.permute.xlu0 0
    %531 = vperm.xlu0 %530, %v525
    %v532 = vpop.permute.xlu0 %531
    %535 = vset.pattern.permute.xlu0 0
    %536 = vperm.xlu0 %535, %v526
    %v537 = vpop.permute.xlu0 %536
    %540 = vset.pattern.permute.xlu0 0
    %541 = vperm.xlu0 %540, %v527
    %v542 = vpop.permute.xlu0 %541
    %545 = vset.pattern.permute.xlu0 0
    %546 = vperm.xlu0 %545, %v528
    %v547 = vpop.permute.xlu0 %546
    %v549 = vsub.f32 %v521, %v532
    %v550 = vsub.f32 %v522, %v537
    %v551 = vsub.f32 %v523, %v542
    %v552 = vsub.f32 %v524, %v547
    %553 = vset.pattern.permute.xlu0 1
    %554 = vperm.xlu0 %553, %v497
    %v555 = vpop.permute.xlu0 %554
    %557 = vset.pattern.permute.xlu0 1
    %558 = vperm.xlu0 %557, %v498
    %v559 = vpop.permute.xlu0 %558
    %561 = vset.pattern.permute.xlu0 1
    %562 = vperm.xlu0 %561, %v499
    %v563 = vpop.permute.xlu0 %562
    %565 = vset.pattern.permute.xlu0 1
    %566 = vperm.xlu0 %565, %v500
    %v567 = vpop.permute.xlu0 %566
    %v569 = vmul.f32 %v21, %v555
    %v570 = vmul.f32 %v22, %v559
    %v571 = vmul.f32 %v23, %v563
    %v572 = vmul.f32 %v24, %v567
    %573 = vset.pattern.permute.xlu0 1
    %574 = vperm.xlu0 %573, %v525
    %v575 = vpop.permute.xlu0 %574
    %577 = vset.pattern.permute.xlu0 1
    %578 = vperm.xlu0 %577, %v526
    %v579 = vpop.permute.xlu0 %578
    %581 = vset.pattern.permute.xlu0 1
    %582 = vperm.xlu0 %581, %v527
    %v583 = vpop.permute.xlu0 %582
    %585 = vset.pattern.permute.xlu0 1
    %586 = vperm.xlu0 %585, %v528
    %v587 = vpop.permute.xlu0 %586
    %v589 = vsub.f32 %v569, %v575
    %v590 = vsub.f32 %v570, %v579
    %v591 = vsub.f32 %v571, %v583
    %v592 = vsub.f32 %v572, %v587
    %v593 = vmul.f32 %v549, %v173
    %v594 = vmul.f32 %v550, %v174
    %v595 = vmul.f32 %v551, %v175
    %v596 = vmul.f32 %v552, %v176
    %v597 = vsub.f32 1.0, %v589
    %v598 = vsub.f32 1.0, %v590
    %v599 = vsub.f32 1.0, %v591
    %v600 = vsub.f32 1.0, %v592
    %v601 = vmul.f32 %v597, %v205
    %v602 = vmul.f32 %v598, %v206
    %v603 = vmul.f32 %v599, %v207
    %v604 = vmul.f32 %v600, %v208
    %v605 = vadd.f32 %v593, %v601
    %v606 = vadd.f32 %v594, %v602
    %v607 = vadd.f32 %v595, %v603
    %v608 = vadd.f32 %v596, %v604
    %609 = vset.pattern.permute.xlu0 2
    %610 = vperm.xlu0 %609, %v497
    %v611 = vpop.permute.xlu0 %610
    %613 = vset.pattern.permute.xlu0 2
    %614 = vperm.xlu0 %613, %v498
    %v615 = vpop.permute.xlu0 %614
    %617 = vset.pattern.permute.xlu0 2
    %618 = vperm.xlu0 %617, %v499
    %v619 = vpop.permute.xlu0 %618
    %621 = vset.pattern.permute.xlu0 2
    %622 = vperm.xlu0 %621, %v500
    %v623 = vpop.permute.xlu0 %622
    %v625 = vmul.f32 %v21, %v611
    %v626 = vmul.f32 %v22, %v615
    %v627 = vmul.f32 %v23, %v619
    %v628 = vmul.f32 %v24, %v623
    %629 = vset.pattern.permute.xlu0 2
    %630 = vperm.xlu0 %629, %v525
    %v631 = vpop.permute.xlu0 %630
    %633 = vset.pattern.permute.xlu0 2
    %634 = vperm.xlu0 %633, %v526
    %v635 = vpop.permute.xlu0 %634
    %637 = vset.pattern.permute.xlu0 2
    %638 = vperm.xlu0 %637, %v527
    %v639 = vpop.permute.xlu0 %638
    %641 = vset.pattern.permute.xlu0 2
    %642 = vperm.xlu0 %641, %v528
    %v643 = vpop.permute.xlu0 %642
    %v645 = vsub.f32 %v625, %v631
    %v646 = vsub.f32 %v626, %v635
    %v647 = vsub.f32 %v627, %v639
    %v648 = vsub.f32 %v628, %v643
    %v649 = vmul.f32 %v589, %v205
    %v650 = vmul.f32 %v590, %v206
    %v651 = vmul.f32 %v591, %v207
    %v652 = vmul.f32 %v592, %v208
    %v653 = vsub.f32 1.0, %v645
    %v654 = vsub.f32 1.0, %v646
    %v655 = vsub.f32 1.0, %v647
    %v656 = vsub.f32 1.0, %v648
    %v657 = vmul.f32 %v653, %v237
    %v658 = vmul.f32 %v654, %v238
    %v659 = vmul.f32 %v655, %v239
    %v660 = vmul.f32 %v656, %v240
    %v661 = vadd.f32 %v649, %v657
    %v662 = vadd.f32 %v650, %v658
    %v663 = vadd.f32 %v651, %v659
    %v664 = vadd.f32 %v652, %v660
    %665 = vset.pattern.permute.xlu0 3
    %666 = vperm.xlu0 %665, %v497
    %v667 = vpop.permute.xlu0 %666
    %669 = vset.pattern.permute.xlu0 3
    %670 = vperm.xlu0 %669, %v498
    %v671 = vpop.permute.xlu0 %670
    %673 = vset.pattern.permute.xlu0 3
    %674 = vperm.xlu0 %673, %v499
    %v675 = vpop.permute.xlu0 %674
    %677 = vset.pattern.permute.xlu0 3
    %678 = vperm.xlu0 %677, %v500
    %v679 = vpop.permute.xlu0 %678
    %v681 = vmul.f32 %v21, %v667
    %v682 = vmul.f32 %v22, %v671
    %v683 = vmul.f32 %v23, %v675
    %v684 = vmul.f32 %v24, %v679
    %685 = vset.pattern.permute.xlu0 3
    %686 = vperm.xlu0 %685, %v525
    %v687 = vpop.permute.xlu0 %686
    %689 = vset.pattern.permute.xlu0 3
    %690 = vperm.xlu0 %689, %v526
    %v691 = vpop.permute.xlu0 %690
    %693 = vset.pattern.permute.xlu0 3
    %694 = vperm.xlu0 %693, %v527
    %v695 = vpop.permute.xlu0 %694
    %697 = vset.pattern.permute.xlu0 3
    %698 = vperm.xlu0 %697, %v528
    %v699 = vpop.permute.xlu0 %698
    %v701 = vsub.f32 %v681, %v687
    %v702 = vsub.f32 %v682, %v691
    %v703 = vsub.f32 %v683, %v695
    %v704 = vsub.f32 %v684, %v699
    %v705 = vmul.f32 %v645, %v237
    %v706 = vmul.f32 %v646, %v238
    %v707 = vmul.f32 %v647, %v239
    %v708 = vmul.f32 %v648, %v240
    %v709 = vsub.f32 1.0, %v701
    %v710 = vsub.f32 1.0, %v702
    %v711 = vsub.f32 1.0, %v703
    %v712 = vsub.f32 1.0, %v704
    %v713 = vmul.f32 %v709, %v269
    %v714 = vmul.f32 %v710, %v270
    %v715 = vmul.f32 %v711, %v271
    %v716 = vmul.f32 %v712, %v272
    %v717 = vadd.f32 %v705, %v713
    %v718 = vadd.f32 %v706, %v714
    %v719 = vadd.f32 %v707, %v715
    %v720 = vadd.f32 %v708, %v716
    %721 = vset.pattern.permute.xlu0 4
    %722 = vperm.xlu0 %721, %v497
    %v723 = vpop.permute.xlu0 %722
    %725 = vset.pattern.permute.xlu0 4
    %726 = vperm.xlu0 %725, %v498
    %v727 = vpop.permute.xlu0 %726
    %729 = vset.pattern.permute.xlu0 4
    %730 = vperm.xlu0 %729, %v499
    %v731 = vpop.permute.xlu0 %730
    %733 = vset.pattern.permute.xlu0 4
    %734 = vperm.xlu0 %733, %v500
    %v735 = vpop.permute.xlu0 %734
    %v737 = vmul.f32 %v21, %v723
    %v738 = vmul.f32 %v22, %v727
    %v739 = vmul.f32 %v23, %v731
    %v740 = vmul.f32 %v24, %v735
    %741 = vset.pattern.permute.xlu0 4
    %742 = vperm.xlu0 %741, %v525
    %v743 = vpop.permute.xlu0 %742
    %745 = vset.pattern.permute.xlu0 4
    %746 = vperm.xlu0 %745, %v526
    %v747 = vpop.permute.xlu0 %746
    %749 = vset.pattern.permute.xlu0 4
    %750 = vperm.xlu0 %749, %v527
    %v751 = vpop.permute.xlu0 %750
    %753 = vset.pattern.permute.xlu0 4
    %754 = vperm.xlu0 %753, %v528
    %v755 = vpop.permute.xlu0 %754
    %v757 = vsub.f32 %v737, %v743
    %v758 = vsub.f32 %v738, %v747
    %v759 = vsub.f32 %v739, %v751
    %v760 = vsub.f32 %v740, %v755
    %v761 = vmul.f32 %v701, %v269
    %v762 = vmul.f32 %v702, %v270
    %v763 = vmul.f32 %v703, %v271
    %v764 = vmul.f32 %v704, %v272
    %v765 = vsub.f32 1.0, %v757
    %v766 = vsub.f32 1.0, %v758
    %v767 = vsub.f32 1.0, %v759
    %v768 = vsub.f32 1.0, %v760
    %v769 = vmul.f32 %v765, %v301
    %v770 = vmul.f32 %v766, %v302
    %v771 = vmul.f32 %v767, %v303
    %v772 = vmul.f32 %v768, %v304
    %v773 = vadd.f32 %v761, %v769
    %v774 = vadd.f32 %v762, %v770
    %v775 = vadd.f32 %v763, %v771
    %v776 = vadd.f32 %v764, %v772
    %777 = vset.pattern.permute.xlu0 5
    %778 = vperm.xlu0 %777, %v497
    %v779 = vpop.permute.xlu0 %778
    %781 = vset.pattern.permute.xlu0 5
    %782 = vperm.xlu0 %781, %v498
    %v783 = vpop.permute.xlu0 %782
    %785 = vset.pattern.permute.xlu0 5
    %786 = vperm.xlu0 %785, %v499
    %v787 = vpop.permute.xlu0 %786
    %789 = vset.pattern.permute.xlu0 5
    %790 = vperm.xlu0 %789, %v500
    %v791 = vpop.permute.xlu0 %790
    %v793 = vmul.f32 %v21, %v779
    %v794 = vmul.f32 %v22, %v783
    %v795 = vmul.f32 %v23, %v787
    %v796 = vmul.f32 %v24, %v791
    %797 = vset.pattern.permute.xlu0 5
    %798 = vperm.xlu0 %797, %v525
    %v799 = vpop.permute.xlu0 %798
    %801 = vset.pattern.permute.xlu0 5
    %802 = vperm.xlu0 %801, %v526
    %v803 = vpop.permute.xlu0 %802
    %805 = vset.pattern.permute.xlu0 5
    %806 = vperm.xlu0 %805, %v527
    %v807 = vpop.permute.xlu0 %806
    %809 = vset.pattern.permute.xlu0 5
    %810 = vperm.xlu0 %809, %v528
    %v811 = vpop.permute.xlu0 %810
    %v813 = vsub.f32 %v793, %v799
    %v814 = vsub.f32 %v794, %v803
    %v815 = vsub.f32 %v795, %v807
    %v816 = vsub.f32 %v796, %v811
    %v817 = vmul.f32 %v757, %v301
    %v818 = vmul.f32 %v758, %v302
    %v819 = vmul.f32 %v759, %v303
    %v820 = vmul.f32 %v760, %v304
    %v821 = vsub.f32 1.0, %v813
    %v822 = vsub.f32 1.0, %v814
    %v823 = vsub.f32 1.0, %v815
    %v824 = vsub.f32 1.0, %v816
    %v825 = vmul.f32 %v821, %v333
    %v826 = vmul.f32 %v822, %v334
    %v827 = vmul.f32 %v823, %v335
    %v828 = vmul.f32 %v824, %v336
    %v829 = vadd.f32 %v817, %v825
    %v830 = vadd.f32 %v818, %v826
    %v831 = vadd.f32 %v819, %v827
    %v832 = vadd.f32 %v820, %v828
    %833 = vset.pattern.permute.xlu0 6
    %834 = vperm.xlu0 %833, %v497
    %v835 = vpop.permute.xlu0 %834
    %837 = vset.pattern.permute.xlu0 6
    %838 = vperm.xlu0 %837, %v498
    %v839 = vpop.permute.xlu0 %838
    %841 = vset.pattern.permute.xlu0 6
    %842 = vperm.xlu0 %841, %v499
    %v843 = vpop.permute.xlu0 %842
    %845 = vset.pattern.permute.xlu0 6
    %846 = vperm.xlu0 %845, %v500
    %v847 = vpop.permute.xlu0 %846
    %v849 = vmul.f32 %v21, %v835
    %v850 = vmul.f32 %v22, %v839
    %v851 = vmul.f32 %v23, %v843
    %v852 = vmul.f32 %v24, %v847
    %853 = vset.pattern.permute.xlu0 6
    %854 = vperm.xlu0 %853, %v525
    %v855 = vpop.permute.xlu0 %854
    %857 = vset.pattern.permute.xlu0 6
    %858 = vperm.xlu0 %857, %v526
    %v859 = vpop.permute.xlu0 %858
    %861 = vset.pattern.permute.xlu0 6
    %862 = vperm.xlu0 %861, %v527
    %v863 = vpop.permute.xlu0 %862
    %865 = vset.pattern.permute.xlu0 6
    %866 = vperm.xlu0 %865, %v528
    %v867 = vpop.permute.xlu0 %866
    %v869 = vsub.f32 %v849, %v855
    %v870 = vsub.f32 %v850, %v859
    %v871 = vsub.f32 %v851, %v863
    %v872 = vsub.f32 %v852, %v867
    %v873 = vmul.f32 %v813, %v333
    %v874 = vmul.f32 %v814, %v334
    %v875 = vmul.f32 %v815, %v335
    %v876 = vmul.f32 %v816, %v336
    %v877 = vsub.f32 1.0, %v869
    %v878 = vsub.f32 1.0, %v870
    %v879 = vsub.f32 1.0, %v871
    %v880 = vsub.f32 1.0, %v872
    %v881 = vmul.f32 %v877, %v365
    %v882 = vmul.f32 %v878, %v366
    %v883 = vmul.f32 %v879, %v367
    %v884 = vmul.f32 %v880, %v368
    %v885 = vadd.f32 %v873, %v881
    %v886 = vadd.f32 %v874, %v882
    %v887 = vadd.f32 %v875, %v883
    %v888 = vadd.f32 %v876, %v884
    %889 = vset.pattern.permute.xlu0 7
    %890 = vperm.xlu0 %889, %v497
    %v891 = vpop.permute.xlu0 %890
    %893 = vset.pattern.permute.xlu0 7
    %894 = vperm.xlu0 %893, %v498
    %v895 = vpop.permute.xlu0 %894
    %897 = vset.pattern.permute.xlu0 7
    %898 = vperm.xlu0 %897, %v499
    %v899 = vpop.permute.xlu0 %898
    %901 = vset.pattern.permute.xlu0 7
    %902 = vperm.xlu0 %901, %v500
    %v903 = vpop.permute.xlu0 %902
    %v905 = vmul.f32 %v21, %v891
    %v906 = vmul.f32 %v22, %v895
    %v907 = vmul.f32 %v23, %v899
    %v908 = vmul.f32 %v24, %v903
    %909 = vset.pattern.permute.xlu0 7
    %910 = vperm.xlu0 %909, %v525
    %v911 = vpop.permute.xlu0 %910
    %913 = vset.pattern.permute.xlu0 7
    %914 = vperm.xlu0 %913, %v526
    %v915 = vpop.permute.xlu0 %914
    %917 = vset.pattern.permute.xlu0 7
    %918 = vperm.xlu0 %917, %v527
    %v919 = vpop.permute.xlu0 %918
    %921 = vset.pattern.permute.xlu0 7
    %922 = vperm.xlu0 %921, %v528
    %v923 = vpop.permute.xlu0 %922
    %v925 = vsub.f32 %v905, %v911
    %v926 = vsub.f32 %v906, %v915
    %v927 = vsub.f32 %v907, %v919
    %v928 = vsub.f32 %v908, %v923
    %v929 = vmul.f32 %v869, %v365
    %v930 = vmul.f32 %v870, %v366
    %v931 = vmul.f32 %v871, %v367
    %v932 = vmul.f32 %v872, %v368
    %v933 = vsub.f32 1.0, %v925
    %v934 = vsub.f32 1.0, %v926
    %v935 = vsub.f32 1.0, %v927
    %v936 = vsub.f32 1.0, %v928
    %v937 = vmul.f32 %v933, %v397
    %v938 = vmul.f32 %v934, %v398
    %v939 = vmul.f32 %v935, %v399
    %v940 = vmul.f32 %v936, %v400
    %v941 = vadd.f32 %v929, %v937
    %v942 = vadd.f32 %v930, %v938
    %v943 = vadd.f32 %v931, %v939
    %v944 = vadd.f32 %v932, %v940
    %945 = vset.pattern.permute.xlu0 8
    %946 = vperm.xlu0 %945, %v497
    %v947 = vpop.permute.xlu0 %946
    %949 = vset.pattern.permute.xlu0 8
    %950 = vperm.xlu0 %949, %v498
    %v951 = vpop.permute.xlu0 %950
    %953 = vset.pattern.permute.xlu0 8
    %954 = vperm.xlu0 %953, %v499
    %v955 = vpop.permute.xlu0 %954
    %957 = vset.pattern.permute.xlu0 8
    %958 = vperm.xlu0 %957, %v500
    %v959 = vpop.permute.xlu0 %958
    %v961 = vmul.f32 %v21, %v947
    %v962 = vmul.f32 %v22, %v951
    %v963 = vmul.f32 %v23, %v955
    %v964 = vmul.f32 %v24, %v959
    %965 = vset.pattern.permute.xlu0 8
    %966 = vperm.xlu0 %965, %v525
    %v967 = vpop.permute.xlu0 %966
    %969 = vset.pattern.permute.xlu0 8
    %970 = vperm.xlu0 %969, %v526
    %v971 = vpop.permute.xlu0 %970
    %973 = vset.pattern.permute.xlu0 8
    %974 = vperm.xlu0 %973, %v527
    %v975 = vpop.permute.xlu0 %974
    %977 = vset.pattern.permute.xlu0 8
    %978 = vperm.xlu0 %977, %v528
    %v979 = vpop.permute.xlu0 %978
    %v981 = vsub.f32 %v961, %v967
    %v982 = vsub.f32 %v962, %v971
    %v983 = vsub.f32 %v963, %v975
    %v984 = vsub.f32 %v964, %v979
    %v985 = vmul.f32 %v925, %v397
    %v986 = vmul.f32 %v926, %v398
    %v987 = vmul.f32 %v927, %v399
    %v988 = vmul.f32 %v928, %v400
    %v989 = vsub.f32 1.0, %v981
    %v990 = vsub.f32 1.0, %v982
    %v991 = vsub.f32 1.0, %v983
    %v992 = vsub.f32 1.0, %v984
    %v993 = vmul.f32 %v989, %v429
    %v994 = vmul.f32 %v990, %v430
    %v995 = vmul.f32 %v991, %v431
    %v996 = vmul.f32 %v992, %v432
    %v997 = vadd.f32 %v985, %v993
    %v998 = vadd.f32 %v986, %v994
    %v999 = vadd.f32 %v987, %v995
    %v1000 = vadd.f32 %v988, %v996
    %1001 = vset.pattern.permute.xlu0 9
    %1002 = vperm.xlu0 %1001, %v497
    %v1003 = vpop.permute.xlu0 %1002
    %1005 = vset.pattern.permute.xlu0 9
    %1006 = vperm.xlu0 %1005, %v498
    %v1007 = vpop.permute.xlu0 %1006
    %1009 = vset.pattern.permute.xlu0 9
    %1010 = vperm.xlu0 %1009, %v499
    %v1011 = vpop.permute.xlu0 %1010
    %1013 = vset.pattern.permute.xlu0 9
    %1014 = vperm.xlu0 %1013, %v500
    %v1015 = vpop.permute.xlu0 %1014
    %v1017 = vmul.f32 %v21, %v1003
    %v1018 = vmul.f32 %v22, %v1007
    %v1019 = vmul.f32 %v23, %v1011
    %v1020 = vmul.f32 %v24, %v1015
    %1021 = vset.pattern.permute.xlu0 9
    %1022 = vperm.xlu0 %1021, %v525
    %v1023 = vpop.permute.xlu0 %1022
    %1025 = vset.pattern.permute.xlu0 9
    %1026 = vperm.xlu0 %1025, %v526
    %v1027 = vpop.permute.xlu0 %1026
    %1029 = vset.pattern.permute.xlu0 9
    %1030 = vperm.xlu0 %1029, %v527
    %v1031 = vpop.permute.xlu0 %1030
    %1033 = vset.pattern.permute.xlu0 9
    %1034 = vperm.xlu0 %1033, %v528
    %v1035 = vpop.permute.xlu0 %1034
    %v1037 = vsub.f32 %v1017, %v1023
    %v1038 = vsub.f32 %v1018, %v1027
    %v1039 = vsub.f32 %v1019, %v1031
    %v1040 = vsub.f32 %v1020, %v1035
    %v1041 = vmul.f32 %v981, %v429
    %v1042 = vmul.f32 %v982, %v430
    %v1043 = vmul.f32 %v983, %v431
    %v1044 = vmul.f32 %v984, %v432
    %v1045 = vsub.f32 1.0, %v1037
    %v1046 = vsub.f32 1.0, %v1038
    %v1047 = vsub.f32 1.0, %v1039
    %v1048 = vsub.f32 1.0, %v1040
    %v1049 = vmul.f32 %v1045, %v461
    %v1050 = vmul.f32 %v1046, %v462
    %v1051 = vmul.f32 %v1047, %v463
    %v1052 = vmul.f32 %v1048, %v464
    %v1053 = vadd.f32 %v1041, %v1049
    %v1054 = vadd.f32 %v1042, %v1050
    %v1055 = vadd.f32 %v1043, %v1051
    %v1056 = vadd.f32 %v1044, %v1052
    %1057 = vset.pattern.permute.xlu0 10
    %1058 = vperm.xlu0 %1057, %v497
    %v1059 = vpop.permute.xlu0 %1058
    %1061 = vset.pattern.permute.xlu0 10
    %1062 = vperm.xlu0 %1061, %v498
    %v1063 = vpop.permute.xlu0 %1062
    %1065 = vset.pattern.permute.xlu0 10
    %1066 = vperm.xlu0 %1065, %v499
    %v1067 = vpop.permute.xlu0 %1066
    %1069 = vset.pattern.permute.xlu0 10
    %1070 = vperm.xlu0 %1069, %v500
    %v1071 = vpop.permute.xlu0 %1070
    %v1073 = vmul.f32 %v21, %v1059
    %v1074 = vmul.f32 %v22, %v1063
    %v1075 = vmul.f32 %v23, %v1067
    %v1076 = vmul.f32 %v24, %v1071
    %1077 = vset.pattern.permute.xlu0 10
    %1078 = vperm.xlu0 %1077, %v525
    %v1079 = vpop.permute.xlu0 %1078
    %1081 = vset.pattern.permute.xlu0 10
    %1082 = vperm.xlu0 %1081, %v526
    %v1083 = vpop.permute.xlu0 %1082
    %1085 = vset.pattern.permute.xlu0 10
    %1086 = vperm.xlu0 %1085, %v527
    %v1087 = vpop.permute.xlu0 %1086
    %1089 = vset.pattern.permute.xlu0 10
    %1090 = vperm.xlu0 %1089, %v528
    %v1091 = vpop.permute.xlu0 %1090
    %v1093 = vsub.f32 %v1073, %v1079
    %v1094 = vsub.f32 %v1074, %v1083
    %v1095 = vsub.f32 %v1075, %v1087
    %v1096 = vsub.f32 %v1076, %v1091
    %v1097 = vmul.f32 %v1037, %v461
    %v1098 = vmul.f32 %v1038, %v462
    %v1099 = vmul.f32 %v1039, %v463
    %v1100 = vmul.f32 %v1040, %v464
    %v1101 = vsub.f32 1.0, %v1093
    %v1102 = vsub.f32 1.0, %v1094
    %v1103 = vsub.f32 1.0, %v1095
    %v1104 = vsub.f32 1.0, %v1096
    %v1105 = vmul.f32 %v1101, %v493
    %v1106 = vmul.f32 %v1102, %v494
    %v1107 = vmul.f32 %v1103, %v495
    %v1108 = vmul.f32 %v1104, %v496
    %v1109 = vadd.f32 %v1097, %v1105
    %v1110 = vadd.f32 %v1098, %v1106
    %v1111 = vadd.f32 %v1099, %v1107
    %v1112 = vadd.f32 %v1100, %v1108
    %s1113 = scalar_lea.vmem %s2, 32
    %v1114 = vld [vmem:[%s1113] sm:$0xff]
    %v1115 = vld [vmem:[%s1113 + $0x8] sm:$0xff]
    %v1116 = vld [vmem:[%s1113 + $0x10] sm:$0xff]
    %v1117 = vld [vmem:[%s1113 + $0x18] sm:$0xff]
    %1119 = vset.pattern.permute.xlu0 0
    %1120 = vperm.xlu0 %1119, %v1114
    %v1121 = vpop.permute.xlu0 %1120
    %1124 = vset.pattern.permute.xlu0 0
    %1125 = vperm.xlu0 %1124, %v1115
    %v1126 = vpop.permute.xlu0 %1125
    %1129 = vset.pattern.permute.xlu0 0
    %1130 = vperm.xlu0 %1129, %v1116
    %v1131 = vpop.permute.xlu0 %1130
    %1134 = vset.pattern.permute.xlu0 0
    %1135 = vperm.xlu0 %1134, %v1117
    %v1136 = vpop.permute.xlu0 %1135
    %v1138 = vmul.f32 %v21, %v1121
    %v1139 = vmul.f32 %v22, %v1126
    %v1140 = vmul.f32 %v23, %v1131
    %v1141 = vmul.f32 %v24, %v1136
    %s1142 = scalar_lea.vmem %s3, 32
    %v1143 = vld [vmem:[%s1142] sm:$0xff]
    %v1144 = vld [vmem:[%s1142 + $0x8] sm:$0xff]
    %v1145 = vld [vmem:[%s1142 + $0x10] sm:$0xff]
    %v1146 = vld [vmem:[%s1142 + $0x18] sm:$0xff]
    %1148 = vset.pattern.permute.xlu0 0
    %1149 = vperm.xlu0 %1148, %v1143
    %v1150 = vpop.permute.xlu0 %1149
    %1153 = vset.pattern.permute.xlu0 0
    %1154 = vperm.xlu0 %1153, %v1144
    %v1155 = vpop.permute.xlu0 %1154
    %1158 = vset.pattern.permute.xlu0 0
    %1159 = vperm.xlu0 %1158, %v1145
    %v1160 = vpop.permute.xlu0 %1159
    %1163 = vset.pattern.permute.xlu0 0
    %1164 = vperm.xlu0 %1163, %v1146
    %v1165 = vpop.permute.xlu0 %1164
    %v1167 = vsub.f32 %v1138, %v1150
    %v1168 = vsub.f32 %v1139, %v1155
    %v1169 = vsub.f32 %v1140, %v1160
    %v1170 = vsub.f32 %v1141, %v1165
    %1171 = vset.pattern.permute.xlu0 1
    %1172 = vperm.xlu0 %1171, %v1114
    %v1173 = vpop.permute.xlu0 %1172
    %1175 = vset.pattern.permute.xlu0 1
    %1176 = vperm.xlu0 %1175, %v1115
    %v1177 = vpop.permute.xlu0 %1176
    %1179 = vset.pattern.permute.xlu0 1
    %1180 = vperm.xlu0 %1179, %v1116
    %v1181 = vpop.permute.xlu0 %1180
    %1183 = vset.pattern.permute.xlu0 1
    %1184 = vperm.xlu0 %1183, %v1117
    %v1185 = vpop.permute.xlu0 %1184
    %v1187 = vmul.f32 %v21, %v1173
    %v1188 = vmul.f32 %v22, %v1177
    %v1189 = vmul.f32 %v23, %v1181
    %v1190 = vmul.f32 %v24, %v1185
    %1191 = vset.pattern.permute.xlu0 1
    %1192 = vperm.xlu0 %1191, %v1143
    %v1193 = vpop.permute.xlu0 %1192
    %1195 = vset.pattern.permute.xlu0 1
    %1196 = vperm.xlu0 %1195, %v1144
    %v1197 = vpop.permute.xlu0 %1196
    %1199 = vset.pattern.permute.xlu0 1
    %1200 = vperm.xlu0 %1199, %v1145
    %v1201 = vpop.permute.xlu0 %1200
    %1203 = vset.pattern.permute.xlu0 1
    %1204 = vperm.xlu0 %1203, %v1146
    %v1205 = vpop.permute.xlu0 %1204
    %v1207 = vsub.f32 %v1187, %v1193
    %v1208 = vsub.f32 %v1188, %v1197
    %v1209 = vsub.f32 %v1189, %v1201
    %v1210 = vsub.f32 %v1190, %v1205
    %v1211 = vmul.f32 %v1167, %v605
    %v1212 = vmul.f32 %v1168, %v606
    %v1213 = vmul.f32 %v1169, %v607
    %v1214 = vmul.f32 %v1170, %v608
    %v1215 = vsub.f32 1.0, %v1207
    %v1216 = vsub.f32 1.0, %v1208
    %v1217 = vsub.f32 1.0, %v1209
    %v1218 = vsub.f32 1.0, %v1210
    %v1219 = vmul.f32 %v1215, %v661
    %v1220 = vmul.f32 %v1216, %v662
    %v1221 = vmul.f32 %v1217, %v663
    %v1222 = vmul.f32 %v1218, %v664
    %v1223 = vadd.f32 %v1211, %v1219
    %v1224 = vadd.f32 %v1212, %v1220
    %v1225 = vadd.f32 %v1213, %v1221
    %v1226 = vadd.f32 %v1214, %v1222
    %1227 = vset.pattern.permute.xlu0 2
    %1228 = vperm.xlu0 %1227, %v1114
    %v1229 = vpop.permute.xlu0 %1228
    %1231 = vset.pattern.permute.xlu0 2
    %1232 = vperm.xlu0 %1231, %v1115
    %v1233 = vpop.permute.xlu0 %1232
    %1235 = vset.pattern.permute.xlu0 2
    %1236 = vperm.xlu0 %1235, %v1116
    %v1237 = vpop.permute.xlu0 %1236
    %1239 = vset.pattern.permute.xlu0 2
    %1240 = vperm.xlu0 %1239, %v1117
    %v1241 = vpop.permute.xlu0 %1240
    %v1243 = vmul.f32 %v21, %v1229
    %v1244 = vmul.f32 %v22, %v1233
    %v1245 = vmul.f32 %v23, %v1237
    %v1246 = vmul.f32 %v24, %v1241
    %1247 = vset.pattern.permute.xlu0 2
    %1248 = vperm.xlu0 %1247, %v1143
    %v1249 = vpop.permute.xlu0 %1248
    %1251 = vset.pattern.permute.xlu0 2
    %1252 = vperm.xlu0 %1251, %v1144
    %v1253 = vpop.permute.xlu0 %1252
    %1255 = vset.pattern.permute.xlu0 2
    %1256 = vperm.xlu0 %1255, %v1145
    %v1257 = vpop.permute.xlu0 %1256
    %1259 = vset.pattern.permute.xlu0 2
    %1260 = vperm.xlu0 %1259, %v1146
    %v1261 = vpop.permute.xlu0 %1260
    %v1263 = vsub.f32 %v1243, %v1249
    %v1264 = vsub.f32 %v1244, %v1253
    %v1265 = vsub.f32 %v1245, %v1257
    %v1266 = vsub.f32 %v1246, %v1261
    %v1267 = vmul.f32 %v1207, %v661
    %v1268 = vmul.f32 %v1208, %v662
    %v1269 = vmul.f32 %v1209, %v663
    %v1270 = vmul.f32 %v1210, %v664
    %v1271 = vsub.f32 1.0, %v1263
    %v1272 = vsub.f32 1.0, %v1264
    %v1273 = vsub.f32 1.0, %v1265
    %v1274 = vsub.f32 1.0, %v1266
    %v1275 = vmul.f32 %v1271, %v717
    %v1276 = vmul.f32 %v1272, %v718
    %v1277 = vmul.f32 %v1273, %v719
    %v1278 = vmul.f32 %v1274, %v720
    %v1279 = vadd.f32 %v1267, %v1275
    %v1280 = vadd.f32 %v1268, %v1276
    %v1281 = vadd.f32 %v1269, %v1277
    %v1282 = vadd.f32 %v1270, %v1278
    %1283 = vset.pattern.permute.xlu0 3
    %1284 = vperm.xlu0 %1283, %v1114
    %v1285 = vpop.permute.xlu0 %1284
    %1287 = vset.pattern.permute.xlu0 3
    %1288 = vperm.xlu0 %1287, %v1115
    %v1289 = vpop.permute.xlu0 %1288
    %1291 = vset.pattern.permute.xlu0 3
    %1292 = vperm.xlu0 %1291, %v1116
    %v1293 = vpop.permute.xlu0 %1292
    %1295 = vset.pattern.permute.xlu0 3
    %1296 = vperm.xlu0 %1295, %v1117
    %v1297 = vpop.permute.xlu0 %1296
    %v1299 = vmul.f32 %v21, %v1285
    %v1300 = vmul.f32 %v22, %v1289
    %v1301 = vmul.f32 %v23, %v1293
    %v1302 = vmul.f32 %v24, %v1297
    %1303 = vset.pattern.permute.xlu0 3
    %1304 = vperm.xlu0 %1303, %v1143
    %v1305 = vpop.permute.xlu0 %1304
    %1307 = vset.pattern.permute.xlu0 3
    %1308 = vperm.xlu0 %1307, %v1144
    %v1309 = vpop.permute.xlu0 %1308
    %1311 = vset.pattern.permute.xlu0 3
    %1312 = vperm.xlu0 %1311, %v1145
    %v1313 = vpop.permute.xlu0 %1312
    %1315 = vset.pattern.permute.xlu0 3
    %1316 = vperm.xlu0 %1315, %v1146
    %v1317 = vpop.permute.xlu0 %1316
    %v1319 = vsub.f32 %v1299, %v1305
    %v1320 = vsub.f32 %v1300, %v1309
    %v1321 = vsub.f32 %v1301, %v1313
    %v1322 = vsub.f32 %v1302, %v1317
    %v1323 = vmul.f32 %v1263, %v717
    %v1324 = vmul.f32 %v1264, %v718
    %v1325 = vmul.f32 %v1265, %v719
    %v1326 = vmul.f32 %v1266, %v720
    %v1327 = vsub.f32 1.0, %v1319
    %v1328 = vsub.f32 1.0, %v1320
    %v1329 = vsub.f32 1.0, %v1321
    %v1330 = vsub.f32 1.0, %v1322
    %v1331 = vmul.f32 %v1327, %v773
    %v1332 = vmul.f32 %v1328, %v774
    %v1333 = vmul.f32 %v1329, %v775
    %v1334 = vmul.f32 %v1330, %v776
    %v1335 = vadd.f32 %v1323, %v1331
    %v1336 = vadd.f32 %v1324, %v1332
    %v1337 = vadd.f32 %v1325, %v1333
    %v1338 = vadd.f32 %v1326, %v1334
    %1339 = vset.pattern.permute.xlu0 4
    %1340 = vperm.xlu0 %1339, %v1114
    %v1341 = vpop.permute.xlu0 %1340
    %1343 = vset.pattern.permute.xlu0 4
    %1344 = vperm.xlu0 %1343, %v1115
    %v1345 = vpop.permute.xlu0 %1344
    %1347 = vset.pattern.permute.xlu0 4
    %1348 = vperm.xlu0 %1347, %v1116
    %v1349 = vpop.permute.xlu0 %1348
    %1351 = vset.pattern.permute.xlu0 4
    %1352 = vperm.xlu0 %1351, %v1117
    %v1353 = vpop.permute.xlu0 %1352
    %v1355 = vmul.f32 %v21, %v1341
    %v1356 = vmul.f32 %v22, %v1345
    %v1357 = vmul.f32 %v23, %v1349
    %v1358 = vmul.f32 %v24, %v1353
    %1359 = vset.pattern.permute.xlu0 4
    %1360 = vperm.xlu0 %1359, %v1143
    %v1361 = vpop.permute.xlu0 %1360
    %1363 = vset.pattern.permute.xlu0 4
    %1364 = vperm.xlu0 %1363, %v1144
    %v1365 = vpop.permute.xlu0 %1364
    %1367 = vset.pattern.permute.xlu0 4
    %1368 = vperm.xlu0 %1367, %v1145
    %v1369 = vpop.permute.xlu0 %1368
    %1371 = vset.pattern.permute.xlu0 4
    %1372 = vperm.xlu0 %1371, %v1146
    %v1373 = vpop.permute.xlu0 %1372
    %v1375 = vsub.f32 %v1355, %v1361
    %v1376 = vsub.f32 %v1356, %v1365
    %v1377 = vsub.f32 %v1357, %v1369
    %v1378 = vsub.f32 %v1358, %v1373
    %v1379 = vmul.f32 %v1319, %v773
    %v1380 = vmul.f32 %v1320, %v774
    %v1381 = vmul.f32 %v1321, %v775
    %v1382 = vmul.f32 %v1322, %v776
    %v1383 = vsub.f32 1.0, %v1375
    %v1384 = vsub.f32 1.0, %v1376
    %v1385 = vsub.f32 1.0, %v1377
    %v1386 = vsub.f32 1.0, %v1378
    %v1387 = vmul.f32 %v1383, %v829
    %v1388 = vmul.f32 %v1384, %v830
    %v1389 = vmul.f32 %v1385, %v831
    %v1390 = vmul.f32 %v1386, %v832
    %v1391 = vadd.f32 %v1379, %v1387
    %v1392 = vadd.f32 %v1380, %v1388
    %v1393 = vadd.f32 %v1381, %v1389
    %v1394 = vadd.f32 %v1382, %v1390
    %1395 = vset.pattern.permute.xlu0 5
    %1396 = vperm.xlu0 %1395, %v1114
    %v1397 = vpop.permute.xlu0 %1396
    %1399 = vset.pattern.permute.xlu0 5
    %1400 = vperm.xlu0 %1399, %v1115
    %v1401 = vpop.permute.xlu0 %1400
    %1403 = vset.pattern.permute.xlu0 5
    %1404 = vperm.xlu0 %1403, %v1116
    %v1405 = vpop.permute.xlu0 %1404
    %1407 = vset.pattern.permute.xlu0 5
    %1408 = vperm.xlu0 %1407, %v1117
    %v1409 = vpop.permute.xlu0 %1408
    %v1411 = vmul.f32 %v21, %v1397
    %v1412 = vmul.f32 %v22, %v1401
    %v1413 = vmul.f32 %v23, %v1405
    %v1414 = vmul.f32 %v24, %v1409
    %1415 = vset.pattern.permute.xlu0 5
    %1416 = vperm.xlu0 %1415, %v1143
    %v1417 = vpop.permute.xlu0 %1416
    %1419 = vset.pattern.permute.xlu0 5
    %1420 = vperm.xlu0 %1419, %v1144
    %v1421 = vpop.permute.xlu0 %1420
    %1423 = vset.pattern.permute.xlu0 5
    %1424 = vperm.xlu0 %1423, %v1145
    %v1425 = vpop.permute.xlu0 %1424
    %1427 = vset.pattern.permute.xlu0 5
    %1428 = vperm.xlu0 %1427, %v1146
    %v1429 = vpop.permute.xlu0 %1428
    %v1431 = vsub.f32 %v1411, %v1417
    %v1432 = vsub.f32 %v1412, %v1421
    %v1433 = vsub.f32 %v1413, %v1425
    %v1434 = vsub.f32 %v1414, %v1429
    %v1435 = vmul.f32 %v1375, %v829
    %v1436 = vmul.f32 %v1376, %v830
    %v1437 = vmul.f32 %v1377, %v831
    %v1438 = vmul.f32 %v1378, %v832
    %v1439 = vsub.f32 1.0, %v1431
    %v1440 = vsub.f32 1.0, %v1432
    %v1441 = vsub.f32 1.0, %v1433
    %v1442 = vsub.f32 1.0, %v1434
    %v1443 = vmul.f32 %v1439, %v885
    %v1444 = vmul.f32 %v1440, %v886
    %v1445 = vmul.f32 %v1441, %v887
    %v1446 = vmul.f32 %v1442, %v888
    %v1447 = vadd.f32 %v1435, %v1443
    %v1448 = vadd.f32 %v1436, %v1444
    %v1449 = vadd.f32 %v1437, %v1445
    %v1450 = vadd.f32 %v1438, %v1446
    %1451 = vset.pattern.permute.xlu0 6
    %1452 = vperm.xlu0 %1451, %v1114
    %v1453 = vpop.permute.xlu0 %1452
    %1455 = vset.pattern.permute.xlu0 6
    %1456 = vperm.xlu0 %1455, %v1115
    %v1457 = vpop.permute.xlu0 %1456
    %1459 = vset.pattern.permute.xlu0 6
    %1460 = vperm.xlu0 %1459, %v1116
    %v1461 = vpop.permute.xlu0 %1460
    %1463 = vset.pattern.permute.xlu0 6
    %1464 = vperm.xlu0 %1463, %v1117
    %v1465 = vpop.permute.xlu0 %1464
    %v1467 = vmul.f32 %v21, %v1453
    %v1468 = vmul.f32 %v22, %v1457
    %v1469 = vmul.f32 %v23, %v1461
    %v1470 = vmul.f32 %v24, %v1465
    %1471 = vset.pattern.permute.xlu0 6
    %1472 = vperm.xlu0 %1471, %v1143
    %v1473 = vpop.permute.xlu0 %1472
    %1475 = vset.pattern.permute.xlu0 6
    %1476 = vperm.xlu0 %1475, %v1144
    %v1477 = vpop.permute.xlu0 %1476
    %1479 = vset.pattern.permute.xlu0 6
    %1480 = vperm.xlu0 %1479, %v1145
    %v1481 = vpop.permute.xlu0 %1480
    %1483 = vset.pattern.permute.xlu0 6
    %1484 = vperm.xlu0 %1483, %v1146
    %v1485 = vpop.permute.xlu0 %1484
    %v1487 = vsub.f32 %v1467, %v1473
    %v1488 = vsub.f32 %v1468, %v1477
    %v1489 = vsub.f32 %v1469, %v1481
    %v1490 = vsub.f32 %v1470, %v1485
    %v1491 = vmul.f32 %v1431, %v885
    %v1492 = vmul.f32 %v1432, %v886
    %v1493 = vmul.f32 %v1433, %v887
    %v1494 = vmul.f32 %v1434, %v888
    %v1495 = vsub.f32 1.0, %v1487
    %v1496 = vsub.f32 1.0, %v1488
    %v1497 = vsub.f32 1.0, %v1489
    %v1498 = vsub.f32 1.0, %v1490
    %v1499 = vmul.f32 %v1495, %v941
    %v1500 = vmul.f32 %v1496, %v942
    %v1501 = vmul.f32 %v1497, %v943
    %v1502 = vmul.f32 %v1498, %v944
    %v1503 = vadd.f32 %v1491, %v1499
    %v1504 = vadd.f32 %v1492, %v1500
    %v1505 = vadd.f32 %v1493, %v1501
    %v1506 = vadd.f32 %v1494, %v1502
    %1507 = vset.pattern.permute.xlu0 7
    %1508 = vperm.xlu0 %1507, %v1114
    %v1509 = vpop.permute.xlu0 %1508
    %1511 = vset.pattern.permute.xlu0 7
    %1512 = vperm.xlu0 %1511, %v1115
    %v1513 = vpop.permute.xlu0 %1512
    %1515 = vset.pattern.permute.xlu0 7
    %1516 = vperm.xlu0 %1515, %v1116
    %v1517 = vpop.permute.xlu0 %1516
    %1519 = vset.pattern.permute.xlu0 7
    %1520 = vperm.xlu0 %1519, %v1117
    %v1521 = vpop.permute.xlu0 %1520
    %v1523 = vmul.f32 %v21, %v1509
    %v1524 = vmul.f32 %v22, %v1513
    %v1525 = vmul.f32 %v23, %v1517
    %v1526 = vmul.f32 %v24, %v1521
    %1527 = vset.pattern.permute.xlu0 7
    %1528 = vperm.xlu0 %1527, %v1143
    %v1529 = vpop.permute.xlu0 %1528
    %1531 = vset.pattern.permute.xlu0 7
    %1532 = vperm.xlu0 %1531, %v1144
    %v1533 = vpop.permute.xlu0 %1532
    %1535 = vset.pattern.permute.xlu0 7
    %1536 = vperm.xlu0 %1535, %v1145
    %v1537 = vpop.permute.xlu0 %1536
    %1539 = vset.pattern.permute.xlu0 7
    %1540 = vperm.xlu0 %1539, %v1146
    %v1541 = vpop.permute.xlu0 %1540
    %v1543 = vsub.f32 %v1523, %v1529
    %v1544 = vsub.f32 %v1524, %v1533
    %v1545 = vsub.f32 %v1525, %v1537
    %v1546 = vsub.f32 %v1526, %v1541
    %v1547 = vmul.f32 %v1487, %v941
    %v1548 = vmul.f32 %v1488, %v942
    %v1549 = vmul.f32 %v1489, %v943
    %v1550 = vmul.f32 %v1490, %v944
    %v1551 = vsub.f32 1.0, %v1543
    %v1552 = vsub.f32 1.0, %v1544
    %v1553 = vsub.f32 1.0, %v1545
    %v1554 = vsub.f32 1.0, %v1546
    %v1555 = vmul.f32 %v1551, %v997
    %v1556 = vmul.f32 %v1552, %v998
    %v1557 = vmul.f32 %v1553, %v999
    %v1558 = vmul.f32 %v1554, %v1000
    %v1559 = vadd.f32 %v1547, %v1555
    %v1560 = vadd.f32 %v1548, %v1556
    %v1561 = vadd.f32 %v1549, %v1557
    %v1562 = vadd.f32 %v1550, %v1558
    %1563 = vset.pattern.permute.xlu0 8
    %1564 = vperm.xlu0 %1563, %v1114
    %v1565 = vpop.permute.xlu0 %1564
    %1567 = vset.pattern.permute.xlu0 8
    %1568 = vperm.xlu0 %1567, %v1115
    %v1569 = vpop.permute.xlu0 %1568
    %1571 = vset.pattern.permute.xlu0 8
    %1572 = vperm.xlu0 %1571, %v1116
    %v1573 = vpop.permute.xlu0 %1572
    %1575 = vset.pattern.permute.xlu0 8
    %1576 = vperm.xlu0 %1575, %v1117
    %v1577 = vpop.permute.xlu0 %1576
    %v1579 = vmul.f32 %v21, %v1565
    %v1580 = vmul.f32 %v22, %v1569
    %v1581 = vmul.f32 %v23, %v1573
    %v1582 = vmul.f32 %v24, %v1577
    %1583 = vset.pattern.permute.xlu0 8
    %1584 = vperm.xlu0 %1583, %v1143
    %v1585 = vpop.permute.xlu0 %1584
    %1587 = vset.pattern.permute.xlu0 8
    %1588 = vperm.xlu0 %1587, %v1144
    %v1589 = vpop.permute.xlu0 %1588
    %1591 = vset.pattern.permute.xlu0 8
    %1592 = vperm.xlu0 %1591, %v1145
    %v1593 = vpop.permute.xlu0 %1592
    %1595 = vset.pattern.permute.xlu0 8
    %1596 = vperm.xlu0 %1595, %v1146
    %v1597 = vpop.permute.xlu0 %1596
    %v1599 = vsub.f32 %v1579, %v1585
    %v1600 = vsub.f32 %v1580, %v1589
    %v1601 = vsub.f32 %v1581, %v1593
    %v1602 = vsub.f32 %v1582, %v1597
    %v1603 = vmul.f32 %v1543, %v997
    %v1604 = vmul.f32 %v1544, %v998
    %v1605 = vmul.f32 %v1545, %v999
    %v1606 = vmul.f32 %v1546, %v1000
    %v1607 = vsub.f32 1.0, %v1599
    %v1608 = vsub.f32 1.0, %v1600
    %v1609 = vsub.f32 1.0, %v1601
    %v1610 = vsub.f32 1.0, %v1602
    %v1611 = vmul.f32 %v1607, %v1053
    %v1612 = vmul.f32 %v1608, %v1054
    %v1613 = vmul.f32 %v1609, %v1055
    %v1614 = vmul.f32 %v1610, %v1056
    %v1615 = vadd.f32 %v1603, %v1611
    %v1616 = vadd.f32 %v1604, %v1612
    %v1617 = vadd.f32 %v1605, %v1613
    %v1618 = vadd.f32 %v1606, %v1614
    %1619 = vset.pattern.permute.xlu0 9
    %1620 = vperm.xlu0 %1619, %v1114
    %v1621 = vpop.permute.xlu0 %1620
    %1623 = vset.pattern.permute.xlu0 9
    %1624 = vperm.xlu0 %1623, %v1115
    %v1625 = vpop.permute.xlu0 %1624
    %1627 = vset.pattern.permute.xlu0 9
    %1628 = vperm.xlu0 %1627, %v1116
    %v1629 = vpop.permute.xlu0 %1628
    %1631 = vset.pattern.permute.xlu0 9
    %1632 = vperm.xlu0 %1631, %v1117
    %v1633 = vpop.permute.xlu0 %1632
    %v1635 = vmul.f32 %v21, %v1621
    %v1636 = vmul.f32 %v22, %v1625
    %v1637 = vmul.f32 %v23, %v1629
    %v1638 = vmul.f32 %v24, %v1633
    %1639 = vset.pattern.permute.xlu0 9
    %1640 = vperm.xlu0 %1639, %v1143
    %v1641 = vpop.permute.xlu0 %1640
    %1643 = vset.pattern.permute.xlu0 9
    %1644 = vperm.xlu0 %1643, %v1144
    %v1645 = vpop.permute.xlu0 %1644
    %1647 = vset.pattern.permute.xlu0 9
    %1648 = vperm.xlu0 %1647, %v1145
    %v1649 = vpop.permute.xlu0 %1648
    %1651 = vset.pattern.permute.xlu0 9
    %1652 = vperm.xlu0 %1651, %v1146
    %v1653 = vpop.permute.xlu0 %1652
    %v1655 = vsub.f32 %v1635, %v1641
    %v1656 = vsub.f32 %v1636, %v1645
    %v1657 = vsub.f32 %v1637, %v1649
    %v1658 = vsub.f32 %v1638, %v1653
    %v1659 = vmul.f32 %v1599, %v1053
    %v1660 = vmul.f32 %v1600, %v1054
    %v1661 = vmul.f32 %v1601, %v1055
    %v1662 = vmul.f32 %v1602, %v1056
    %v1663 = vsub.f32 1.0, %v1655
    %v1664 = vsub.f32 1.0, %v1656
    %v1665 = vsub.f32 1.0, %v1657
    %v1666 = vsub.f32 1.0, %v1658
    %v1667 = vmul.f32 %v1663, %v1109
    %v1668 = vmul.f32 %v1664, %v1110
    %v1669 = vmul.f32 %v1665, %v1111
    %v1670 = vmul.f32 %v1666, %v1112
    %v1671 = vadd.f32 %v1659, %v1667
    %v1672 = vadd.f32 %v1660, %v1668
    %v1673 = vadd.f32 %v1661, %v1669
    %v1674 = vadd.f32 %v1662, %v1670
    %s1675 = scalar_lea.vmem %s2, 64
    %v1676 = vld [vmem:[%s1675] sm:$0xff]
    %v1677 = vld [vmem:[%s1675 + $0x8] sm:$0xff]
    %v1678 = vld [vmem:[%s1675 + $0x10] sm:$0xff]
    %v1679 = vld [vmem:[%s1675 + $0x18] sm:$0xff]
    %1681 = vset.pattern.permute.xlu0 0
    %1682 = vperm.xlu0 %1681, %v1676
    %v1683 = vpop.permute.xlu0 %1682
    %1686 = vset.pattern.permute.xlu0 0
    %1687 = vperm.xlu0 %1686, %v1677
    %v1688 = vpop.permute.xlu0 %1687
    %1691 = vset.pattern.permute.xlu0 0
    %1692 = vperm.xlu0 %1691, %v1678
    %v1693 = vpop.permute.xlu0 %1692
    %1696 = vset.pattern.permute.xlu0 0
    %1697 = vperm.xlu0 %1696, %v1679
    %v1698 = vpop.permute.xlu0 %1697
    %v1700 = vmul.f32 %v21, %v1683
    %v1701 = vmul.f32 %v22, %v1688
    %v1702 = vmul.f32 %v23, %v1693
    %v1703 = vmul.f32 %v24, %v1698
    %s1704 = scalar_lea.vmem %s3, 64
    %v1705 = vld [vmem:[%s1704] sm:$0xff]
    %v1706 = vld [vmem:[%s1704 + $0x8] sm:$0xff]
    %v1707 = vld [vmem:[%s1704 + $0x10] sm:$0xff]
    %v1708 = vld [vmem:[%s1704 + $0x18] sm:$0xff]
    %1710 = vset.pattern.permute.xlu0 0
    %1711 = vperm.xlu0 %1710, %v1705
    %v1712 = vpop.permute.xlu0 %1711
    %1715 = vset.pattern.permute.xlu0 0
    %1716 = vperm.xlu0 %1715, %v1706
    %v1717 = vpop.permute.xlu0 %1716
    %1720 = vset.pattern.permute.xlu0 0
    %1721 = vperm.xlu0 %1720, %v1707
    %v1722 = vpop.permute.xlu0 %1721
    %1725 = vset.pattern.permute.xlu0 0
    %1726 = vperm.xlu0 %1725, %v1708
    %v1727 = vpop.permute.xlu0 %1726
    %v1729 = vsub.f32 %v1700, %v1712
    %v1730 = vsub.f32 %v1701, %v1717
    %v1731 = vsub.f32 %v1702, %v1722
    %v1732 = vsub.f32 %v1703, %v1727
    %1733 = vset.pattern.permute.xlu0 1
    %1734 = vperm.xlu0 %1733, %v1676
    %v1735 = vpop.permute.xlu0 %1734
    %1737 = vset.pattern.permute.xlu0 1
    %1738 = vperm.xlu0 %1737, %v1677
    %v1739 = vpop.permute.xlu0 %1738
    %1741 = vset.pattern.permute.xlu0 1
    %1742 = vperm.xlu0 %1741, %v1678
    %v1743 = vpop.permute.xlu0 %1742
    %1745 = vset.pattern.permute.xlu0 1
    %1746 = vperm.xlu0 %1745, %v1679
    %v1747 = vpop.permute.xlu0 %1746
    %v1749 = vmul.f32 %v21, %v1735
    %v1750 = vmul.f32 %v22, %v1739
    %v1751 = vmul.f32 %v23, %v1743
    %v1752 = vmul.f32 %v24, %v1747
    %1753 = vset.pattern.permute.xlu0 1
    %1754 = vperm.xlu0 %1753, %v1705
    %v1755 = vpop.permute.xlu0 %1754
    %1757 = vset.pattern.permute.xlu0 1
    %1758 = vperm.xlu0 %1757, %v1706
    %v1759 = vpop.permute.xlu0 %1758
    %1761 = vset.pattern.permute.xlu0 1
    %1762 = vperm.xlu0 %1761, %v1707
    %v1763 = vpop.permute.xlu0 %1762
    %1765 = vset.pattern.permute.xlu0 1
    %1766 = vperm.xlu0 %1765, %v1708
    %v1767 = vpop.permute.xlu0 %1766
    %v1769 = vsub.f32 %v1749, %v1755
    %v1770 = vsub.f32 %v1750, %v1759
    %v1771 = vsub.f32 %v1751, %v1763
    %v1772 = vsub.f32 %v1752, %v1767
    %v1773 = vmul.f32 %v1729, %v1223
    %v1774 = vmul.f32 %v1730, %v1224
    %v1775 = vmul.f32 %v1731, %v1225
    %v1776 = vmul.f32 %v1732, %v1226
    %v1777 = vsub.f32 1.0, %v1769
    %v1778 = vsub.f32 1.0, %v1770
    %v1779 = vsub.f32 1.0, %v1771
    %v1780 = vsub.f32 1.0, %v1772
    %v1781 = vmul.f32 %v1777, %v1279
    %v1782 = vmul.f32 %v1778, %v1280
    %v1783 = vmul.f32 %v1779, %v1281
    %v1784 = vmul.f32 %v1780, %v1282
    %v1785 = vadd.f32 %v1773, %v1781
    %v1786 = vadd.f32 %v1774, %v1782
    %v1787 = vadd.f32 %v1775, %v1783
    %v1788 = vadd.f32 %v1776, %v1784
    %1789 = vset.pattern.permute.xlu0 2
    %1790 = vperm.xlu0 %1789, %v1676
    %v1791 = vpop.permute.xlu0 %1790
    %1793 = vset.pattern.permute.xlu0 2
    %1794 = vperm.xlu0 %1793, %v1677
    %v1795 = vpop.permute.xlu0 %1794
    %1797 = vset.pattern.permute.xlu0 2
    %1798 = vperm.xlu0 %1797, %v1678
    %v1799 = vpop.permute.xlu0 %1798
    %1801 = vset.pattern.permute.xlu0 2
    %1802 = vperm.xlu0 %1801, %v1679
    %v1803 = vpop.permute.xlu0 %1802
    %v1805 = vmul.f32 %v21, %v1791
    %v1806 = vmul.f32 %v22, %v1795
    %v1807 = vmul.f32 %v23, %v1799
    %v1808 = vmul.f32 %v24, %v1803
    %1809 = vset.pattern.permute.xlu0 2
    %1810 = vperm.xlu0 %1809, %v1705
    %v1811 = vpop.permute.xlu0 %1810
    %1813 = vset.pattern.permute.xlu0 2
    %1814 = vperm.xlu0 %1813, %v1706
    %v1815 = vpop.permute.xlu0 %1814
    %1817 = vset.pattern.permute.xlu0 2
    %1818 = vperm.xlu0 %1817, %v1707
    %v1819 = vpop.permute.xlu0 %1818
    %1821 = vset.pattern.permute.xlu0 2
    %1822 = vperm.xlu0 %1821, %v1708
    %v1823 = vpop.permute.xlu0 %1822
    %v1825 = vsub.f32 %v1805, %v1811
    %v1826 = vsub.f32 %v1806, %v1815
    %v1827 = vsub.f32 %v1807, %v1819
    %v1828 = vsub.f32 %v1808, %v1823
    %v1829 = vmul.f32 %v1769, %v1279
    %v1830 = vmul.f32 %v1770, %v1280
    %v1831 = vmul.f32 %v1771, %v1281
    %v1832 = vmul.f32 %v1772, %v1282
    %v1833 = vsub.f32 1.0, %v1825
    %v1834 = vsub.f32 1.0, %v1826
    %v1835 = vsub.f32 1.0, %v1827
    %v1836 = vsub.f32 1.0, %v1828
    %v1837 = vmul.f32 %v1833, %v1335
    %v1838 = vmul.f32 %v1834, %v1336
    %v1839 = vmul.f32 %v1835, %v1337
    %v1840 = vmul.f32 %v1836, %v1338
    %v1841 = vadd.f32 %v1829, %v1837
    %v1842 = vadd.f32 %v1830, %v1838
    %v1843 = vadd.f32 %v1831, %v1839
    %v1844 = vadd.f32 %v1832, %v1840
    %1845 = vset.pattern.permute.xlu0 3
    %1846 = vperm.xlu0 %1845, %v1676
    %v1847 = vpop.permute.xlu0 %1846
    %1849 = vset.pattern.permute.xlu0 3
    %1850 = vperm.xlu0 %1849, %v1677
    %v1851 = vpop.permute.xlu0 %1850
    %1853 = vset.pattern.permute.xlu0 3
    %1854 = vperm.xlu0 %1853, %v1678
    %v1855 = vpop.permute.xlu0 %1854
    %1857 = vset.pattern.permute.xlu0 3
    %1858 = vperm.xlu0 %1857, %v1679
    %v1859 = vpop.permute.xlu0 %1858
    %v1861 = vmul.f32 %v21, %v1847
    %v1862 = vmul.f32 %v22, %v1851
    %v1863 = vmul.f32 %v23, %v1855
    %v1864 = vmul.f32 %v24, %v1859
    %1865 = vset.pattern.permute.xlu0 3
    %1866 = vperm.xlu0 %1865, %v1705
    %v1867 = vpop.permute.xlu0 %1866
    %1869 = vset.pattern.permute.xlu0 3
    %1870 = vperm.xlu0 %1869, %v1706
    %v1871 = vpop.permute.xlu0 %1870
    %1873 = vset.pattern.permute.xlu0 3
    %1874 = vperm.xlu0 %1873, %v1707
    %v1875 = vpop.permute.xlu0 %1874
    %1877 = vset.pattern.permute.xlu0 3
    %1878 = vperm.xlu0 %1877, %v1708
    %v1879 = vpop.permute.xlu0 %1878
    %v1881 = vsub.f32 %v1861, %v1867
    %v1882 = vsub.f32 %v1862, %v1871
    %v1883 = vsub.f32 %v1863, %v1875
    %v1884 = vsub.f32 %v1864, %v1879
    %v1885 = vmul.f32 %v1825, %v1335
    %v1886 = vmul.f32 %v1826, %v1336
    %v1887 = vmul.f32 %v1827, %v1337
    %v1888 = vmul.f32 %v1828, %v1338
    %v1889 = vsub.f32 1.0, %v1881
    %v1890 = vsub.f32 1.0, %v1882
    %v1891 = vsub.f32 1.0, %v1883
    %v1892 = vsub.f32 1.0, %v1884
    %v1893 = vmul.f32 %v1889, %v1391
    %v1894 = vmul.f32 %v1890, %v1392
    %v1895 = vmul.f32 %v1891, %v1393
    %v1896 = vmul.f32 %v1892, %v1394
    %v1897 = vadd.f32 %v1885, %v1893
    %v1898 = vadd.f32 %v1886, %v1894
    %v1899 = vadd.f32 %v1887, %v1895
    %v1900 = vadd.f32 %v1888, %v1896
    %1901 = vset.pattern.permute.xlu0 4
    %1902 = vperm.xlu0 %1901, %v1676
    %v1903 = vpop.permute.xlu0 %1902
    %1905 = vset.pattern.permute.xlu0 4
    %1906 = vperm.xlu0 %1905, %v1677
    %v1907 = vpop.permute.xlu0 %1906
    %1909 = vset.pattern.permute.xlu0 4
    %1910 = vperm.xlu0 %1909, %v1678
    %v1911 = vpop.permute.xlu0 %1910
    %1913 = vset.pattern.permute.xlu0 4
    %1914 = vperm.xlu0 %1913, %v1679
    %v1915 = vpop.permute.xlu0 %1914
    %v1917 = vmul.f32 %v21, %v1903
    %v1918 = vmul.f32 %v22, %v1907
    %v1919 = vmul.f32 %v23, %v1911
    %v1920 = vmul.f32 %v24, %v1915
    %1921 = vset.pattern.permute.xlu0 4
    %1922 = vperm.xlu0 %1921, %v1705
    %v1923 = vpop.permute.xlu0 %1922
    %1925 = vset.pattern.permute.xlu0 4
    %1926 = vperm.xlu0 %1925, %v1706
    %v1927 = vpop.permute.xlu0 %1926
    %1929 = vset.pattern.permute.xlu0 4
    %1930 = vperm.xlu0 %1929, %v1707
    %v1931 = vpop.permute.xlu0 %1930
    %1933 = vset.pattern.permute.xlu0 4
    %1934 = vperm.xlu0 %1933, %v1708
    %v1935 = vpop.permute.xlu0 %1934
    %v1937 = vsub.f32 %v1917, %v1923
    %v1938 = vsub.f32 %v1918, %v1927
    %v1939 = vsub.f32 %v1919, %v1931
    %v1940 = vsub.f32 %v1920, %v1935
    %v1941 = vmul.f32 %v1881, %v1391
    %v1942 = vmul.f32 %v1882, %v1392
    %v1943 = vmul.f32 %v1883, %v1393
    %v1944 = vmul.f32 %v1884, %v1394
    %v1945 = vsub.f32 1.0, %v1937
    %v1946 = vsub.f32 1.0, %v1938
    %v1947 = vsub.f32 1.0, %v1939
    %v1948 = vsub.f32 1.0, %v1940
    %v1949 = vmul.f32 %v1945, %v1447
    %v1950 = vmul.f32 %v1946, %v1448
    %v1951 = vmul.f32 %v1947, %v1449
    %v1952 = vmul.f32 %v1948, %v1450
    %v1953 = vadd.f32 %v1941, %v1949
    %v1954 = vadd.f32 %v1942, %v1950
    %v1955 = vadd.f32 %v1943, %v1951
    %v1956 = vadd.f32 %v1944, %v1952
    %1957 = vset.pattern.permute.xlu0 5
    %1958 = vperm.xlu0 %1957, %v1676
    %v1959 = vpop.permute.xlu0 %1958
    %1961 = vset.pattern.permute.xlu0 5
    %1962 = vperm.xlu0 %1961, %v1677
    %v1963 = vpop.permute.xlu0 %1962
    %1965 = vset.pattern.permute.xlu0 5
    %1966 = vperm.xlu0 %1965, %v1678
    %v1967 = vpop.permute.xlu0 %1966
    %1969 = vset.pattern.permute.xlu0 5
    %1970 = vperm.xlu0 %1969, %v1679
    %v1971 = vpop.permute.xlu0 %1970
    %v1973 = vmul.f32 %v21, %v1959
    %v1974 = vmul.f32 %v22, %v1963
    %v1975 = vmul.f32 %v23, %v1967
    %v1976 = vmul.f32 %v24, %v1971
    %1977 = vset.pattern.permute.xlu0 5
    %1978 = vperm.xlu0 %1977, %v1705
    %v1979 = vpop.permute.xlu0 %1978
    %1981 = vset.pattern.permute.xlu0 5
    %1982 = vperm.xlu0 %1981, %v1706
    %v1983 = vpop.permute.xlu0 %1982
    %1985 = vset.pattern.permute.xlu0 5
    %1986 = vperm.xlu0 %1985, %v1707
    %v1987 = vpop.permute.xlu0 %1986
    %1989 = vset.pattern.permute.xlu0 5
    %1990 = vperm.xlu0 %1989, %v1708
    %v1991 = vpop.permute.xlu0 %1990
    %v1993 = vsub.f32 %v1973, %v1979
    %v1994 = vsub.f32 %v1974, %v1983
    %v1995 = vsub.f32 %v1975, %v1987
    %v1996 = vsub.f32 %v1976, %v1991
    %v1997 = vmul.f32 %v1937, %v1447
    %v1998 = vmul.f32 %v1938, %v1448
    %v1999 = vmul.f32 %v1939, %v1449
    %v2000 = vmul.f32 %v1940, %v1450
    %v2001 = vsub.f32 1.0, %v1993
    %v2002 = vsub.f32 1.0, %v1994
    %v2003 = vsub.f32 1.0, %v1995
    %v2004 = vsub.f32 1.0, %v1996
    %v2005 = vmul.f32 %v2001, %v1503
    %v2006 = vmul.f32 %v2002, %v1504
    %v2007 = vmul.f32 %v2003, %v1505
    %v2008 = vmul.f32 %v2004, %v1506
    %v2009 = vadd.f32 %v1997, %v2005
    %v2010 = vadd.f32 %v1998, %v2006
    %v2011 = vadd.f32 %v1999, %v2007
    %v2012 = vadd.f32 %v2000, %v2008
    %2013 = vset.pattern.permute.xlu0 6
    %2014 = vperm.xlu0 %2013, %v1676
    %v2015 = vpop.permute.xlu0 %2014
    %2017 = vset.pattern.permute.xlu0 6
    %2018 = vperm.xlu0 %2017, %v1677
    %v2019 = vpop.permute.xlu0 %2018
    %2021 = vset.pattern.permute.xlu0 6
    %2022 = vperm.xlu0 %2021, %v1678
    %v2023 = vpop.permute.xlu0 %2022
    %2025 = vset.pattern.permute.xlu0 6
    %2026 = vperm.xlu0 %2025, %v1679
    %v2027 = vpop.permute.xlu0 %2026
    %v2029 = vmul.f32 %v21, %v2015
    %v2030 = vmul.f32 %v22, %v2019
    %v2031 = vmul.f32 %v23, %v2023
    %v2032 = vmul.f32 %v24, %v2027
    %2033 = vset.pattern.permute.xlu0 6
    %2034 = vperm.xlu0 %2033, %v1705
    %v2035 = vpop.permute.xlu0 %2034
    %2037 = vset.pattern.permute.xlu0 6
    %2038 = vperm.xlu0 %2037, %v1706
    %v2039 = vpop.permute.xlu0 %2038
    %2041 = vset.pattern.permute.xlu0 6
    %2042 = vperm.xlu0 %2041, %v1707
    %v2043 = vpop.permute.xlu0 %2042
    %2045 = vset.pattern.permute.xlu0 6
    %2046 = vperm.xlu0 %2045, %v1708
    %v2047 = vpop.permute.xlu0 %2046
    %v2049 = vsub.f32 %v2029, %v2035
    %v2050 = vsub.f32 %v2030, %v2039
    %v2051 = vsub.f32 %v2031, %v2043
    %v2052 = vsub.f32 %v2032, %v2047
    %v2053 = vmul.f32 %v1993, %v1503
    %v2054 = vmul.f32 %v1994, %v1504
    %v2055 = vmul.f32 %v1995, %v1505
    %v2056 = vmul.f32 %v1996, %v1506
    %v2057 = vsub.f32 1.0, %v2049
    %v2058 = vsub.f32 1.0, %v2050
    %v2059 = vsub.f32 1.0, %v2051
    %v2060 = vsub.f32 1.0, %v2052
    %v2061 = vmul.f32 %v2057, %v1559
    %v2062 = vmul.f32 %v2058, %v1560
    %v2063 = vmul.f32 %v2059, %v1561
    %v2064 = vmul.f32 %v2060, %v1562
    %v2065 = vadd.f32 %v2053, %v2061
    %v2066 = vadd.f32 %v2054, %v2062
    %v2067 = vadd.f32 %v2055, %v2063
    %v2068 = vadd.f32 %v2056, %v2064
    %2069 = vset.pattern.permute.xlu0 7
    %2070 = vperm.xlu0 %2069, %v1676
    %v2071 = vpop.permute.xlu0 %2070
    %2073 = vset.pattern.permute.xlu0 7
    %2074 = vperm.xlu0 %2073, %v1677
    %v2075 = vpop.permute.xlu0 %2074
    %2077 = vset.pattern.permute.xlu0 7
    %2078 = vperm.xlu0 %2077, %v1678
    %v2079 = vpop.permute.xlu0 %2078
    %2081 = vset.pattern.permute.xlu0 7
    %2082 = vperm.xlu0 %2081, %v1679
    %v2083 = vpop.permute.xlu0 %2082
    %v2085 = vmul.f32 %v21, %v2071
    %v2086 = vmul.f32 %v22, %v2075
    %v2087 = vmul.f32 %v23, %v2079
    %v2088 = vmul.f32 %v24, %v2083
    %2089 = vset.pattern.permute.xlu0 7
    %2090 = vperm.xlu0 %2089, %v1705
    %v2091 = vpop.permute.xlu0 %2090
    %2093 = vset.pattern.permute.xlu0 7
    %2094 = vperm.xlu0 %2093, %v1706
    %v2095 = vpop.permute.xlu0 %2094
    %2097 = vset.pattern.permute.xlu0 7
    %2098 = vperm.xlu0 %2097, %v1707
    %v2099 = vpop.permute.xlu0 %2098
    %2101 = vset.pattern.permute.xlu0 7
    %2102 = vperm.xlu0 %2101, %v1708
    %v2103 = vpop.permute.xlu0 %2102
    %v2105 = vsub.f32 %v2085, %v2091
    %v2106 = vsub.f32 %v2086, %v2095
    %v2107 = vsub.f32 %v2087, %v2099
    %v2108 = vsub.f32 %v2088, %v2103
    %v2109 = vmul.f32 %v2049, %v1559
    %v2110 = vmul.f32 %v2050, %v1560
    %v2111 = vmul.f32 %v2051, %v1561
    %v2112 = vmul.f32 %v2052, %v1562
    %v2113 = vsub.f32 1.0, %v2105
    %v2114 = vsub.f32 1.0, %v2106
    %v2115 = vsub.f32 1.0, %v2107
    %v2116 = vsub.f32 1.0, %v2108
    %v2117 = vmul.f32 %v2113, %v1615
    %v2118 = vmul.f32 %v2114, %v1616
    %v2119 = vmul.f32 %v2115, %v1617
    %v2120 = vmul.f32 %v2116, %v1618
    %v2121 = vadd.f32 %v2109, %v2117
    %v2122 = vadd.f32 %v2110, %v2118
    %v2123 = vadd.f32 %v2111, %v2119
    %v2124 = vadd.f32 %v2112, %v2120
    %2125 = vset.pattern.permute.xlu0 8
    %2126 = vperm.xlu0 %2125, %v1676
    %v2127 = vpop.permute.xlu0 %2126
    %2129 = vset.pattern.permute.xlu0 8
    %2130 = vperm.xlu0 %2129, %v1677
    %v2131 = vpop.permute.xlu0 %2130
    %2133 = vset.pattern.permute.xlu0 8
    %2134 = vperm.xlu0 %2133, %v1678
    %v2135 = vpop.permute.xlu0 %2134
    %2137 = vset.pattern.permute.xlu0 8
    %2138 = vperm.xlu0 %2137, %v1679
    %v2139 = vpop.permute.xlu0 %2138
    %v2141 = vmul.f32 %v21, %v2127
    %v2142 = vmul.f32 %v22, %v2131
    %v2143 = vmul.f32 %v23, %v2135
    %v2144 = vmul.f32 %v24, %v2139
    %2145 = vset.pattern.permute.xlu0 8
    %2146 = vperm.xlu0 %2145, %v1705
    %v2147 = vpop.permute.xlu0 %2146
    %2149 = vset.pattern.permute.xlu0 8
    %2150 = vperm.xlu0 %2149, %v1706
    %v2151 = vpop.permute.xlu0 %2150
    %2153 = vset.pattern.permute.xlu0 8
    %2154 = vperm.xlu0 %2153, %v1707
    %v2155 = vpop.permute.xlu0 %2154
    %2157 = vset.pattern.permute.xlu0 8
    %2158 = vperm.xlu0 %2157, %v1708
    %v2159 = vpop.permute.xlu0 %2158
    %v2161 = vsub.f32 %v2141, %v2147
    %v2162 = vsub.f32 %v2142, %v2151
    %v2163 = vsub.f32 %v2143, %v2155
    %v2164 = vsub.f32 %v2144, %v2159
    %v2165 = vmul.f32 %v2105, %v1615
    %v2166 = vmul.f32 %v2106, %v1616
    %v2167 = vmul.f32 %v2107, %v1617
    %v2168 = vmul.f32 %v2108, %v1618
    %v2169 = vsub.f32 1.0, %v2161
    %v2170 = vsub.f32 1.0, %v2162
    %v2171 = vsub.f32 1.0, %v2163
    %v2172 = vsub.f32 1.0, %v2164
    %v2173 = vmul.f32 %v2169, %v1671
    %v2174 = vmul.f32 %v2170, %v1672
    %v2175 = vmul.f32 %v2171, %v1673
    %v2176 = vmul.f32 %v2172, %v1674
    %v2177 = vadd.f32 %v2165, %v2173
    %v2178 = vadd.f32 %v2166, %v2174
    %v2179 = vadd.f32 %v2167, %v2175
    %v2180 = vadd.f32 %v2168, %v2176
    %2181 = vst [vmem:[#allocation2 + $0x20] sm:$0xff] %v1785
    %2182 = vst [vmem:[#allocation2 + $0x28] sm:$0xff] %v1786
    %2183 = vst [vmem:[#allocation2 + $0x30] sm:$0xff] %v1787
    %2184 = vst [vmem:[#allocation2 + $0x38] sm:$0xff] %v1788
    %2185 = vst [vmem:[#allocation2 + $0x40] sm:$0xff] %v1841
    %2186 = vst [vmem:[#allocation2 + $0x48] sm:$0xff] %v1842
    %2187 = vst [vmem:[#allocation2 + $0x50] sm:$0xff] %v1843
    %2188 = vst [vmem:[#allocation2 + $0x58] sm:$0xff] %v1844
    %2189 = vst [vmem:[#allocation2 + $0x60] sm:$0xff] %v1897
    %2190 = vst [vmem:[#allocation2 + $0x68] sm:$0xff] %v1898
    %2191 = vst [vmem:[#allocation2 + $0x70] sm:$0xff] %v1899
    %2192 = vst [vmem:[#allocation2 + $0x78] sm:$0xff] %v1900
    %2193 = vst [vmem:[#allocation2 + $0x80] sm:$0xff] %v1953
    %2194 = vst [vmem:[#allocation2 + $0x88] sm:$0xff] %v1954
    %2195 = vst [vmem:[#allocation2 + $0x90] sm:$0xff] %v1955
    %2196 = vst [vmem:[#allocation2 + $0x98] sm:$0xff] %v1956
    %2197 = vst [vmem:[#allocation2 + $0xa0] sm:$0xff] %v2009
    %2198 = vst [vmem:[#allocation2 + $0xa8] sm:$0xff] %v2010
    %2199 = vst [vmem:[#allocation2 + $0xb0] sm:$0xff] %v2011
    %2200 = vst [vmem:[#allocation2 + $0xb8] sm:$0xff] %v2012
    %2201 = vst [vmem:[#allocation2 + $0xc0] sm:$0xff] %v2065
    %2202 = vst [vmem:[#allocation2 + $0xc8] sm:$0xff] %v2066
    %2203 = vst [vmem:[#allocation2 + $0xd0] sm:$0xff] %v2067
    %2204 = vst [vmem:[#allocation2 + $0xd8] sm:$0xff] %v2068
    %2205 = vst [vmem:[#allocation2 + $0xe0] sm:$0xff] %v2121
    %2206 = vst [vmem:[#allocation2 + $0xe8] sm:$0xff] %v2122
    %2207 = vst [vmem:[#allocation2 + $0xf0] sm:$0xff] %v2123
    %2208 = vst [vmem:[#allocation2 + $0xf8] sm:$0xff] %v2124
    %2209 = vst [vmem:[#allocation2 + $0x100] sm:$0xff] %v2177
    %2210 = vst [vmem:[#allocation2 + $0x108] sm:$0xff] %v2178
    %2211 = vst [vmem:[#allocation2 + $0x110] sm:$0xff] %v2179
    %2212 = vst [vmem:[#allocation2 + $0x118] sm:$0xff] %v2180
    %v2213 = vld [vmem:[%s4] sm:$0xff]
    %v2214 = vld [vmem:[%s4 + $0x8] sm:$0xff]
    %v2215 = vld [vmem:[%s4 + $0x10] sm:$0xff]
    %v2216 = vld [vmem:[%s4 + $0x18] sm:$0xff]
    %v2217 = vld [vmem:[%s4 + $0x20] sm:$0xff]
    %v2218 = vld [vmem:[%s4 + $0x28] sm:$0xff]
    %v2219 = vld [vmem:[%s4 + $0x30] sm:$0xff]
    %v2220 = vld [vmem:[%s4 + $0x38] sm:$0xff]
    %v2221 = vld [vmem:[%s4 + $0x40] sm:$0xff]
    %v2222 = vld [vmem:[%s4 + $0x48] sm:$0xff]
    %v2223 = vld [vmem:[%s4 + $0x50] sm:$0xff]
    %v2224 = vld [vmem:[%s4 + $0x58] sm:$0xff]
    %v2225 = vld [vmem:[%s4 + $0x60] sm:$0xff]
    %v2226 = vld [vmem:[%s4 + $0x68] sm:$0xff]
    %v2227 = vld [vmem:[%s4 + $0x70] sm:$0xff]
    %v2228 = vld [vmem:[%s4 + $0x78] sm:$0xff]
    %v2229 = vld [vmem:[%s4 + $0x80] sm:$0xff]
    %v2230 = vld [vmem:[%s4 + $0x88] sm:$0xff]
    %v2231 = vld [vmem:[%s4 + $0x90] sm:$0xff]
    %v2232 = vld [vmem:[%s4 + $0x98] sm:$0xff]
    %v2233 = vld [vmem:[%s4 + $0xa0] sm:$0xff]
    %v2234 = vld [vmem:[%s4 + $0xa8] sm:$0xff]
    %v2235 = vld [vmem:[%s4 + $0xb0] sm:$0xff]
    %v2236 = vld [vmem:[%s4 + $0xb8] sm:$0xff]
    %v2237 = vld [vmem:[%s4 + $0xc0] sm:$0xff]
    %v2238 = vld [vmem:[%s4 + $0xc8] sm:$0xff]
    %v2239 = vld [vmem:[%s4 + $0xd0] sm:$0xff]
    %v2240 = vld [vmem:[%s4 + $0xd8] sm:$0xff]
    %v2241 = vld [vmem:[%s4 + $0xe0] sm:$0xff]
    %v2242 = vld [vmem:[%s4 + $0xe8] sm:$0xff]
    %v2243 = vld [vmem:[%s4 + $0xf0] sm:$0xff]
    %v2244 = vld [vmem:[%s4 + $0xf8] sm:$0xff]
    %v2245 = vld [vmem:[%s4 + $0x100] sm:$0xff]
    %v2246 = vld [vmem:[%s4 + $0x108] sm:$0xff]
    %v2247 = vld [vmem:[%s4 + $0x110] sm:$0xff]
    %v2248 = vld [vmem:[%s4 + $0x118] sm:$0xff]
    %v2249 = vld [vmem:[%s4 + $0x120] sm:$0xff]
    %v2250 = vld [vmem:[%s4 + $0x128] sm:$0xff]
    %v2251 = vld [vmem:[%s4 + $0x130] sm:$0xff]
    %v2252 = vld [vmem:[%s4 + $0x138] sm:$0xff]
    %v2253 = vld [vmem:[%s4 + $0x140] sm:$0xff]
    %v2254 = vld [vmem:[%s4 + $0x148] sm:$0xff]
    %v2255 = vld [vmem:[%s4 + $0x150] sm:$0xff]
    %v2256 = vld [vmem:[%s4 + $0x158] sm:$0xff]
    %v2257 = vld [vmem:[%s4 + $0x160] sm:$0xff]
    %v2258 = vld [vmem:[%s4 + $0x168] sm:$0xff]
    %v2259 = vld [vmem:[%s4 + $0x170] sm:$0xff]
    %v2260 = vld [vmem:[%s4 + $0x178] sm:$0xff]
    %v2261 = vld [vmem:[#allocation2] sm:$0xff]
    %v2262 = vld [vmem:[#allocation2 + $0x8] sm:$0xff]
    %v2263 = vld [vmem:[#allocation2 + $0x10] sm:$0xff]
    %v2264 = vld [vmem:[#allocation2 + $0x18] sm:$0xff]
    %v2265 = vld [vmem:[#allocation2 + $0x20] sm:$0xff]
    %v2266 = vld [vmem:[#allocation2 + $0x28] sm:$0xff]
    %v2267 = vld [vmem:[#allocation2 + $0x30] sm:$0xff]
    %v2268 = vld [vmem:[#allocation2 + $0x38] sm:$0xff]
    %v2269 = vld [vmem:[#allocation2 + $0x40] sm:$0xff]
    %v2270 = vld [vmem:[#allocation2 + $0x48] sm:$0xff]
    %v2271 = vld [vmem:[#allocation2 + $0x50] sm:$0xff]
    %v2272 = vld [vmem:[#allocation2 + $0x58] sm:$0xff]
    %v2273 = vld [vmem:[#allocation2 + $0x60] sm:$0xff]
    %v2274 = vld [vmem:[#allocation2 + $0x68] sm:$0xff]
    %v2275 = vld [vmem:[#allocation2 + $0x70] sm:$0xff]
    %v2276 = vld [vmem:[#allocation2 + $0x78] sm:$0xff]
    %v2277 = vld [vmem:[#allocation2 + $0x80] sm:$0xff]
    %v2278 = vld [vmem:[#allocation2 + $0x88] sm:$0xff]
    %v2279 = vld [vmem:[#allocation2 + $0x90] sm:$0xff]
    %v2280 = vld [vmem:[#allocation2 + $0x98] sm:$0xff]
    %v2281 = vld [vmem:[#allocation2 + $0xa0] sm:$0xff]
    %v2282 = vld [vmem:[#allocation2 + $0xa8] sm:$0xff]
    %v2283 = vld [vmem:[#allocation2 + $0xb0] sm:$0xff]
    %v2284 = vld [vmem:[#allocation2 + $0xb8] sm:$0xff]
    %v2285 = vld [vmem:[#allocation2 + $0xc0] sm:$0xff]
    %v2286 = vld [vmem:[#allocation2 + $0xc8] sm:$0xff]
    %v2287 = vld [vmem:[#allocation2 + $0xd0] sm:$0xff]
    %v2288 = vld [vmem:[#allocation2 + $0xd8] sm:$0xff]
    %v2289 = vld [vmem:[#allocation2 + $0xe0] sm:$0xff]
    %v2290 = vld [vmem:[#allocation2 + $0xe8] sm:$0xff]
    %v2291 = vld [vmem:[#allocation2 + $0xf0] sm:$0xff]
    %v2292 = vld [vmem:[#allocation2 + $0xf8] sm:$0xff]
    %v2293 = vld [vmem:[#allocation2 + $0x100] sm:$0xff]
    %v2294 = vld [vmem:[#allocation2 + $0x108] sm:$0xff]
    %v2295 = vld [vmem:[#allocation2 + $0x110] sm:$0xff]
    %v2296 = vld [vmem:[#allocation2 + $0x118] sm:$0xff]
    %vm2297 = vcmask 261120
    %v2299 = vsel %vm2297, %v2215, 0
    %v2302 = vsel %vm2297, %v2218, 0
    %v2305 = vsel %vm2297, %v2221, 0
    %v2308 = vsel %vm2297, %v2224, 0
    %v2311 = vsel %vm2297, %v2227, 0
    %v2314 = vsel %vm2297, %v2230, 0
    %v2317 = vsel %vm2297, %v2233, 0
    %v2320 = vsel %vm2297, %v2236, 0
    %v2323 = vsel %vm2297, %v2239, 0
    %v2326 = vsel %vm2297, %v2242, 0
    %v2329 = vsel %vm2297, %v2245, 0
    %v2332 = vsel %vm2297, %v2248, 0
    %v2335 = vsel %vm2297, %v2251, 0
    %v2338 = vsel %vm2297, %v2254, 0
    %v2341 = vsel %vm2297, %v2257, 0
    %v2344 = vsel %vm2297, %v2260, 0
    %2346 = vmatpush.msra.mxu0 %v2276
    %2347 = vmatpush.msra.mxu0 %v2275
    %2348 = vmatpush.msra.mxu0 %v2274
    %2349 = vmatpush.msra.mxu0 %v2273
    %2350 = vmatpush.msra.mxu0 %v2272
    %2351 = vmatpush.msra.mxu0 %v2271
    %2352 = vmatpush.msra.mxu0 %v2270
    %2353 = vmatpush.msra.mxu0 %v2269
    %2354 = vmatpush.msra.mxu0 %v2268
    %2355 = vmatpush.msra.mxu0 %v2267
    %2356 = vmatpush.msra.mxu0 %v2266
    %2357 = vmatpush.msra.mxu0 %v2265
    %2358 = vmatpush.msra.mxu0 %v2264
    %2359 = vmatpush.msra.mxu0 %v2263
    %2360 = vmatpush.msra.mxu0 %v2262
    %2361 = vmatpush.msra.mxu0 %v2261
    %2362 = vmatmul.f32.gmra.mxu0 %v2213
    %v2363 = vpop.f32.mrf.mxu0
    %v2364 = vadd.f32 0.0, %v2363
    %2365 = vmatmul.f32.gmra.mxu0 %v2216
    %v2366 = vpop.f32.mrf.mxu0
    %v2367 = vadd.f32 0.0, %v2366
    %2368 = vmatmul.f32.gmra.mxu0 %v2219
    %v2369 = vpop.f32.mrf.mxu0
    %v2370 = vadd.f32 0.0, %v2369
    %2371 = vmatmul.f32.gmra.mxu0 %v2222
    %v2372 = vpop.f32.mrf.mxu0
    %v2373 = vadd.f32 0.0, %v2372
    %2374 = vmatmul.f32.gmra.mxu0 %v2225
    %v2375 = vpop.f32.mrf.mxu0
    %v2376 = vadd.f32 0.0, %v2375
    %2377 = vmatmul.f32.gmra.mxu0 %v2228
    %v2378 = vpop.f32.mrf.mxu0
    %v2379 = vadd.f32 0.0, %v2378
    %2380 = vmatmul.f32.gmra.mxu0 %v2231
    %v2381 = vpop.f32.mrf.mxu0
    %v2382 = vadd.f32 0.0, %v2381
    %2383 = vmatmul.f32.gmra.mxu0 %v2234
    %v2384 = vpop.f32.mrf.mxu0
    %v2385 = vadd.f32 0.0, %v2384
    %2386 = vmatmul.f32.gmra.mxu0 %v2237
    %v2387 = vpop.f32.mrf.mxu0
    %v2388 = vadd.f32 0.0, %v2387
    %2389 = vmatmul.f32.gmra.mxu0 %v2240
    %v2390 = vpop.f32.mrf.mxu0
    %v2391 = vadd.f32 0.0, %v2390
    %2392 = vmatmul.f32.gmra.mxu0 %v2243
    %v2393 = vpop.f32.mrf.mxu0
    %v2394 = vadd.f32 0.0, %v2393
    %2395 = vmatmul.f32.gmra.mxu0 %v2246
    %v2396 = vpop.f32.mrf.mxu0
    %v2397 = vadd.f32 0.0, %v2396
    %2398 = vmatmul.f32.gmra.mxu0 %v2249
    %v2399 = vpop.f32.mrf.mxu0
    %v2400 = vadd.f32 0.0, %v2399
    %2401 = vmatmul.f32.gmra.mxu0 %v2252
    %v2402 = vpop.f32.mrf.mxu0
    %v2403 = vadd.f32 0.0, %v2402
    %2404 = vmatmul.f32.gmra.mxu0 %v2255
    %v2405 = vpop.f32.mrf.mxu0
    %v2406 = vadd.f32 0.0, %v2405
    %2407 = vmatmul.f32.gmra.mxu0 %v2258
    %v2408 = vpop.f32.mrf.mxu0
    %v2409 = vadd.f32 0.0, %v2408
    %2410 = vdwg.mxu0
    %2411 = vmatpush.msra.mxu0 %v2292
    %2412 = vmatpush.msra.mxu0 %v2291
    %2413 = vmatpush.msra.mxu0 %v2290
    %2414 = vmatpush.msra.mxu0 %v2289
    %2415 = vmatpush.msra.mxu0 %v2288
    %2416 = vmatpush.msra.mxu0 %v2287
    %2417 = vmatpush.msra.mxu0 %v2286
    %2418 = vmatpush.msra.mxu0 %v2285
    %2419 = vmatpush.msra.mxu0 %v2284
    %2420 = vmatpush.msra.mxu0 %v2283
    %2421 = vmatpush.msra.mxu0 %v2282
    %2422 = vmatpush.msra.mxu0 %v2281
    %2423 = vmatpush.msra.mxu0 %v2280
    %2424 = vmatpush.msra.mxu0 %v2279
    %2425 = vmatpush.msra.mxu0 %v2278
    %2426 = vmatpush.msra.mxu0 %v2277
    %2427 = vmatmul.f32.gmra.mxu0 %v2214
    %v2428 = vpop.f32.mrf.mxu0
    %v2429 = vadd.f32 %v2364, %v2428
    %2430 = vmatmul.f32.gmra.mxu0 %v2217
    %v2431 = vpop.f32.mrf.mxu0
    %v2432 = vadd.f32 %v2367, %v2431
    %2433 = vmatmul.f32.gmra.mxu0 %v2220
    %v2434 = vpop.f32.mrf.mxu0
    %v2435 = vadd.f32 %v2370, %v2434
    %2436 = vmatmul.f32.gmra.mxu0 %v2223
    %v2437 = vpop.f32.mrf.mxu0
    %v2438 = vadd.f32 %v2373, %v2437
    %2439 = vmatmul.f32.gmra.mxu0 %v2226
    %v2440 = vpop.f32.mrf.mxu0
    %v2441 = vadd.f32 %v2376, %v2440
    %2442 = vmatmul.f32.gmra.mxu0 %v2229
    %v2443 = vpop.f32.mrf.mxu0
    %v2444 = vadd.f32 %v2379, %v2443
    %2445 = vmatmul.f32.gmra.mxu0 %v2232
    %v2446 = vpop.f32.mrf.mxu0
    %v2447 = vadd.f32 %v2382, %v2446
    %2448 = vmatmul.f32.gmra.mxu0 %v2235
    %v2449 = vpop.f32.mrf.mxu0
    %v2450 = vadd.f32 %v2385, %v2449
    %2451 = vmatmul.f32.gmra.mxu0 %v2238
    %v2452 = vpop.f32.mrf.mxu0
    %v2453 = vadd.f32 %v2388, %v2452
    %2454 = vmatmul.f32.gmra.mxu0 %v2241
    %v2455 = vpop.f32.mrf.mxu0
    %v2456 = vadd.f32 %v2391, %v2455
    %2457 = vmatmul.f32.gmra.mxu0 %v2244
    %v2458 = vpop.f32.mrf.mxu0
    %v2459 = vadd.f32 %v2394, %v2458
    %2460 = vmatmul.f32.gmra.mxu0 %v2247
    %v2461 = vpop.f32.mrf.mxu0
    %v2462 = vadd.f32 %v2397, %v2461
    %2463 = vmatmul.f32.gmra.mxu0 %v2250
    %v2464 = vpop.f32.mrf.mxu0
    %v2465 = vadd.f32 %v2400, %v2464
    %2466 = vmatmul.f32.gmra.mxu0 %v2253
    %v2467 = vpop.f32.mrf.mxu0
    %v2468 = vadd.f32 %v2403, %v2467
    %2469 = vmatmul.f32.gmra.mxu0 %v2256
    %v2470 = vpop.f32.mrf.mxu0
    %v2471 = vadd.f32 %v2406, %v2470
    %2472 = vmatmul.f32.gmra.mxu0 %v2259
    %v2473 = vpop.f32.mrf.mxu0
    %v2474 = vadd.f32 %v2409, %v2473
    %2475 = vdwg.mxu0
    %2476 = vmatpush.msra.mxu0 0.0
    %2477 = vmatpush.msra.mxu0 0.0
    %2478 = vmatpush.msra.mxu0 0.0
    %2479 = vmatpush.msra.mxu0 0.0
    %2480 = vmatpush.msra.mxu0 0.0
    %2481 = vmatpush.msra.mxu0 0.0
    %2482 = vmatpush.msra.mxu0 0.0
    %2483 = vmatpush.msra.mxu0 0.0
    %2484 = vmatpush.msra.mxu0 0.0
    %2485 = vmatpush.msra.mxu0 0.0
    %2486 = vmatpush.msra.mxu0 0.0
    %2487 = vmatpush.msra.mxu0 0.0
    %2488 = vmatpush.msra.mxu0 %v2296
    %2489 = vmatpush.msra.mxu0 %v2295
    %2490 = vmatpush.msra.mxu0 %v2294
    %2491 = vmatpush.msra.mxu0 %v2293
    %2492 = vmatmul.f32.gmra.mxu0 %v2299
    %v2493 = vpop.f32.mrf.mxu0
    %v2494 = vadd.f32 %v2429, %v2493
    %2495 = vmatmul.f32.gmra.mxu0 %v2302
    %v2496 = vpop.f32.mrf.mxu0
    %v2497 = vadd.f32 %v2432, %v2496
    %2498 = vmatmul.f32.gmra.mxu0 %v2305
    %v2499 = vpop.f32.mrf.mxu0
    %v2500 = vadd.f32 %v2435, %v2499
    %2501 = vmatmul.f32.gmra.mxu0 %v2308
    %v2502 = vpop.f32.mrf.mxu0
    %v2503 = vadd.f32 %v2438, %v2502
    %2504 = vmatmul.f32.gmra.mxu0 %v2311
    %v2505 = vpop.f32.mrf.mxu0
    %v2506 = vadd.f32 %v2441, %v2505
    %2507 = vmatmul.f32.gmra.mxu0 %v2314
    %v2508 = vpop.f32.mrf.mxu0
    %v2509 = vadd.f32 %v2444, %v2508
    %2510 = vmatmul.f32.gmra.mxu0 %v2317
    %v2511 = vpop.f32.mrf.mxu0
    %v2512 = vadd.f32 %v2447, %v2511
    %2513 = vmatmul.f32.gmra.mxu0 %v2320
    %v2514 = vpop.f32.mrf.mxu0
    %v2515 = vadd.f32 %v2450, %v2514
    %2516 = vmatmul.f32.gmra.mxu0 %v2323
    %v2517 = vpop.f32.mrf.mxu0
    %v2518 = vadd.f32 %v2453, %v2517
    %2519 = vmatmul.f32.gmra.mxu0 %v2326
    %v2520 = vpop.f32.mrf.mxu0
    %v2521 = vadd.f32 %v2456, %v2520
    %2522 = vmatmul.f32.gmra.mxu0 %v2329
    %v2523 = vpop.f32.mrf.mxu0
    %v2524 = vadd.f32 %v2459, %v2523
    %2525 = vmatmul.f32.gmra.mxu0 %v2332
    %v2526 = vpop.f32.mrf.mxu0
    %v2527 = vadd.f32 %v2462, %v2526
    %2528 = vmatmul.f32.gmra.mxu0 %v2335
    %v2529 = vpop.f32.mrf.mxu0
    %v2530 = vadd.f32 %v2465, %v2529
    %2531 = vmatmul.f32.gmra.mxu0 %v2338
    %v2532 = vpop.f32.mrf.mxu0
    %v2533 = vadd.f32 %v2468, %v2532
    %2534 = vmatmul.f32.gmra.mxu0 %v2341
    %v2535 = vpop.f32.mrf.mxu0
    %v2536 = vadd.f32 %v2471, %v2535
    %2537 = vmatmul.f32.gmra.mxu0 %v2344
    %v2538 = vpop.f32.mrf.mxu0
    %v2539 = vadd.f32 %v2474, %v2538
    %2540 = vdwg.mxu0
    %2541 = vxpose.xlu0.b32.start [1/16] %v2494, 128
    %2542 = vxpose.xlu0.b32.cont [2/16] %v2497, 128
    %2543 = vxpose.xlu0.b32.cont [3/16] %v2500, 128
    %2544 = vxpose.xlu0.b32.cont [4/16] %v2503, 128
    %2545 = vxpose.xlu0.b32.cont [5/16] %v2506, 128
    %2546 = vxpose.xlu0.b32.cont [6/16] %v2509, 128
    %2547 = vxpose.xlu0.b32.cont [7/16] %v2512, 128
    %2548 = vxpose.xlu0.b32.cont [8/16] %v2515, 128
    %2549 = vxpose.xlu0.b32.cont [9/16] %v2518, 128
    %2550 = vxpose.xlu0.b32.cont [10/16] %v2521, 128
    %2551 = vxpose.xlu0.b32.cont [11/16] %v2524, 128
    %2552 = vxpose.xlu0.b32.cont [12/16] %v2527, 128
    %2553 = vxpose.xlu0.b32.cont [13/16] %v2530, 128
    %2554 = vxpose.xlu0.b32.cont [14/16] %v2533, 128
    %2555 = vxpose.xlu0.b32.cont [15/16] %v2536, 128
    %2556 = vxpose.xlu0.b32.end [16/16] %v2539, 128
    %v2557 = vpop.trf.xlu0
    %v2558 = vpop.trf.xlu0
    %v2559 = vpop.trf.xlu0
    %v2560 = vpop.trf.xlu0
    %v2561 = vpop.trf.xlu0
    %v2562 = vpop.trf.xlu0
    %v2563 = vpop.trf.xlu0
    %v2564 = vpop.trf.xlu0
    %v2565 = vpop.trf.xlu0
    %v2566 = vpop.trf.xlu0
    %v2567 = vpop.trf.xlu0
    %v2568 = vpop.trf.xlu0
    %v2569 = vpop.trf.xlu0
    %v2570 = vpop.trf.xlu0
    %v2571 = vpop.trf.xlu0
    %v2572 = vpop.trf.xlu0
    %2573 = vst [vmem:[#allocation3] sm:$0xff] %v2557
    %2574 = vst [vmem:[#allocation3 + $0x8] sm:$0xff] %v2558
    %2575 = vst [vmem:[#allocation3 + $0x10] sm:$0xff] %v2559
    %2576 = vst [vmem:[#allocation3 + $0x18] sm:$0xff] %v2560
    %2577 = vst [vmem:[#allocation3 + $0x20] sm:$0xff] %v2561
    %2578 = vst [vmem:[#allocation3 + $0x28] sm:$0xff] %v2562
    %2579 = vst [vmem:[#allocation3 + $0x30] sm:$0xff] %v2563
    %2580 = vst [vmem:[#allocation3 + $0x38] sm:$0xff] %v2564
    %2581 = vst [vmem:[#allocation3 + $0x40] sm:$0xff] %v2565
    %2582 = vst [vmem:[#allocation3 + $0x48] sm:$0xff] %v2566
    %2583 = vst [vmem:[#allocation3 + $0x50] sm:$0xff] %v2567
    %2584 = vst [vmem:[#allocation3 + $0x58] sm:$0xff] %v2568
    %2585 = vst [vmem:[#allocation3 + $0x60] sm:$0xff] %v2569
    %2586 = vst [vmem:[#allocation3 + $0x68] sm:$0xff] %v2570
    %2587 = vst [vmem:[#allocation3 + $0x70] sm:$0xff] %v2571
    %2588 = vst [vmem:[#allocation3 + $0x78] sm:$0xff] %v2572
    // Predicated region
    $region22: #{tpu_custom_call.1} parent=1 // pred_check
      _
    $region23: #{tpu_custom_call.1} parent=1 // pred_check_branch
      %2590 = sbr.rel (0) target = $region25
    $region24: #{tpu_custom_call.1} parent=1 // pred_region
      %2592 = vsyncadd [#allocation4], 0
      %s2593 = sshll.u32 [#allocation3], 4
      %s2594 = int_to_ptr.vmem [resolvable:$true] %s2593
      %s2595 = sshll.u32 %s5, 4
      %s2596 = int_to_ptr.hbm [resolvable:$true] %s2595
      %2601 = dma.vmem_to_hbm [thread:$0]  %s2594, 2048, %s2596, [#allocation4], 128, 128, 8
    $region25: #{tpu_custom_call.1} parent=1 // pred_fallthru
      _
    // Predicated region
    $region26: #{tpu_custom_call.1} parent=1 // pred_check
      _
    $region27: #{tpu_custom_call.1} parent=1 // pred_check_branch
      %2603 = sbr.rel (0) target = $region29
    $region28: #{tpu_custom_call.1} parent=1 // pred_region
      %2605 = dma.done [#allocation4], 2048
    $region29: #{tpu_custom_call.1} parent=1 // pred_fallthru
      _
    %2606 = vsyncpa [#allocation4], 1

</llo_original>
